<compile_context>
chip_gen: v6e
topology: v6e:2x2x1
jax: 0.10.0
libtpu: 0.0.40
codegen_flags: <defaults>
</compile_context>

<pallas_src>
import math

import numpy as np
import jax
import jax.numpy as jnp
from jax.experimental import pallas as pl
from jax.experimental.pallas import tpu as pltpu


def encode_conv_block_n(x, w1, b1, nw1, w2, b2, nw2, noise, *, padding=1,
                        compute_dtype=None):
    """Forward pass of EncodeConvBlockN. x: (N, C, H, W); noise = (noise0, noise1)."""
    N, C_in, H, W = x.shape
    O, _, k, _ = w1.shape
    assert k == 3 and padding == 1, "kernel specialised to the module default 3x3 / pad=1"

    # equal_lr multipliers
    mult1 = math.sqrt(2.0 / (C_in * k * k))   # conv1 weight
    mult2 = math.sqrt(2.0 / (O * k * k))      # conv2 weight
    mult_n = math.sqrt(2.0 / O)               # NoiseInjection weight

    # bf16 operands (f32 accumulation) by default at non-toy channel counts.
    if compute_dtype is None:
        compute_dtype = jnp.bfloat16 if max(C_in, O) >= 64 else jnp.float32
    cd = compute_dtype

    # ---- extended flattened layout --------------------------------------------
    Wp = W + 1                      # row pitch (one appended zero column per row)
    Z = Wp + 1                      # leading zero-pad length
    Mf = H * Wp                     # full-resolution (stride-1) flat grid size
    Lx = Mf + 2 * (Wp + 1)          # extended flat length
    H2 = (H + 2 * padding - k) // 2 + 1
    W2 = (W + 2 * padding - k) // 2 + 1
    M2 = H2 * W2

    Cp = ((C_in + 7) // 8) * 8      # pad contraction dim to a sublane multiple

    # x -> (N, Cp, Lx): zero channel pad, zero pitch column, zero ends.
    xr = jnp.pad(x, ((0, 0), (0, Cp - C_in), (0, 0), (0, 1)))
    x_ext = jnp.pad(xr.reshape(N, Cp, Mf), ((0, 0), (0, 0), (Z, Wp + 1))).astype(cd)

    # per-tap weight matrices: ws[t, o, c] = w[o, c, kh, kw] * mult, t = kh*3 + kw
    w1s = jnp.pad(jnp.transpose(w1 * mult1, (2, 3, 0, 1)).reshape(9, O, C_in),
                  ((0, 0), (0, 0), (0, Cp - C_in))).astype(cd)
    w2s = jnp.transpose(w2 * mult2, (2, 3, 0, 1)).reshape(9, O, O).astype(cd)

    b1c = b1.reshape(O, 1).astype(jnp.float32)
    b2c = b2.reshape(O, 1).astype(jnp.float32)
    nw1c = (nw1.reshape(O, 1) * mult_n).astype(jnp.float32)
    nw2c = (nw2.reshape(O, 1) * mult_n).astype(jnp.float32)

    n0, n1 = noise
    n0f = jnp.pad(n0.reshape(N, 1, H, W), ((0, 0), (0, 0), (0, 0), (0, 1)))
    n0f = n0f.reshape(N, 1, Mf).astype(jnp.float32)
    n1f = n1.reshape(N, 1, M2).astype(jnp.float32)

    # zero-mask for the appended pitch column on the full-res grid
    cmask = (jnp.arange(Mf) % Wp < W).astype(jnp.float32).reshape(1, Mf)

    # exact stride-2 subsample as a 0/1 selection matrix (Mf, M2)
    sel_idx = (2 * jnp.arange(H2)[:, None] * Wp
               + 2 * jnp.arange(W2)[None, :]).reshape(M2)
    sel = (jnp.arange(Mf)[:, None] == sel_idx[None, :]).astype(jnp.float32)

    slope = 0.2
    taps = [(kh, kw) for kh in range(3) for kw in range(3)]

    def kernel(x_ref, w1_ref, w2_ref, b1_ref, nw1_ref, b2_ref, nw2_ref,
               n0_ref, n1_ref, cm_ref, sel_ref, out_ref, y1_scr):
        xv = x_ref[0]                                        # (Cp, Lx)

        # ---- stage 1: 3x3 stride-1 conv + bias + noise + LeakyReLU -------------
        acc1 = jnp.zeros((O, Mf), jnp.float32)
        for t, (kh, kw) in enumerate(taps):
            off = Z + (kh - 1) * Wp + (kw - 1)               # static slice offset
            acc1 = acc1 + jnp.dot(w1_ref[t], xv[:, off:off + Mf],
                                  preferred_element_type=jnp.float32)
        y1 = acc1 + b1_ref[...] + nw1_ref[...] * n0_ref[0]
        y1 = jnp.where(y1 >= 0.0, y1, slope * y1)
        y1 = y1 * cm_ref[...]                                # re-zero pitch columns

        # park y1 in VMEM (extended layout) -> conv2 padding is genuine zeros
        y1_scr[...] = jnp.zeros_like(y1_scr)
        y1_scr[:, Z:Z + Mf] = y1.astype(y1_scr.dtype)

        # ---- stage 2: 3x3 conv at stride-1 resolution, exact stride-2 pick -----
        acc2 = jnp.zeros((O, Mf), jnp.float32)
        for t, (kh, kw) in enumerate(taps):
            off = Z + (kh - 1) * Wp + (kw - 1)
            acc2 = acc2 + jnp.dot(w2_ref[t], y1_scr[:, off:off + Mf],
                                  preferred_element_type=jnp.float32)
        z2 = jnp.dot(acc2, sel_ref[...], preferred_element_type=jnp.float32)
        y2 = z2 + b2_ref[...] + nw2_ref[...] * n1_ref[0]
        y2 = jnp.where(y2 >= 0.0, y2, slope * y2)
        out_ref[0] = y2.astype(out_ref.dtype)

    out = pl.pallas_call(
        kernel,
        out_shape=jax.ShapeDtypeStruct((N, O, M2), x.dtype),
        grid=(N,),
        in_specs=[
            pl.BlockSpec((1, Cp, Lx), lambda n: (n, 0, 0)),   # x (per-batch block)
            pl.BlockSpec((9, O, Cp), lambda n: (0, 0, 0)),    # w1 taps (resident)
            pl.BlockSpec((9, O, O), lambda n: (0, 0, 0)),     # w2 taps (resident)
            pl.BlockSpec((O, 1), lambda n: (0, 0)),           # b1
            pl.BlockSpec((O, 1), lambda n: (0, 0)),           # nw1 (scaled)
            pl.BlockSpec((O, 1), lambda n: (0, 0)),           # b2
            pl.BlockSpec((O, 1), lambda n: (0, 0)),           # nw2 (scaled)
            pl.BlockSpec((1, 1, Mf), lambda n: (n, 0, 0)),    # noise0 (per batch)
            pl.BlockSpec((1, 1, M2), lambda n: (n, 0, 0)),    # noise1 (per batch)
            pl.BlockSpec((1, Mf), lambda n: (0, 0)),          # pitch-column mask
            pl.BlockSpec((Mf, M2), lambda n: (0, 0)),         # stride-2 selection
        ],
        out_specs=pl.BlockSpec((1, O, M2), lambda n: (n, 0, 0)),
        scratch_shapes=[pltpu.VMEM((O, Lx), cd)],             # y1 stays on-chip
        compiler_params=pltpu.CompilerParams(
            dimension_semantics=("parallel",),                # >=2 steps -> both v7x TCs
            vmem_limit_bytes=32 * 1024 * 1024),
    )(x_ext, w1s, w2s, b1c, nw1c, b2c, nw2c, n0f, n1f, cmask, sel)

    return out.reshape(N, O, H2, W2)


# --------------------------------------------------------------------------------
# Pure-JAX reference mirroring the PyTorch forward
# --------------------------------------------------------------------------------
def reference(x, w1, b1, nw1, w2, b2, nw2, noise, *, padding=1):
    N, C_in, H, W = x.shape
    O, _, k, _ = w1.shape
    mult1 = math.sqrt(2.0 / (C_in * k * k))
    mult2 = math.sqrt(2.0 / (O * k * k))
    mult_n = math.sqrt(2.0 / O)
    dn = ("NCHW", "OIHW", "NCHW")

    y = jax.lax.conv_general_dilated(x, w1 * mult1, (1, 1),
                                     [(padding, padding)] * 2,
                                     dimension_numbers=dn)
    y = y + b1.reshape(1, -1, 1, 1)
    y = y + (nw1 * mult_n).reshape(1, -1, 1, 1) * noise[0]
    y = jnp.where(y >= 0, y, 0.2 * y)
    # InstanceNorm call in the PyTorch forward is not assigned back -> no-op.
    y = jax.lax.conv_general_dilated(y, w2 * mult2, (2, 2),
                                     [(padding, padding)] * 2,
                                     dimension_numbers=dn)
    y = y + b2.reshape(1, -1, 1, 1)
    y = y + (nw2 * mult_n).reshape(1, -1, 1, 1) * noise[1]
    y = jnp.where(y >= 0, y, 0.2 * y)
    return y


if __name__ == "__main__":
    # module config: EncodeConvBlockN(in_channel=4, out_channel=8, kernel_size=3, padding=1)
    in_channel, out_channel, kernel_size, padding = 4, 8, 3, 1
    N, H, W = 2, 16, 16
    H2 = (H + 2 * padding - kernel_size) // 2 + 1
    W2 = (W + 2 * padding - kernel_size) // 2 + 1

    key = jax.random.PRNGKey(0)
    ks = jax.random.split(key, 9)
    x = jax.random.normal(ks[0], (N, in_channel, H, W), jnp.float32)
    w1 = jax.random.normal(ks[1], (out_channel, in_channel, kernel_size, kernel_size), jnp.float32)
    b1 = 0.1 * jax.random.normal(ks[2], (out_channel,), jnp.float32)
    w2 = jax.random.normal(ks[3], (out_channel, out_channel, kernel_size, kernel_size), jnp.float32)
    b2 = 0.1 * jax.random.normal(ks[4], (out_channel,), jnp.float32)
    # NoiseInjection weights are zero-initialized in the module; use nonzero values
    # here so the noise path is actually exercised (same values feed kernel + ref).
    nw1 = 0.5 * jax.random.normal(ks[5], (out_channel,), jnp.float32)
    nw2 = 0.5 * jax.random.normal(ks[6], (out_channel,), jnp.float32)
    noise0 = jax.random.normal(ks[7], (N, 1, H, W), jnp.float32)
    noise1 = jax.random.normal(ks[8], (N, 1, H2, W2), jnp.float32)

    fwd = jax.jit(encode_conv_block_n)
    out = jax.block_until_ready(fwd(x, w1, b1, nw1, w2, b2, nw2, (noise0, noise1)))

    ref = jax.block_until_ready(
        reference(x, w1, b1, nw1, w2, b2, nw2, (noise0, noise1)))
    assert out.shape == ref.shape, (out.shape, ref.shape)
    max_err = float(np.max(np.abs(np.asarray(out) - np.asarray(ref))))
    assert np.allclose(np.asarray(out), np.asarray(ref), atol=1e-4, rtol=1e-4), max_err

    print("KERNEL_OK")
</pallas_src>

<mosaic_0001>
module attributes {stable_mosaic.version = 11 : i64} {
  func.func @kernel(%arg0: i32, %arg1: memref<1x8x308xf32, #tpu.memory_space<vmem>>, %arg2: memref<9x8x8xf32, #tpu.memory_space<vmem>>, %arg3: memref<9x8x8xf32, #tpu.memory_space<vmem>>, %arg4: memref<8x1xf32, #tpu.memory_space<vmem>>, %arg5: memref<8x1xf32, #tpu.memory_space<vmem>>, %arg6: memref<8x1xf32, #tpu.memory_space<vmem>>, %arg7: memref<8x1xf32, #tpu.memory_space<vmem>>, %arg8: memref<1x1x272xf32, #tpu.memory_space<vmem>>, %arg9: memref<1x1x64xf32, #tpu.memory_space<vmem>>, %arg10: memref<1x272xf32, #tpu.memory_space<vmem>>, %arg11: memref<272x64xf32, #tpu.memory_space<vmem>>, %arg12: memref<1x8x64xf32, #tpu.memory_space<vmem>>, %arg13: memref<8x308xf32, #tpu.memory_space<vmem>>) attributes {dimension_semantics = [#tpu.dimension_semantics<parallel>], iteration_bounds = array<i64: 2>, scalar_prefetch = 0 : i64, scratch_operands = 1 : i64, tpu.core_type = #tpu.core_type<tc>, window_params = [{transform_indices = @transform_0, window_bounds = array<i64: 1, 8, 308>}, {pipeline_mode = #tpu.pipeline_mode<synchronous>, transform_indices = @transform_1, window_bounds = array<i64: 9, 8, 8>}, {pipeline_mode = #tpu.pipeline_mode<synchronous>, transform_indices = @transform_2, window_bounds = array<i64: 9, 8, 8>}, {pipeline_mode = #tpu.pipeline_mode<synchronous>, transform_indices = @transform_3, window_bounds = array<i64: 8, 1>}, {pipeline_mode = #tpu.pipeline_mode<synchronous>, transform_indices = @transform_4, window_bounds = array<i64: 8, 1>}, {pipeline_mode = #tpu.pipeline_mode<synchronous>, transform_indices = @transform_5, window_bounds = array<i64: 8, 1>}, {pipeline_mode = #tpu.pipeline_mode<synchronous>, transform_indices = @transform_6, window_bounds = array<i64: 8, 1>}, {transform_indices = @transform_7, window_bounds = array<i64: 1, 1, 272>}, {transform_indices = @transform_8, window_bounds = array<i64: 1, 1, 64>}, {pipeline_mode = #tpu.pipeline_mode<synchronous>, transform_indices = @transform_9, window_bounds = array<i64: 1, 272>}, {pipeline_mode = #tpu.pipeline_mode<synchronous>, transform_indices = @transform_10, window_bounds = array<i64: 272, 64>}, {transform_indices = @transform_11, window_bounds = array<i64: 1, 8, 64>}]} {
    %c0 = arith.constant 0 : index
    %c0_0 = arith.constant 0 : index
    %c0_1 = arith.constant 0 : index
    %0 = vector.load %arg1[%c0, %c0_0, %c0_1] : memref<1x8x308xf32, #tpu.memory_space<vmem>>, vector<1x8x308xf32>
    %1 = vector.shape_cast %0 : vector<1x8x308xf32> to vector<8x308xf32>
    %cst = arith.constant 0.000000e+00 : f32
    %2 = vector.broadcast %cst : f32 to vector<8x272xf32>
    %c0_2 = arith.constant 0 : index
    %c0_3 = arith.constant 0 : index
    %c0_4 = arith.constant 0 : index
    %3 = vector.load %arg2[%c0_2, %c0_3, %c0_4] : memref<9x8x8xf32, #tpu.memory_space<vmem>>, vector<1x8x8xf32>
    %4 = vector.shape_cast %3 : vector<1x8x8xf32> to vector<8x8xf32>
    %5 = vector.extract_strided_slice %1 {offsets = [0, 0], sizes = [8, 272], strides = [1, 1]} : vector<8x308xf32> to vector<8x272xf32>
    %cst_5 = arith.constant dense<0.000000e+00> : vector<8x272xf32>
    %6 = tpu.matmul %4, %5, %cst_5 {dimension_numbers = #tpu.dot_dimension_numbers<[1], [0], [0], [1], [0, 0, 1, 1], [], []>} : vector<8x8xf32>, vector<8x272xf32>, vector<8x272xf32> -> vector<8x272xf32>
    %7 = arith.addf %2, %6 : vector<8x272xf32>
    %c1 = arith.constant 1 : index
    %c0_6 = arith.constant 0 : index
    %c0_7 = arith.constant 0 : index
    %8 = vector.load %arg2[%c1, %c0_6, %c0_7] : memref<9x8x8xf32, #tpu.memory_space<vmem>>, vector<1x8x8xf32>
    %9 = vector.shape_cast %8 : vector<1x8x8xf32> to vector<8x8xf32>
    %10 = vector.extract_strided_slice %1 {offsets = [0, 1], sizes = [8, 272], strides = [1, 1]} : vector<8x308xf32> to vector<8x272xf32>
    %cst_8 = arith.constant dense<0.000000e+00> : vector<8x272xf32>
    %11 = tpu.matmul %9, %10, %cst_8 {dimension_numbers = #tpu.dot_dimension_numbers<[1], [0], [0], [1], [0, 0, 1, 1], [], []>} : vector<8x8xf32>, vector<8x272xf32>, vector<8x272xf32> -> vector<8x272xf32>
    %12 = arith.addf %7, %11 : vector<8x272xf32>
    %c2 = arith.constant 2 : index
    %c0_9 = arith.constant 0 : index
    %c0_10 = arith.constant 0 : index
    %13 = vector.load %arg2[%c2, %c0_9, %c0_10] : memref<9x8x8xf32, #tpu.memory_space<vmem>>, vector<1x8x8xf32>
    %14 = vector.shape_cast %13 : vector<1x8x8xf32> to vector<8x8xf32>
    %15 = vector.extract_strided_slice %1 {offsets = [0, 2], sizes = [8, 272], strides = [1, 1]} : vector<8x308xf32> to vector<8x272xf32>
    %cst_11 = arith.constant dense<0.000000e+00> : vector<8x272xf32>
    %16 = tpu.matmul %14, %15, %cst_11 {dimension_numbers = #tpu.dot_dimension_numbers<[1], [0], [0], [1], [0, 0, 1, 1], [], []>} : vector<8x8xf32>, vector<8x272xf32>, vector<8x272xf32> -> vector<8x272xf32>
    %17 = arith.addf %12, %16 : vector<8x272xf32>
    %c3 = arith.constant 3 : index
    %c0_12 = arith.constant 0 : index
    %c0_13 = arith.constant 0 : index
    %18 = vector.load %arg2[%c3, %c0_12, %c0_13] : memref<9x8x8xf32, #tpu.memory_space<vmem>>, vector<1x8x8xf32>
    %19 = vector.shape_cast %18 : vector<1x8x8xf32> to vector<8x8xf32>
    %20 = vector.extract_strided_slice %1 {offsets = [0, 17], sizes = [8, 272], strides = [1, 1]} : vector<8x308xf32> to vector<8x272xf32>
    %cst_14 = arith.constant dense<0.000000e+00> : vector<8x272xf32>
    %21 = tpu.matmul %19, %20, %cst_14 {dimension_numbers = #tpu.dot_dimension_numbers<[1], [0], [0], [1], [0, 0, 1, 1], [], []>} : vector<8x8xf32>, vector<8x272xf32>, vector<8x272xf32> -> vector<8x272xf32>
    %22 = arith.addf %17, %21 : vector<8x272xf32>
    %c4 = arith.constant 4 : index
    %c0_15 = arith.constant 0 : index
    %c0_16 = arith.constant 0 : index
    %23 = vector.load %arg2[%c4, %c0_15, %c0_16] : memref<9x8x8xf32, #tpu.memory_space<vmem>>, vector<1x8x8xf32>
    %24 = vector.shape_cast %23 : vector<1x8x8xf32> to vector<8x8xf32>
    %25 = vector.extract_strided_slice %1 {offsets = [0, 18], sizes = [8, 272], strides = [1, 1]} : vector<8x308xf32> to vector<8x272xf32>
    %cst_17 = arith.constant dense<0.000000e+00> : vector<8x272xf32>
    %26 = tpu.matmul %24, %25, %cst_17 {dimension_numbers = #tpu.dot_dimension_numbers<[1], [0], [0], [1], [0, 0, 1, 1], [], []>} : vector<8x8xf32>, vector<8x272xf32>, vector<8x272xf32> -> vector<8x272xf32>
    %27 = arith.addf %22, %26 : vector<8x272xf32>
    %c5 = arith.constant 5 : index
    %c0_18 = arith.constant 0 : index
    %c0_19 = arith.constant 0 : index
    %28 = vector.load %arg2[%c5, %c0_18, %c0_19] : memref<9x8x8xf32, #tpu.memory_space<vmem>>, vector<1x8x8xf32>
    %29 = vector.shape_cast %28 : vector<1x8x8xf32> to vector<8x8xf32>
    %30 = vector.extract_strided_slice %1 {offsets = [0, 19], sizes = [8, 272], strides = [1, 1]} : vector<8x308xf32> to vector<8x272xf32>
    %cst_20 = arith.constant dense<0.000000e+00> : vector<8x272xf32>
    %31 = tpu.matmul %29, %30, %cst_20 {dimension_numbers = #tpu.dot_dimension_numbers<[1], [0], [0], [1], [0, 0, 1, 1], [], []>} : vector<8x8xf32>, vector<8x272xf32>, vector<8x272xf32> -> vector<8x272xf32>
    %32 = arith.addf %27, %31 : vector<8x272xf32>
    %c6 = arith.constant 6 : index
    %c0_21 = arith.constant 0 : index
    %c0_22 = arith.constant 0 : index
    %33 = vector.load %arg2[%c6, %c0_21, %c0_22] : memref<9x8x8xf32, #tpu.memory_space<vmem>>, vector<1x8x8xf32>
    %34 = vector.shape_cast %33 : vector<1x8x8xf32> to vector<8x8xf32>
    %35 = vector.extract_strided_slice %1 {offsets = [0, 34], sizes = [8, 272], strides = [1, 1]} : vector<8x308xf32> to vector<8x272xf32>
    %cst_23 = arith.constant dense<0.000000e+00> : vector<8x272xf32>
    %36 = tpu.matmul %34, %35, %cst_23 {dimension_numbers = #tpu.dot_dimension_numbers<[1], [0], [0], [1], [0, 0, 1, 1], [], []>} : vector<8x8xf32>, vector<8x272xf32>, vector<8x272xf32> -> vector<8x272xf32>
    %37 = arith.addf %32, %36 : vector<8x272xf32>
    %c7 = arith.constant 7 : index
    %c0_24 = arith.constant 0 : index
    %c0_25 = arith.constant 0 : index
    %38 = vector.load %arg2[%c7, %c0_24, %c0_25] : memref<9x8x8xf32, #tpu.memory_space<vmem>>, vector<1x8x8xf32>
    %39 = vector.shape_cast %38 : vector<1x8x8xf32> to vector<8x8xf32>
    %40 = vector.extract_strided_slice %1 {offsets = [0, 35], sizes = [8, 272], strides = [1, 1]} : vector<8x308xf32> to vector<8x272xf32>
    %cst_26 = arith.constant dense<0.000000e+00> : vector<8x272xf32>
    %41 = tpu.matmul %39, %40, %cst_26 {dimension_numbers = #tpu.dot_dimension_numbers<[1], [0], [0], [1], [0, 0, 1, 1], [], []>} : vector<8x8xf32>, vector<8x272xf32>, vector<8x272xf32> -> vector<8x272xf32>
    %42 = arith.addf %37, %41 : vector<8x272xf32>
    %c8 = arith.constant 8 : index
    %c0_27 = arith.constant 0 : index
    %c0_28 = arith.constant 0 : index
    %43 = vector.load %arg2[%c8, %c0_27, %c0_28] : memref<9x8x8xf32, #tpu.memory_space<vmem>>, vector<1x8x8xf32>
    %44 = vector.shape_cast %43 : vector<1x8x8xf32> to vector<8x8xf32>
    %45 = vector.extract_strided_slice %1 {offsets = [0, 36], sizes = [8, 272], strides = [1, 1]} : vector<8x308xf32> to vector<8x272xf32>
    %cst_29 = arith.constant dense<0.000000e+00> : vector<8x272xf32>
    %46 = tpu.matmul %44, %45, %cst_29 {dimension_numbers = #tpu.dot_dimension_numbers<[1], [0], [0], [1], [0, 0, 1, 1], [], []>} : vector<8x8xf32>, vector<8x272xf32>, vector<8x272xf32> -> vector<8x272xf32>
    %47 = arith.addf %42, %46 : vector<8x272xf32>
    %c0_30 = arith.constant 0 : index
    %c0_31 = arith.constant 0 : index
    %48 = vector.load %arg4[%c0_30, %c0_31] : memref<8x1xf32, #tpu.memory_space<vmem>>, vector<8x1xf32>
    %49 = vector.broadcast %48 : vector<8x1xf32> to vector<8x272xf32>
    %50 = arith.addf %47, %49 : vector<8x272xf32>
    %c0_32 = arith.constant 0 : index
    %c0_33 = arith.constant 0 : index
    %51 = vector.load %arg5[%c0_32, %c0_33] : memref<8x1xf32, #tpu.memory_space<vmem>>, vector<8x1xf32>
    %c0_34 = arith.constant 0 : index
    %c0_35 = arith.constant 0 : index
    %c0_36 = arith.constant 0 : index
    %52 = vector.load %arg8[%c0_34, %c0_35, %c0_36] : memref<1x1x272xf32, #tpu.memory_space<vmem>>, vector<1x1x272xf32>
    %53 = vector.shape_cast %52 : vector<1x1x272xf32> to vector<1x272xf32>
    %54 = vector.broadcast %51 : vector<8x1xf32> to vector<8x272xf32>
    %55 = vector.broadcast %53 : vector<1x272xf32> to vector<8x272xf32>
    %56 = arith.mulf %54, %55 : vector<8x272xf32>
    %57 = arith.addf %50, %56 : vector<8x272xf32>
    %cst_37 = arith.constant 0.000000e+00 : f32
    %58 = vector.broadcast %cst_37 : f32 to vector<8x272xf32>
    %59 = arith.cmpf oge, %57, %58 : vector<8x272xf32>
    %cst_38 = arith.constant 2.000000e-01 : f32
    %60 = vector.broadcast %cst_38 : f32 to vector<8x272xf32>
    %61 = arith.mulf %60, %57 : vector<8x272xf32>
    %62 = arith.select %59, %57, %61 : vector<8x272xi1>, vector<8x272xf32>
    %c0_39 = arith.constant 0 : index
    %c0_40 = arith.constant 0 : index
    %63 = vector.load %arg10[%c0_39, %c0_40] : memref<1x272xf32, #tpu.memory_space<vmem>>, vector<1x272xf32>
    %64 = vector.broadcast %63 : vector<1x272xf32> to vector<8x272xf32>
    %65 = arith.mulf %62, %64 : vector<8x272xf32>
    %cst_41 = arith.constant 0.000000e+00 : f32
    %66 = vector.broadcast %cst_41 : f32 to vector<8x308xf32>
    %c0_42 = arith.constant 0 : index
    %c0_43 = arith.constant 0 : index
    %67 = vector.load %arg13[%c0_42, %c0_43] : memref<8x308xf32, #tpu.memory_space<vmem>>, vector<8x308xf32>
    tpu.vector_store %arg13[%c0_42, %c0_43], %66 {strides = array<i32>} : memref<8x308xf32, #tpu.memory_space<vmem>>, vector<8x308xf32>,
    %c0_44 = arith.constant 0 : index
    %c18 = arith.constant 18 : index
    %68 = vector.load %arg13[%c0_44, %c18] : memref<8x308xf32, #tpu.memory_space<vmem>>, vector<8x272xf32>
    tpu.vector_store %arg13[%c0_44, %c18], %65 {strides = array<i32>} : memref<8x308xf32, #tpu.memory_space<vmem>>, vector<8x272xf32>,
    %cst_45 = arith.constant 0.000000e+00 : f32
    %69 = vector.broadcast %cst_45 : f32 to vector<8x272xf32>
    %c0_46 = arith.constant 0 : index
    %c0_47 = arith.constant 0 : index
    %c0_48 = arith.constant 0 : index
    %70 = vector.load %arg3[%c0_46, %c0_47, %c0_48] : memref<9x8x8xf32, #tpu.memory_space<vmem>>, vector<1x8x8xf32>
    %71 = vector.shape_cast %70 : vector<1x8x8xf32> to vector<8x8xf32>
    %c0_49 = arith.constant 0 : index
    %c0_50 = arith.constant 0 : index
    %72 = vector.load %arg13[%c0_49, %c0_50] : memref<8x308xf32, #tpu.memory_space<vmem>>, vector<8x272xf32>
    %cst_51 = arith.constant dense<0.000000e+00> : vector<8x272xf32>
    %73 = tpu.matmul %71, %72, %cst_51 {dimension_numbers = #tpu.dot_dimension_numbers<[1], [0], [0], [1], [0, 0, 1, 1], [], []>} : vector<8x8xf32>, vector<8x272xf32>, vector<8x272xf32> -> vector<8x272xf32>
    %74 = arith.addf %69, %73 : vector<8x272xf32>
    %c1_52 = arith.constant 1 : index
    %c0_53 = arith.constant 0 : index
    %c0_54 = arith.constant 0 : index
    %75 = vector.load %arg3[%c1_52, %c0_53, %c0_54] : memref<9x8x8xf32, #tpu.memory_space<vmem>>, vector<1x8x8xf32>
    %76 = vector.shape_cast %75 : vector<1x8x8xf32> to vector<8x8xf32>
    %c0_55 = arith.constant 0 : index
    %c1_56 = arith.constant 1 : index
    %77 = vector.load %arg13[%c0_55, %c1_56] : memref<8x308xf32, #tpu.memory_space<vmem>>, vector<8x272xf32>
    %cst_57 = arith.constant dense<0.000000e+00> : vector<8x272xf32>
    %78 = tpu.matmul %76, %77, %cst_57 {dimension_numbers = #tpu.dot_dimension_numbers<[1], [0], [0], [1], [0, 0, 1, 1], [], []>} : vector<8x8xf32>, vector<8x272xf32>, vector<8x272xf32> -> vector<8x272xf32>
    %79 = arith.addf %74, %78 : vector<8x272xf32>
    %c2_58 = arith.constant 2 : index
    %c0_59 = arith.constant 0 : index
    %c0_60 = arith.constant 0 : index
    %80 = vector.load %arg3[%c2_58, %c0_59, %c0_60] : memref<9x8x8xf32, #tpu.memory_space<vmem>>, vector<1x8x8xf32>
    %81 = vector.shape_cast %80 : vector<1x8x8xf32> to vector<8x8xf32>
    %c0_61 = arith.constant 0 : index
    %c2_62 = arith.constant 2 : index
    %82 = vector.load %arg13[%c0_61, %c2_62] : memref<8x308xf32, #tpu.memory_space<vmem>>, vector<8x272xf32>
    %cst_63 = arith.constant dense<0.000000e+00> : vector<8x272xf32>
    %83 = tpu.matmul %81, %82, %cst_63 {dimension_numbers = #tpu.dot_dimension_numbers<[1], [0], [0], [1], [0, 0, 1, 1], [], []>} : vector<8x8xf32>, vector<8x272xf32>, vector<8x272xf32> -> vector<8x272xf32>
    %84 = arith.addf %79, %83 : vector<8x272xf32>
    %c3_64 = arith.constant 3 : index
    %c0_65 = arith.constant 0 : index
    %c0_66 = arith.constant 0 : index
    %85 = vector.load %arg3[%c3_64, %c0_65, %c0_66] : memref<9x8x8xf32, #tpu.memory_space<vmem>>, vector<1x8x8xf32>
    %86 = vector.shape_cast %85 : vector<1x8x8xf32> to vector<8x8xf32>
    %c0_67 = arith.constant 0 : index
    %c17 = arith.constant 17 : index
    %87 = vector.load %arg13[%c0_67, %c17] : memref<8x308xf32, #tpu.memory_space<vmem>>, vector<8x272xf32>
    %cst_68 = arith.constant dense<0.000000e+00> : vector<8x272xf32>
    %88 = tpu.matmul %86, %87, %cst_68 {dimension_numbers = #tpu.dot_dimension_numbers<[1], [0], [0], [1], [0, 0, 1, 1], [], []>} : vector<8x8xf32>, vector<8x272xf32>, vector<8x272xf32> -> vector<8x272xf32>
    %89 = arith.addf %84, %88 : vector<8x272xf32>
    %c4_69 = arith.constant 4 : index
    %c0_70 = arith.constant 0 : index
    %c0_71 = arith.constant 0 : index
    %90 = vector.load %arg3[%c4_69, %c0_70, %c0_71] : memref<9x8x8xf32, #tpu.memory_space<vmem>>, vector<1x8x8xf32>
    %91 = vector.shape_cast %90 : vector<1x8x8xf32> to vector<8x8xf32>
    %c0_72 = arith.constant 0 : index
    %c18_73 = arith.constant 18 : index
    %92 = vector.load %arg13[%c0_72, %c18_73] : memref<8x308xf32, #tpu.memory_space<vmem>>, vector<8x272xf32>
    %cst_74 = arith.constant dense<0.000000e+00> : vector<8x272xf32>
    %93 = tpu.matmul %91, %92, %cst_74 {dimension_numbers = #tpu.dot_dimension_numbers<[1], [0], [0], [1], [0, 0, 1, 1], [], []>} : vector<8x8xf32>, vector<8x272xf32>, vector<8x272xf32> -> vector<8x272xf32>
    %94 = arith.addf %89, %93 : vector<8x272xf32>
    %c5_75 = arith.constant 5 : index
    %c0_76 = arith.constant 0 : index
    %c0_77 = arith.constant 0 : index
    %95 = vector.load %arg3[%c5_75, %c0_76, %c0_77] : memref<9x8x8xf32, #tpu.memory_space<vmem>>, vector<1x8x8xf32>
    %96 = vector.shape_cast %95 : vector<1x8x8xf32> to vector<8x8xf32>
    %c0_78 = arith.constant 0 : index
    %c19 = arith.constant 19 : index
    %97 = vector.load %arg13[%c0_78, %c19] : memref<8x308xf32, #tpu.memory_space<vmem>>, vector<8x272xf32>
    %cst_79 = arith.constant dense<0.000000e+00> : vector<8x272xf32>
    %98 = tpu.matmul %96, %97, %cst_79 {dimension_numbers = #tpu.dot_dimension_numbers<[1], [0], [0], [1], [0, 0, 1, 1], [], []>} : vector<8x8xf32>, vector<8x272xf32>, vector<8x272xf32> -> vector<8x272xf32>
    %99 = arith.addf %94, %98 : vector<8x272xf32>
    %c6_80 = arith.constant 6 : index
    %c0_81 = arith.constant 0 : index
    %c0_82 = arith.constant 0 : index
    %100 = vector.load %arg3[%c6_80, %c0_81, %c0_82] : memref<9x8x8xf32, #tpu.memory_space<vmem>>, vector<1x8x8xf32>
    %101 = vector.shape_cast %100 : vector<1x8x8xf32> to vector<8x8xf32>
    %c0_83 = arith.constant 0 : index
    %c34 = arith.constant 34 : index
    %102 = vector.load %arg13[%c0_83, %c34] : memref<8x308xf32, #tpu.memory_space<vmem>>, vector<8x272xf32>
    %cst_84 = arith.constant dense<0.000000e+00> : vector<8x272xf32>
    %103 = tpu.matmul %101, %102, %cst_84 {dimension_numbers = #tpu.dot_dimension_numbers<[1], [0], [0], [1], [0, 0, 1, 1], [], []>} : vector<8x8xf32>, vector<8x272xf32>, vector<8x272xf32> -> vector<8x272xf32>
    %104 = arith.addf %99, %103 : vector<8x272xf32>
    %c7_85 = arith.constant 7 : index
    %c0_86 = arith.constant 0 : index
    %c0_87 = arith.constant 0 : index
    %105 = vector.load %arg3[%c7_85, %c0_86, %c0_87] : memref<9x8x8xf32, #tpu.memory_space<vmem>>, vector<1x8x8xf32>
    %106 = vector.shape_cast %105 : vector<1x8x8xf32> to vector<8x8xf32>
    %c0_88 = arith.constant 0 : index
    %c35 = arith.constant 35 : index
    %107 = vector.load %arg13[%c0_88, %c35] : memref<8x308xf32, #tpu.memory_space<vmem>>, vector<8x272xf32>
    %cst_89 = arith.constant dense<0.000000e+00> : vector<8x272xf32>
    %108 = tpu.matmul %106, %107, %cst_89 {dimension_numbers = #tpu.dot_dimension_numbers<[1], [0], [0], [1], [0, 0, 1, 1], [], []>} : vector<8x8xf32>, vector<8x272xf32>, vector<8x272xf32> -> vector<8x272xf32>
    %109 = arith.addf %104, %108 : vector<8x272xf32>
    %c8_90 = arith.constant 8 : index
    %c0_91 = arith.constant 0 : index
    %c0_92 = arith.constant 0 : index
    %110 = vector.load %arg3[%c8_90, %c0_91, %c0_92] : memref<9x8x8xf32, #tpu.memory_space<vmem>>, vector<1x8x8xf32>
    %111 = vector.shape_cast %110 : vector<1x8x8xf32> to vector<8x8xf32>
    %c0_93 = arith.constant 0 : index
    %c36 = arith.constant 36 : index
    %112 = vector.load %arg13[%c0_93, %c36] : memref<8x308xf32, #tpu.memory_space<vmem>>, vector<8x272xf32>
    %cst_94 = arith.constant dense<0.000000e+00> : vector<8x272xf32>
    %113 = tpu.matmul %111, %112, %cst_94 {dimension_numbers = #tpu.dot_dimension_numbers<[1], [0], [0], [1], [0, 0, 1, 1], [], []>} : vector<8x8xf32>, vector<8x272xf32>, vector<8x272xf32> -> vector<8x272xf32>
    %114 = arith.addf %109, %113 : vector<8x272xf32>
    %c0_95 = arith.constant 0 : index
    %c0_96 = arith.constant 0 : index
    %115 = vector.load %arg11[%c0_95, %c0_96] : memref<272x64xf32, #tpu.memory_space<vmem>>, vector<272x64xf32>
    %cst_97 = arith.constant dense<0.000000e+00> : vector<8x64xf32>
    %116 = tpu.matmul %114, %115, %cst_97 {dimension_numbers = #tpu.dot_dimension_numbers<[1], [0], [0], [1], [0, 0, 1, 1], [], []>} : vector<8x272xf32>, vector<272x64xf32>, vector<8x64xf32> -> vector<8x64xf32>
    %c0_98 = arith.constant 0 : index
    %c0_99 = arith.constant 0 : index
    %117 = vector.load %arg6[%c0_98, %c0_99] : memref<8x1xf32, #tpu.memory_space<vmem>>, vector<8x1xf32>
    %118 = vector.broadcast %117 : vector<8x1xf32> to vector<8x64xf32>
    %119 = arith.addf %116, %118 : vector<8x64xf32>
    %c0_100 = arith.constant 0 : index
    %c0_101 = arith.constant 0 : index
    %120 = vector.load %arg7[%c0_100, %c0_101] : memref<8x1xf32, #tpu.memory_space<vmem>>, vector<8x1xf32>
    %c0_102 = arith.constant 0 : index
    %c0_103 = arith.constant 0 : index
    %c0_104 = arith.constant 0 : index
    %121 = vector.load %arg9[%c0_102, %c0_103, %c0_104] : memref<1x1x64xf32, #tpu.memory_space<vmem>>, vector<1x1x64xf32>
    %122 = vector.shape_cast %121 : vector<1x1x64xf32> to vector<1x64xf32>
    %123 = vector.broadcast %120 : vector<8x1xf32> to vector<8x64xf32>
    %124 = vector.broadcast %122 : vector<1x64xf32> to vector<8x64xf32>
    %125 = arith.mulf %123, %124 : vector<8x64xf32>
    %126 = arith.addf %119, %125 : vector<8x64xf32>
    %cst_105 = arith.constant 0.000000e+00 : f32
    %127 = vector.broadcast %cst_105 : f32 to vector<8x64xf32>
    %128 = arith.cmpf oge, %126, %127 : vector<8x64xf32>
    %cst_106 = arith.constant 2.000000e-01 : f32
    %129 = vector.broadcast %cst_106 : f32 to vector<8x64xf32>
    %130 = arith.mulf %129, %126 : vector<8x64xf32>
    %131 = arith.select %128, %126, %130 : vector<8x64xi1>, vector<8x64xf32>
    %c0_107 = arith.constant 0 : index
    %c0_108 = arith.constant 0 : index
    %c0_109 = arith.constant 0 : index
    %132 = vector.load %arg12[%c0_107, %c0_108, %c0_109] : memref<1x8x64xf32, #tpu.memory_space<vmem>>, vector<1x8x64xf32>
    %133 = vector.shape_cast %132 : vector<1x8x64xf32> to vector<8x64xf32>
    %134 = vector.shape_cast %131 : vector<8x64xf32> to vector<1x8x64xf32>
    tpu.vector_store %arg12[%c0_107, %c0_108, %c0_109], %134 {strides = array<i32>} : memref<1x8x64xf32, #tpu.memory_space<vmem>>, vector<1x8x64xf32>,
    return
  }
  func.func @transform_0(%arg0: i32) -> (i32, i32, i32) {
    %c0_i32 = arith.constant 0 : i32
    %c0_i32_0 = arith.constant 0 : i32
    %c0_i32_1 = arith.constant 0 : i32
    return %arg0, %c0_i32, %c0_i32_0 : i32, i32, i32
  }
  func.func @transform_1(%arg0: i32) -> (i32, i32, i32) {
    %c0_i32 = arith.constant 0 : i32
    %c0_i32_0 = arith.constant 0 : i32
    %c0_i32_1 = arith.constant 0 : i32
    %c0_i32_2 = arith.constant 0 : i32
    return %c0_i32, %c0_i32_0, %c0_i32_1 : i32, i32, i32
  }
  func.func @transform_2(%arg0: i32) -> (i32, i32, i32) {
    %c0_i32 = arith.constant 0 : i32
    %c0_i32_0 = arith.constant 0 : i32
    %c0_i32_1 = arith.constant 0 : i32
    %c0_i32_2 = arith.constant 0 : i32
    return %c0_i32, %c0_i32_0, %c0_i32_1 : i32, i32, i32
  }
  func.func @transform_3(%arg0: i32) -> (i32, i32) {
    %c0_i32 = arith.constant 0 : i32
    %c0_i32_0 = arith.constant 0 : i32
    %c0_i32_1 = arith.constant 0 : i32
    return %c0_i32, %c0_i32_0 : i32, i32
  }
  func.func @transform_4(%arg0: i32) -> (i32, i32) {
    %c0_i32 = arith.constant 0 : i32
    %c0_i32_0 = arith.constant 0 : i32
    %c0_i32_1 = arith.constant 0 : i32
    return %c0_i32, %c0_i32_0 : i32, i32
  }
  func.func @transform_5(%arg0: i32) -> (i32, i32) {
    %c0_i32 = arith.constant 0 : i32
    %c0_i32_0 = arith.constant 0 : i32
    %c0_i32_1 = arith.constant 0 : i32
    return %c0_i32, %c0_i32_0 : i32, i32
  }
  func.func @transform_6(%arg0: i32) -> (i32, i32) {
    %c0_i32 = arith.constant 0 : i32
    %c0_i32_0 = arith.constant 0 : i32
    %c0_i32_1 = arith.constant 0 : i32
    return %c0_i32, %c0_i32_0 : i32, i32
  }
  func.func @transform_7(%arg0: i32) -> (i32, i32, i32) {
    %c0_i32 = arith.constant 0 : i32
    %c0_i32_0 = arith.constant 0 : i32
    %c0_i32_1 = arith.constant 0 : i32
    return %arg0, %c0_i32, %c0_i32_0 : i32, i32, i32
  }
  func.func @transform_8(%arg0: i32) -> (i32, i32, i32) {
    %c0_i32 = arith.constant 0 : i32
    %c0_i32_0 = arith.constant 0 : i32
    %c0_i32_1 = arith.constant 0 : i32
    return %arg0, %c0_i32, %c0_i32_0 : i32, i32, i32
  }
  func.func @transform_9(%arg0: i32) -> (i32, i32) {
    %c0_i32 = arith.constant 0 : i32
    %c0_i32_0 = arith.constant 0 : i32
    %c0_i32_1 = arith.constant 0 : i32
    return %c0_i32, %c0_i32_0 : i32, i32
  }
  func.func @transform_10(%arg0: i32) -> (i32, i32) {
    %c0_i32 = arith.constant 0 : i32
    %c0_i32_0 = arith.constant 0 : i32
    %c0_i32_1 = arith.constant 0 : i32
    return %c0_i32, %c0_i32_0 : i32, i32
  }
  func.func @transform_11(%arg0: i32) -> (i32, i32, i32) {
    %c0_i32 = arith.constant 0 : i32
    %c0_i32_0 = arith.constant 0 : i32
    %c0_i32_1 = arith.constant 0 : i32
    return %arg0, %c0_i32, %c0_i32_0 : i32, i32, i32
  }
}

</mosaic_0001>

<llo_original>
// kernel: encode_conv_block_n.1
$region0: #{encode_conv_block_n.1}
  #allocation0 [shape = 'u32[]', space=smem, size = 0x4, offset = 0x4, fixed_abs, tag = 'smem constant byte address 0x4 - core index']
  #allocation1 [shape = 'u32[144,128]{1,0:T(1,128)}', space=vmem, size = 0x12000, scoped, tag = 'internal scratch']
  #allocation2 [shape = 'f32[8,308]{1,0:T(8,128)}', space=vmem, size = 0x3000, scoped, tag = 'scratch operand']
  %s0 = inlined_call_operand.vmem [shape: f32[2,8,308], index: 0, kind: input, shape index: {}]
  %s1 = inlined_call_operand.vmem [shape: f32[9,8,8], index: 1, kind: input, shape index: {}]
  %s2 = inlined_call_operand.vmem [shape: f32[9,8,8], index: 2, kind: input, shape index: {}]
  %s3 = inlined_call_operand.vmem [shape: f32[8,1], index: 3, kind: input, shape index: {}]
  %s4 = inlined_call_operand.vmem [shape: f32[8,1], index: 4, kind: input, shape index: {}]
  %s5 = inlined_call_operand.vmem [shape: f32[8,1], index: 5, kind: input, shape index: {}]
  %s6 = inlined_call_operand.vmem [shape: f32[8,1], index: 6, kind: input, shape index: {}]
  %s7 = inlined_call_operand.vmem [shape: f32[2,1,272], index: 7, kind: input, shape index: {}]
  %s8 = inlined_call_operand.vmem [shape: f32[2,1,64], index: 8, kind: input, shape index: {}]
  %s9 = inlined_call_operand.vmem [shape: f32[1,272], index: 9, kind: input, shape index: {}]
  %s10 = inlined_call_operand.vmem [shape: f32[272,64], index: 10, kind: input, shape index: {}]
  %s11 = inlined_call_operand.vmem [shape: f32[2,8,64], index: 11, kind: output, shape index: {}]
  %s12 = sld [smem:[#allocation0]]
  $region77: #{encode_conv_block_n.1} parent=0
    _
  %s14 = ssub.s32 1, %s12
  %s15 = scalar_select 0, %s14, %s12
  loop: start=0, step=1, limit=4
  $region2: #{encode_conv_block_n.1} parent=0 // loop_pre_header
    _
  $region3: #{encode_conv_block_n.1} parent=0 // loop_header
    %s17 = sphi 0, %s21
    %p18 = scmp.ge.s32.totalorder %s17, 4
    %s27 = sphi 0, %s29
    %s30 = sphi 0, %s27
    %s31 = sphi 0, %s30
    %s47 = sphi 0, %s31
    %s51 = sphi 0, %s51
    %s53 = sphi 0, %s51
    %s54 = sphi 0, %s53
    %s68 = sphi 0, %s54
    %s72 = sphi 0, %s72
    %s74 = sphi 0, %s72
    %s75 = sphi 0, %s74
    %s89 = sphi 0, %s75
    %s93 = sphi 0, %s93
    %s95 = sphi 0, %s93
    %s96 = sphi 0, %s95
    %s110 = sphi 0, %s96
    %s114 = sphi 0, %s114
    %s116 = sphi 0, %s114
    %s117 = sphi 0, %s116
    %s131 = sphi 0, %s117
    %s135 = sphi 0, %s135
    %s137 = sphi 0, %s135
    %s138 = sphi 0, %s137
    %s152 = sphi 0, %s138
    %s156 = sphi 0, %s156
    %s158 = sphi 0, %s156
    %s159 = sphi 0, %s158
    %s173 = sphi 0, %s159
    %s179 = sphi 0, %s181
    %s182 = sphi 0, %s179
    %s183 = sphi 0, %s182
    %s199 = sphi 0, %s183
    %s205 = sphi 0, %s207
    %s208 = sphi 0, %s205
    %s209 = sphi 0, %s208
    %s225 = sphi 0, %s209
    %s229 = sphi 0, %s229
    %s231 = sphi 0, %s229
    %s232 = sphi 0, %s231
    %s246 = sphi 0, %s232
    %s250 = sphi 0, %s250
    %s252 = sphi 0, %s250
    %s253 = sphi 0, %s252
    %s267 = sphi 0, %s253
    %s273 = sphi 0, %s275
    %s276 = sphi 0, %s273
    %s277 = sphi 0, %s276
    %s293 = sphi 0, %s277
  $region4: #{encode_conv_block_n.1} parent=0 // loop_header_branch
    %20 = sbr.rel (%p18) target = $region8
  $region5: #{encode_conv_block_n.1} parent=0 // loop_body
    %s22 = ssub.s32 %s17, 1
    %s23 = ssub.s32 %s17, 2
    %s24 = sadd.s32 %s17, 1
    %s25 = ssub.s32 %s17, %s24
    %p26 = scmp.eq.s32.totalorder %s25, 0
    %s28 = sadd.s32 %s27, 1
    %s29 = scalar_select %p26, %s27, %s28
    %p32 = pneg %p26
    %p33 = scmp.eq.s32.totalorder %s17, 1
    %p34 = por %p32, %p33
    %p35 = scmp.ne.s32.totalorder %s27, %s30
    %p36 = scmp.eq.s32.totalorder %s17, 0
    %p37 = por %p35, %p36
    %p38 = scmp.ne.s32.totalorder %s27, %s30
    %p39 = scmp.eq.s32.totalorder %s22, 1
    %p40 = por %p38, %p39
    %p41 = scmp.ne.s32.totalorder %s30, %s31
    %p42 = scmp.eq.s32.totalorder %s22, 0
    %p43 = por %p41, %p42
    %p44 = scmp.ne.s32.totalorder %s30, %s31
    %p45 = scmp.eq.s32.totalorder %s23, 1
    %p46 = por %p44, %p45
    %p48 = scmp.ne.s32.totalorder %s31, %s47
    %p49 = scmp.eq.s32.totalorder %s23, 0
    %p50 = por %p48, %p49
    %s52 = sadd.s32 %s51, 1
    %p55 = scmp.eq.s32.totalorder %s17, 1
    %p56 = scmp.ne.s32.totalorder %s51, %s53
    %p57 = scmp.eq.s32.totalorder %s17, 0
    %p58 = por %p56, %p57
    %p59 = scmp.ne.s32.totalorder %s51, %s53
    %p60 = scmp.eq.s32.totalorder %s22, 1
    %p61 = por %p59, %p60
    %p62 = scmp.ne.s32.totalorder %s53, %s54
    %p63 = scmp.eq.s32.totalorder %s22, 0
    %p64 = por %p62, %p63
    %p65 = scmp.ne.s32.totalorder %s53, %s54
    %p66 = scmp.eq.s32.totalorder %s23, 1
    %p67 = por %p65, %p66
    %p69 = scmp.ne.s32.totalorder %s54, %s68
    %p70 = scmp.eq.s32.totalorder %s23, 0
    %p71 = por %p69, %p70
    %s73 = sadd.s32 %s72, 1
    %p76 = scmp.eq.s32.totalorder %s17, 1
    %p77 = scmp.ne.s32.totalorder %s72, %s74
    %p78 = scmp.eq.s32.totalorder %s17, 0
    %p79 = por %p77, %p78
    %p80 = scmp.ne.s32.totalorder %s72, %s74
    %p81 = scmp.eq.s32.totalorder %s22, 1
    %p82 = por %p80, %p81
    %p83 = scmp.ne.s32.totalorder %s74, %s75
    %p84 = scmp.eq.s32.totalorder %s22, 0
    %p85 = por %p83, %p84
    %p86 = scmp.ne.s32.totalorder %s74, %s75
    %p87 = scmp.eq.s32.totalorder %s23, 1
    %p88 = por %p86, %p87
    %p90 = scmp.ne.s32.totalorder %s75, %s89
    %p91 = scmp.eq.s32.totalorder %s23, 0
    %p92 = por %p90, %p91
    %s94 = sadd.s32 %s93, 1
    %p97 = scmp.eq.s32.totalorder %s17, 1
    %p98 = scmp.ne.s32.totalorder %s93, %s95
    %p99 = scmp.eq.s32.totalorder %s17, 0
    %p100 = por %p98, %p99
    %p101 = scmp.ne.s32.totalorder %s93, %s95
    %p102 = scmp.eq.s32.totalorder %s22, 1
    %p103 = por %p101, %p102
    %p104 = scmp.ne.s32.totalorder %s95, %s96
    %p105 = scmp.eq.s32.totalorder %s22, 0
    %p106 = por %p104, %p105
    %p107 = scmp.ne.s32.totalorder %s95, %s96
    %p108 = scmp.eq.s32.totalorder %s23, 1
    %p109 = por %p107, %p108
    %p111 = scmp.ne.s32.totalorder %s96, %s110
    %p112 = scmp.eq.s32.totalorder %s23, 0
    %p113 = por %p111, %p112
    %s115 = sadd.s32 %s114, 1
    %p118 = scmp.eq.s32.totalorder %s17, 1
    %p119 = scmp.ne.s32.totalorder %s114, %s116
    %p120 = scmp.eq.s32.totalorder %s17, 0
    %p121 = por %p119, %p120
    %p122 = scmp.ne.s32.totalorder %s114, %s116
    %p123 = scmp.eq.s32.totalorder %s22, 1
    %p124 = por %p122, %p123
    %p125 = scmp.ne.s32.totalorder %s116, %s117
    %p126 = scmp.eq.s32.totalorder %s22, 0
    %p127 = por %p125, %p126
    %p128 = scmp.ne.s32.totalorder %s116, %s117
    %p129 = scmp.eq.s32.totalorder %s23, 1
    %p130 = por %p128, %p129
    %p132 = scmp.ne.s32.totalorder %s117, %s131
    %p133 = scmp.eq.s32.totalorder %s23, 0
    %p134 = por %p132, %p133
    %s136 = sadd.s32 %s135, 1
    %p139 = scmp.eq.s32.totalorder %s17, 1
    %p140 = scmp.ne.s32.totalorder %s135, %s137
    %p141 = scmp.eq.s32.totalorder %s17, 0
    %p142 = por %p140, %p141
    %p143 = scmp.ne.s32.totalorder %s135, %s137
    %p144 = scmp.eq.s32.totalorder %s22, 1
    %p145 = por %p143, %p144
    %p146 = scmp.ne.s32.totalorder %s137, %s138
    %p147 = scmp.eq.s32.totalorder %s22, 0
    %p148 = por %p146, %p147
    %p149 = scmp.ne.s32.totalorder %s137, %s138
    %p150 = scmp.eq.s32.totalorder %s23, 1
    %p151 = por %p149, %p150
    %p153 = scmp.ne.s32.totalorder %s138, %s152
    %p154 = scmp.eq.s32.totalorder %s23, 0
    %p155 = por %p153, %p154
    %s157 = sadd.s32 %s156, 1
    %p160 = scmp.eq.s32.totalorder %s17, 1
    %p161 = scmp.ne.s32.totalorder %s156, %s158
    %p162 = scmp.eq.s32.totalorder %s17, 0
    %p163 = por %p161, %p162
    %p164 = scmp.ne.s32.totalorder %s156, %s158
    %p165 = scmp.eq.s32.totalorder %s22, 1
    %p166 = por %p164, %p165
    %p167 = scmp.ne.s32.totalorder %s158, %s159
    %p168 = scmp.eq.s32.totalorder %s22, 0
    %p169 = por %p167, %p168
    %p170 = scmp.ne.s32.totalorder %s158, %s159
    %p171 = scmp.eq.s32.totalorder %s23, 1
    %p172 = por %p170, %p171
    %p174 = scmp.ne.s32.totalorder %s159, %s173
    %p175 = scmp.eq.s32.totalorder %s23, 0
    %p176 = por %p174, %p175
    %s177 = ssub.s32 %s17, %s24
    %p178 = scmp.eq.s32.totalorder %s177, 0
    %s180 = sadd.s32 %s179, 1
    %s181 = scalar_select %p178, %s179, %s180
    %p184 = pneg %p178
    %p185 = scmp.eq.s32.totalorder %s17, 1
    %p186 = por %p184, %p185
    %p187 = scmp.ne.s32.totalorder %s179, %s182
    %p188 = scmp.eq.s32.totalorder %s17, 0
    %p189 = por %p187, %p188
    %p190 = scmp.ne.s32.totalorder %s179, %s182
    %p191 = scmp.eq.s32.totalorder %s22, 1
    %p192 = por %p190, %p191
    %p193 = scmp.ne.s32.totalorder %s182, %s183
    %p194 = scmp.eq.s32.totalorder %s22, 0
    %p195 = por %p193, %p194
    %p196 = scmp.ne.s32.totalorder %s182, %s183
    %p197 = scmp.eq.s32.totalorder %s23, 1
    %p198 = por %p196, %p197
    %p200 = scmp.ne.s32.totalorder %s183, %s199
    %p201 = scmp.eq.s32.totalorder %s23, 0
    %p202 = por %p200, %p201
    %s203 = ssub.s32 %s17, %s24
    %p204 = scmp.eq.s32.totalorder %s203, 0
    %s206 = sadd.s32 %s205, 1
    %s207 = scalar_select %p204, %s205, %s206
    %p210 = pneg %p204
    %p211 = scmp.eq.s32.totalorder %s17, 1
    %p212 = por %p210, %p211
    %p213 = scmp.ne.s32.totalorder %s205, %s208
    %p214 = scmp.eq.s32.totalorder %s17, 0
    %p215 = por %p213, %p214
    %p216 = scmp.ne.s32.totalorder %s205, %s208
    %p217 = scmp.eq.s32.totalorder %s22, 1
    %p218 = por %p216, %p217
    %p219 = scmp.ne.s32.totalorder %s208, %s209
    %p220 = scmp.eq.s32.totalorder %s22, 0
    %p221 = por %p219, %p220
    %p222 = scmp.ne.s32.totalorder %s208, %s209
    %p223 = scmp.eq.s32.totalorder %s23, 1
    %p224 = por %p222, %p223
    %p226 = scmp.ne.s32.totalorder %s209, %s225
    %p227 = scmp.eq.s32.totalorder %s23, 0
    %p228 = por %p226, %p227
    %s230 = sadd.s32 %s229, 1
    %p233 = scmp.eq.s32.totalorder %s17, 1
    %p234 = scmp.ne.s32.totalorder %s229, %s231
    %p235 = scmp.eq.s32.totalorder %s17, 0
    %p236 = por %p234, %p235
    %p237 = scmp.ne.s32.totalorder %s229, %s231
    %p238 = scmp.eq.s32.totalorder %s22, 1
    %p239 = por %p237, %p238
    %p240 = scmp.ne.s32.totalorder %s231, %s232
    %p241 = scmp.eq.s32.totalorder %s22, 0
    %p242 = por %p240, %p241
    %p243 = scmp.ne.s32.totalorder %s231, %s232
    %p244 = scmp.eq.s32.totalorder %s23, 1
    %p245 = por %p243, %p244
    %p247 = scmp.ne.s32.totalorder %s232, %s246
    %p248 = scmp.eq.s32.totalorder %s23, 0
    %p249 = por %p247, %p248
    %s251 = sadd.s32 %s250, 1
    %p254 = scmp.eq.s32.totalorder %s17, 1
    %p255 = scmp.ne.s32.totalorder %s250, %s252
    %p256 = scmp.eq.s32.totalorder %s17, 0
    %p257 = por %p255, %p256
    %p258 = scmp.ne.s32.totalorder %s250, %s252
    %p259 = scmp.eq.s32.totalorder %s22, 1
    %p260 = por %p258, %p259
    %p261 = scmp.ne.s32.totalorder %s252, %s253
    %p262 = scmp.eq.s32.totalorder %s22, 0
    %p263 = por %p261, %p262
    %p264 = scmp.ne.s32.totalorder %s252, %s253
    %p265 = scmp.eq.s32.totalorder %s23, 1
    %p266 = por %p264, %p265
    %p268 = scmp.ne.s32.totalorder %s253, %s267
    %p269 = scmp.eq.s32.totalorder %s23, 0
    %p270 = por %p268, %p269
    %s271 = ssub.s32 %s17, %s24
    %p272 = scmp.eq.s32.totalorder %s271, 0
    %s274 = sadd.s32 %s273, 1
    %s275 = scalar_select %p272, %s273, %s274
    %p278 = pneg %p272
    %p279 = scmp.eq.s32.totalorder %s17, 1
    %p280 = por %p278, %p279
    %p281 = scmp.ne.s32.totalorder %s273, %s276
    %p282 = scmp.eq.s32.totalorder %s17, 0
    %p283 = por %p281, %p282
    %p284 = scmp.ne.s32.totalorder %s273, %s276
    %p285 = scmp.eq.s32.totalorder %s22, 1
    %p286 = por %p284, %p285
    %p287 = scmp.ne.s32.totalorder %s276, %s277
    %p288 = scmp.eq.s32.totalorder %s22, 0
    %p289 = por %p287, %p288
    %p290 = scmp.ne.s32.totalorder %s276, %s277
    %p291 = scmp.eq.s32.totalorder %s23, 1
    %p292 = por %p290, %p291
    %p294 = scmp.ne.s32.totalorder %s277, %s293
    %p295 = scmp.eq.s32.totalorder %s23, 0
    %p296 = por %p294, %p295
    %p297 = scmp.le.s32.totalorder 1, %s17
    %p298 = scmp.lt.s32.totalorder %s17, 3
    %p299 = pnand %p297, %p298
    %p300 = pneg %p299
    // Predicated region
    $region9: #{encode_conv_block_n.1} parent=5 // pred_check
      _
    $region10: #{encode_conv_block_n.1} parent=5 // pred_check_branch
      %302 = sbr.rel (%p299) target = $region12
    $region11: #{encode_conv_block_n.1} parent=5 // pred_region
      %s303 = ssub.s32 %s17, 1
      // Predicated region
      $region13: #{encode_conv_block_n.1} parent=11 // pred_check
        %p304 = pneg %p64
      $region14: #{encode_conv_block_n.1} parent=11 // pred_check_branch
        %306 = sbr.rel (%p304) target = $region16
      $region15: #{encode_conv_block_n.1} parent=11 // pred_region
        _
      $region16: #{encode_conv_block_n.1} parent=11 // pred_fallthru
        _
      // Predicated region
      $region17: #{encode_conv_block_n.1} parent=11 // pred_check
        %p307 = pneg %p85
      $region18: #{encode_conv_block_n.1} parent=11 // pred_check_branch
        %309 = sbr.rel (%p307) target = $region20
      $region19: #{encode_conv_block_n.1} parent=11 // pred_region
        _
      $region20: #{encode_conv_block_n.1} parent=11 // pred_fallthru
        _
      // Predicated region
      $region21: #{encode_conv_block_n.1} parent=11 // pred_check
        %p310 = pneg %p106
      $region22: #{encode_conv_block_n.1} parent=11 // pred_check_branch
        %312 = sbr.rel (%p310) target = $region24
      $region23: #{encode_conv_block_n.1} parent=11 // pred_region
        _
      $region24: #{encode_conv_block_n.1} parent=11 // pred_fallthru
        _
      // Predicated region
      $region25: #{encode_conv_block_n.1} parent=11 // pred_check
        %p313 = pneg %p127
      $region26: #{encode_conv_block_n.1} parent=11 // pred_check_branch
        %315 = sbr.rel (%p313) target = $region28
      $region27: #{encode_conv_block_n.1} parent=11 // pred_region
        _
      $region28: #{encode_conv_block_n.1} parent=11 // pred_fallthru
        _
      // Predicated region
      $region29: #{encode_conv_block_n.1} parent=11 // pred_check
        %p316 = pneg %p148
      $region30: #{encode_conv_block_n.1} parent=11 // pred_check_branch
        %318 = sbr.rel (%p316) target = $region32
      $region31: #{encode_conv_block_n.1} parent=11 // pred_region
        _
      $region32: #{encode_conv_block_n.1} parent=11 // pred_fallthru
        _
      // Predicated region
      $region33: #{encode_conv_block_n.1} parent=11 // pred_check
        %p319 = pneg %p169
      $region34: #{encode_conv_block_n.1} parent=11 // pred_check_branch
        %321 = sbr.rel (%p319) target = $region36
      $region35: #{encode_conv_block_n.1} parent=11 // pred_region
        _
      $region36: #{encode_conv_block_n.1} parent=11 // pred_fallthru
        _
      // Predicated region
      $region37: #{encode_conv_block_n.1} parent=11 // pred_check
        %p322 = pneg %p242
      $region38: #{encode_conv_block_n.1} parent=11 // pred_check_branch
        %324 = sbr.rel (%p322) target = $region40
      $region39: #{encode_conv_block_n.1} parent=11 // pred_region
        _
      $region40: #{encode_conv_block_n.1} parent=11 // pred_fallthru
        _
      // Predicated region
      $region41: #{encode_conv_block_n.1} parent=11 // pred_check
        %p325 = pneg %p263
      $region42: #{encode_conv_block_n.1} parent=11 // pred_check_branch
        %327 = sbr.rel (%p325) target = $region44
      $region43: #{encode_conv_block_n.1} parent=11 // pred_region
        _
      $region44: #{encode_conv_block_n.1} parent=11 // pred_fallthru
        _
    $region12: #{encode_conv_block_n.1} parent=5 // pred_fallthru
      _
    %p328 = scmp.lt.s32.totalorder %s17, 2
    // Predicated region
    $region45: #{encode_conv_block_n.1} parent=5 // pred_check
      %p329 = pneg %p328
    $region46: #{encode_conv_block_n.1} parent=5 // pred_check_branch
      %331 = sbr.rel (%p329) target = $region48
    $region47: #{encode_conv_block_n.1} parent=5 // pred_region
      // Predicated region
      $region49: #{encode_conv_block_n.1} parent=47 // pred_check
        %p332 = pneg %p37
      $region50: #{encode_conv_block_n.1} parent=47 // pred_check_branch
        %334 = sbr.rel (%p332) target = $region52
      $region51: #{encode_conv_block_n.1} parent=47 // pred_region
        %p335 = scmp.lt.s32.totalorder %s17, 1
        %s336 = scalar_select %p335, %s17, 1
        %s337 = smul.addr %s336, 3
        %s338 = smul.addr %s337, 8
        %s339 = scalar_lea.vmem %s0, %s338
      $region52: #{encode_conv_block_n.1} parent=47 // pred_fallthru
        _
      // Predicated region
      $region53: #{encode_conv_block_n.1} parent=47 // pred_check
        %p340 = pneg %p189
      $region54: #{encode_conv_block_n.1} parent=47 // pred_check_branch
        %342 = sbr.rel (%p340) target = $region56
      $region55: #{encode_conv_block_n.1} parent=47 // pred_region
        %p343 = scmp.lt.s32.totalorder %s17, 1
        %s344 = scalar_select %p343, %s17, 1
        %s345 = smul.addr %s344, 3
        %s346 = scalar_lea.vmem %s7, %s345
      $region56: #{encode_conv_block_n.1} parent=47 // pred_fallthru
        _
      // Predicated region
      $region57: #{encode_conv_block_n.1} parent=47 // pred_check
        %p347 = pneg %p215
      $region58: #{encode_conv_block_n.1} parent=47 // pred_check_branch
        %349 = sbr.rel (%p347) target = $region60
      $region59: #{encode_conv_block_n.1} parent=47 // pred_region
        %p350 = scmp.lt.s32.totalorder %s17, 1
        %s351 = scalar_select %p350, %s17, 1
        %s352 = scalar_lea.vmem %s8, %s351
      $region60: #{encode_conv_block_n.1} parent=47 // pred_fallthru
        _
    $region48: #{encode_conv_block_n.1} parent=5 // pred_fallthru
      _
    %p353 = scmp.le.s32.totalorder 1, %s17
    %p354 = scmp.lt.s32.totalorder %s17, 3
    %p355 = pnand %p353, %p354
    %p356 = pneg %p355
    // Predicated region
    $region61: #{encode_conv_block_n.1} parent=5 // pred_check
      _
    $region62: #{encode_conv_block_n.1} parent=5 // pred_check_branch
      %358 = sbr.rel (%p355) target = $region64
    $region63: #{encode_conv_block_n.1} parent=5 // pred_region
      %s359 = ssub.s32 %s17, 1
      %p360 = scmp.lt.s32.totalorder %s22, 1
      %s361 = scalar_select %p360, %s22, 1
      %s362 = smul.addr %s361, 3
      %s363 = smul.addr %s362, 8
      %s364 = scalar_lea.vmem %s0, %s363
      %p365 = pneg %p43
      %p366 = pneg %p40
      %p367 = pneg %p64
      %p368 = pneg %p61
      %p369 = pneg %p85
      %p370 = pneg %p82
      %p371 = pneg %p106
      %p372 = pneg %p103
      %p373 = pneg %p127
      %p374 = pneg %p124
      %p375 = pneg %p148
      %p376 = pneg %p145
      %p377 = pneg %p169
      %p378 = pneg %p166
      %p379 = scmp.lt.s32.totalorder %s22, 1
      %s380 = scalar_select %p379, %s22, 1
      %s381 = smul.addr %s380, 3
      %s382 = scalar_lea.vmem %s7, %s381
      %p383 = pneg %p195
      %p384 = pneg %p192
      %p385 = scmp.lt.s32.totalorder %s22, 1
      %s386 = scalar_select %p385, %s22, 1
      %s387 = scalar_lea.vmem %s8, %s386
      %p388 = pneg %p221
      %p389 = pneg %p218
      %p390 = pneg %p242
      %p391 = pneg %p239
      %p392 = pneg %p263
      %p393 = pneg %p260
      %p394 = pneg %p289
      %p395 = pneg %p286
      %p396 = scmp.lt.s32.totalorder %s22, 1
      %s397 = scalar_select %p396, %s22, 1
      %s398 = smul.addr %s397, 8
      %s399 = scalar_lea.vmem %s11, %s398
      %p400 = scmp.lt.s32.totalorder %s22, 1
      %s401 = scalar_select %p400, %s22, 1
      %s402 = smul.addr %s401, 3
      %s403 = smul.addr %s402, 8
      %s404 = scalar_lea.vmem %s0, %s403
      %p405 = scmp.lt.s32.totalorder %s22, 1
      %s406 = scalar_select %p405, %s22, 1
      %s407 = smul.addr %s406, 3
      %s408 = scalar_lea.vmem %s7, %s407
      %p409 = scmp.lt.s32.totalorder %s22, 1
      %s410 = scalar_select %p409, %s22, 1
      %s411 = scalar_lea.vmem %s8, %s410
      %p412 = scmp.lt.s32.totalorder %s22, 1
      %s413 = scalar_select %p412, %s22, 1
      %s414 = smul.addr %s413, 8
      %s415 = scalar_lea.vmem %s11, %s414
      %v416 = vld [vmem:[%s404] sm:$0xff]
      %v417 = vld [vmem:[%s404 + $0x8] sm:$0xff]
      %v418 = vld [vmem:[%s404 + $0x10] sm:$0xff]
      %v419 = vld [vmem:[%s1] sm:$0xff]
      %s420 = scalar_lea.vmem %s1, 8
      %v421 = vld [vmem:[%s420] sm:$0xff]
      %425 = vrot.lane.b32.xlu0 %v416, 127
      %v426 = vpop.permute.xlu0 %425
      %427 = vrot.lane.b32.xlu0 %v417, 127
      %v428 = vpop.permute.xlu0 %427
      %429 = vrot.lane.b32.xlu0 %v418, 127
      %v430 = vpop.permute.xlu0 %429
      %vm431 = vcmask 1039360
      %v432 = vsel %vm431, %v426, %v428
      %v433 = vsel %vm431, %v428, %v430
      %vm437 = vcmask 64512
      %v439 = vsel %vm437, %v421, 0
      %441 = vmatprep.subr.mxu0 0.0
      %442 = vmatpush1.msra.mxu0 0.0
      %443 = vmatprep.subr.mxu0 0.0
      %444 = vmatpush1.msra.mxu0 0.0
      %445 = vmatprep.subr.mxu0 0.0
      %446 = vmatpush1.msra.mxu0 0.0
      %447 = vmatprep.subr.mxu0 0.0
      %448 = vmatpush1.msra.mxu0 0.0
      %449 = vmatprep.subr.mxu0 0.0
      %450 = vmatpush1.msra.mxu0 0.0
      %451 = vmatprep.subr.mxu0 0.0
      %452 = vmatpush1.msra.mxu0 0.0
      %453 = vmatprep.subr.mxu0 0.0
      %454 = vmatpush1.msra.mxu0 0.0
      %455 = vmatprep.subr.mxu0 0.0
      %456 = vmatpush1.msra.mxu0 0.0
      %457 = vmatprep.subr.mxu0 0.0
      %458 = vmatpush1.msra.mxu0 0.0
      %459 = vmatprep.subr.mxu0 0.0
      %460 = vmatpush1.msra.mxu0 0.0
      %461 = vmatprep.subr.mxu0 0.0
      %462 = vmatpush1.msra.mxu0 0.0
      %463 = vmatprep.subr.mxu0 0.0
      %464 = vmatpush1.msra.mxu0 0.0
      %465 = vmatprep.subr.mxu0 0.0
      %466 = vmatpush1.msra.mxu0 0.0
      %467 = vmatprep.subr.mxu0 0.0
      %468 = vmatpush1.msra.mxu0 0.0
      %469 = vmatprep.subr.mxu0 0.0
      %470 = vmatpush1.msra.mxu0 0.0
      %471 = vmatprep.subr.mxu0 %v433
      %472 = vmatpush1.msra.mxu0 %v432
      %473 = vmatprep.subr.mxu0 0.0
      %474 = vmatpush2.msra.mxu0 0.0
      %475 = vmatprep.subr.mxu0 0.0
      %476 = vmatpush2.msra.mxu0 0.0
      %477 = vmatprep.subr.mxu0 0.0
      %478 = vmatpush2.msra.mxu0 0.0
      %479 = vmatprep.subr.mxu0 0.0
      %480 = vmatpush2.msra.mxu0 0.0
      %481 = vmatprep.subr.mxu0 0.0
      %482 = vmatpush2.msra.mxu0 0.0
      %483 = vmatprep.subr.mxu0 0.0
      %484 = vmatpush2.msra.mxu0 0.0
      %485 = vmatprep.subr.mxu0 0.0
      %486 = vmatpush2.msra.mxu0 0.0
      %487 = vmatprep.subr.mxu0 0.0
      %488 = vmatpush2.msra.mxu0 0.0
      %489 = vmatprep.subr.mxu0 0.0
      %490 = vmatpush2.msra.mxu0 0.0
      %491 = vmatprep.subr.mxu0 0.0
      %492 = vmatpush2.msra.mxu0 0.0
      %493 = vmatprep.subr.mxu0 0.0
      %494 = vmatpush2.msra.mxu0 0.0
      %495 = vmatprep.subr.mxu0 0.0
      %496 = vmatpush2.msra.mxu0 0.0
      %497 = vmatprep.subr.mxu0 0.0
      %498 = vmatpush2.msra.mxu0 0.0
      %499 = vmatprep.subr.mxu0 0.0
      %500 = vmatpush2.msra.mxu0 0.0
      %501 = vmatprep.subr.mxu0 0.0
      %502 = vmatpush2.msra.mxu0 0.0
      %503 = vmatprep.subr.mxu0 0.0
      %504 = vmatpush2.msra.mxu0 0.0
      %505 = vmatprep.mubr.f32.mxu0 0.0
      %506 = vmatmul.mubr.f32.gmra.mxu0 %v439
      %v507 = vpop.f32.mrf.mxu0
      %v508 = vadd.f32 0.0, %v507
      %v509 = vpop.f32.mrf.mxu0
      %v510 = vadd.f32 0.0, %v509
      %511 = vdwg.mxu0
      %512 = vmatprep.subr.mxu0 0.0
      %513 = vmatpush1.msra.mxu0 0.0
      %514 = vmatprep.subr.mxu0 0.0
      %515 = vmatpush1.msra.mxu0 0.0
      %516 = vmatprep.subr.mxu0 0.0
      %517 = vmatpush1.msra.mxu0 0.0
      %518 = vmatprep.subr.mxu0 0.0
      %519 = vmatpush1.msra.mxu0 0.0
      %520 = vmatprep.subr.mxu0 0.0
      %521 = vmatpush1.msra.mxu0 0.0
      %522 = vmatprep.subr.mxu0 0.0
      %523 = vmatpush1.msra.mxu0 0.0
      %524 = vmatprep.subr.mxu0 0.0
      %525 = vmatpush1.msra.mxu0 0.0
      %526 = vmatprep.subr.mxu0 0.0
      %527 = vmatpush1.msra.mxu0 0.0
      %528 = vmatprep.subr.mxu0 0.0
      %529 = vmatpush1.msra.mxu0 0.0
      %530 = vmatprep.subr.mxu0 0.0
      %531 = vmatpush1.msra.mxu0 0.0
      %532 = vmatprep.subr.mxu0 0.0
      %533 = vmatpush1.msra.mxu0 0.0
      %534 = vmatprep.subr.mxu0 0.0
      %535 = vmatpush1.msra.mxu0 0.0
      %536 = vmatprep.subr.mxu0 0.0
      %537 = vmatpush1.msra.mxu0 0.0
      %538 = vmatprep.subr.mxu0 0.0
      %539 = vmatpush1.msra.mxu0 0.0
      %540 = vmatprep.subr.mxu0 0.0
      %541 = vmatpush1.msra.mxu0 0.0
      %542 = vmatprep.subr.mxu0 0.0
      %543 = vmatpush1.msra.mxu0 %v430
      %544 = vmatprep.subr.mxu0 0.0
      %545 = vmatpush2.msra.mxu0 0.0
      %546 = vmatprep.subr.mxu0 0.0
      %547 = vmatpush2.msra.mxu0 0.0
      %548 = vmatprep.subr.mxu0 0.0
      %549 = vmatpush2.msra.mxu0 0.0
      %550 = vmatprep.subr.mxu0 0.0
      %551 = vmatpush2.msra.mxu0 0.0
      %552 = vmatprep.subr.mxu0 0.0
      %553 = vmatpush2.msra.mxu0 0.0
      %554 = vmatprep.subr.mxu0 0.0
      %555 = vmatpush2.msra.mxu0 0.0
      %556 = vmatprep.subr.mxu0 0.0
      %557 = vmatpush2.msra.mxu0 0.0
      %558 = vmatprep.subr.mxu0 0.0
      %559 = vmatpush2.msra.mxu0 0.0
      %560 = vmatprep.subr.mxu0 0.0
      %561 = vmatpush2.msra.mxu0 0.0
      %562 = vmatprep.subr.mxu0 0.0
      %563 = vmatpush2.msra.mxu0 0.0
      %564 = vmatprep.subr.mxu0 0.0
      %565 = vmatpush2.msra.mxu0 0.0
      %566 = vmatprep.subr.mxu0 0.0
      %567 = vmatpush2.msra.mxu0 0.0
      %568 = vmatprep.subr.mxu0 0.0
      %569 = vmatpush2.msra.mxu0 0.0
      %570 = vmatprep.subr.mxu0 0.0
      %571 = vmatpush2.msra.mxu0 0.0
      %572 = vmatprep.subr.mxu0 0.0
      %573 = vmatpush2.msra.mxu0 0.0
      %574 = vmatprep.subr.mxu0 0.0
      %575 = vmatpush2.msra.mxu0 0.0
      %576 = vmatprep.mubr.f32.mxu0 0.0
      %577 = vmatmul.mubr.f32.gmra.mxu0 %v439
      %v578 = vpop.f32.mrf.mxu0
      %v579 = vadd.f32 0.0, %v578
      %v580 = vpop.f32.mrf.mxu0
      %581 = vdwg.mxu0
      %v583 = vsel %vm437, %v419, 0
      %585 = vmatprep.subr.mxu0 0.0
      %586 = vmatpush1.msra.mxu0 0.0
      %587 = vmatprep.subr.mxu0 0.0
      %588 = vmatpush1.msra.mxu0 0.0
      %589 = vmatprep.subr.mxu0 0.0
      %590 = vmatpush1.msra.mxu0 0.0
      %591 = vmatprep.subr.mxu0 0.0
      %592 = vmatpush1.msra.mxu0 0.0
      %593 = vmatprep.subr.mxu0 0.0
      %594 = vmatpush1.msra.mxu0 0.0
      %595 = vmatprep.subr.mxu0 0.0
      %596 = vmatpush1.msra.mxu0 0.0
      %597 = vmatprep.subr.mxu0 0.0
      %598 = vmatpush1.msra.mxu0 0.0
      %599 = vmatprep.subr.mxu0 0.0
      %600 = vmatpush1.msra.mxu0 0.0
      %601 = vmatprep.subr.mxu0 0.0
      %602 = vmatpush1.msra.mxu0 0.0
      %603 = vmatprep.subr.mxu0 0.0
      %604 = vmatpush1.msra.mxu0 0.0
      %605 = vmatprep.subr.mxu0 0.0
      %606 = vmatpush1.msra.mxu0 0.0
      %607 = vmatprep.subr.mxu0 0.0
      %608 = vmatpush1.msra.mxu0 0.0
      %609 = vmatprep.subr.mxu0 0.0
      %610 = vmatpush1.msra.mxu0 0.0
      %611 = vmatprep.subr.mxu0 0.0
      %612 = vmatpush1.msra.mxu0 0.0
      %613 = vmatprep.subr.mxu0 0.0
      %614 = vmatpush1.msra.mxu0 0.0
      %615 = vmatprep.subr.mxu0 %v417
      %616 = vmatpush1.msra.mxu0 %v416
      %617 = vmatprep.subr.mxu0 0.0
      %618 = vmatpush2.msra.mxu0 0.0
      %619 = vmatprep.subr.mxu0 0.0
      %620 = vmatpush2.msra.mxu0 0.0
      %621 = vmatprep.subr.mxu0 0.0
      %622 = vmatpush2.msra.mxu0 0.0
      %623 = vmatprep.subr.mxu0 0.0
      %624 = vmatpush2.msra.mxu0 0.0
      %625 = vmatprep.subr.mxu0 0.0
      %626 = vmatpush2.msra.mxu0 0.0
      %627 = vmatprep.subr.mxu0 0.0
      %628 = vmatpush2.msra.mxu0 0.0
      %629 = vmatprep.subr.mxu0 0.0
      %630 = vmatpush2.msra.mxu0 0.0
      %631 = vmatprep.subr.mxu0 0.0
      %632 = vmatpush2.msra.mxu0 0.0
      %633 = vmatprep.subr.mxu0 0.0
      %634 = vmatpush2.msra.mxu0 0.0
      %635 = vmatprep.subr.mxu0 0.0
      %636 = vmatpush2.msra.mxu0 0.0
      %637 = vmatprep.subr.mxu0 0.0
      %638 = vmatpush2.msra.mxu0 0.0
      %639 = vmatprep.subr.mxu0 0.0
      %640 = vmatpush2.msra.mxu0 0.0
      %641 = vmatprep.subr.mxu0 0.0
      %642 = vmatpush2.msra.mxu0 0.0
      %643 = vmatprep.subr.mxu0 0.0
      %644 = vmatpush2.msra.mxu0 0.0
      %645 = vmatprep.subr.mxu0 0.0
      %646 = vmatpush2.msra.mxu0 0.0
      %647 = vmatprep.subr.mxu0 0.0
      %648 = vmatpush2.msra.mxu0 0.0
      %649 = vmatprep.mubr.f32.mxu0 0.0
      %650 = vmatmul.mubr.f32.gmra.mxu0 %v583
      %v651 = vpop.f32.mrf.mxu0
      %v652 = vadd.f32 %v508, %v651
      %v653 = vpop.f32.mrf.mxu0
      %v654 = vadd.f32 %v510, %v653
      %655 = vdwg.mxu0
      %656 = vmatprep.subr.mxu0 0.0
      %657 = vmatpush1.msra.mxu0 0.0
      %658 = vmatprep.subr.mxu0 0.0
      %659 = vmatpush1.msra.mxu0 0.0
      %660 = vmatprep.subr.mxu0 0.0
      %661 = vmatpush1.msra.mxu0 0.0
      %662 = vmatprep.subr.mxu0 0.0
      %663 = vmatpush1.msra.mxu0 0.0
      %664 = vmatprep.subr.mxu0 0.0
      %665 = vmatpush1.msra.mxu0 0.0
      %666 = vmatprep.subr.mxu0 0.0
      %667 = vmatpush1.msra.mxu0 0.0
      %668 = vmatprep.subr.mxu0 0.0
      %669 = vmatpush1.msra.mxu0 0.0
      %670 = vmatprep.subr.mxu0 0.0
      %671 = vmatpush1.msra.mxu0 0.0
      %672 = vmatprep.subr.mxu0 0.0
      %673 = vmatpush1.msra.mxu0 0.0
      %674 = vmatprep.subr.mxu0 0.0
      %675 = vmatpush1.msra.mxu0 0.0
      %676 = vmatprep.subr.mxu0 0.0
      %677 = vmatpush1.msra.mxu0 0.0
      %678 = vmatprep.subr.mxu0 0.0
      %679 = vmatpush1.msra.mxu0 0.0
      %680 = vmatprep.subr.mxu0 0.0
      %681 = vmatpush1.msra.mxu0 0.0
      %682 = vmatprep.subr.mxu0 0.0
      %683 = vmatpush1.msra.mxu0 0.0
      %684 = vmatprep.subr.mxu0 0.0
      %685 = vmatpush1.msra.mxu0 0.0
      %686 = vmatprep.subr.mxu0 0.0
      %687 = vmatpush1.msra.mxu0 %v418
      %688 = vmatprep.subr.mxu0 0.0
      %689 = vmatpush2.msra.mxu0 0.0
      %690 = vmatprep.subr.mxu0 0.0
      %691 = vmatpush2.msra.mxu0 0.0
      %692 = vmatprep.subr.mxu0 0.0
      %693 = vmatpush2.msra.mxu0 0.0
      %694 = vmatprep.subr.mxu0 0.0
      %695 = vmatpush2.msra.mxu0 0.0
      %696 = vmatprep.subr.mxu0 0.0
      %697 = vmatpush2.msra.mxu0 0.0
      %698 = vmatprep.subr.mxu0 0.0
      %699 = vmatpush2.msra.mxu0 0.0
      %700 = vmatprep.subr.mxu0 0.0
      %701 = vmatpush2.msra.mxu0 0.0
      %702 = vmatprep.subr.mxu0 0.0
      %703 = vmatpush2.msra.mxu0 0.0
      %704 = vmatprep.subr.mxu0 0.0
      %705 = vmatpush2.msra.mxu0 0.0
      %706 = vmatprep.subr.mxu0 0.0
      %707 = vmatpush2.msra.mxu0 0.0
      %708 = vmatprep.subr.mxu0 0.0
      %709 = vmatpush2.msra.mxu0 0.0
      %710 = vmatprep.subr.mxu0 0.0
      %711 = vmatpush2.msra.mxu0 0.0
      %712 = vmatprep.subr.mxu0 0.0
      %713 = vmatpush2.msra.mxu0 0.0
      %714 = vmatprep.subr.mxu0 0.0
      %715 = vmatpush2.msra.mxu0 0.0
      %716 = vmatprep.subr.mxu0 0.0
      %717 = vmatpush2.msra.mxu0 0.0
      %718 = vmatprep.subr.mxu0 0.0
      %719 = vmatpush2.msra.mxu0 0.0
      %720 = vmatprep.mubr.f32.mxu0 0.0
      %721 = vmatmul.mubr.f32.gmra.mxu0 %v583
      %v722 = vpop.f32.mrf.mxu0
      %v723 = vadd.f32 %v579, %v722
      %v724 = vpop.f32.mrf.mxu0
      %725 = vdwg.mxu0
      %s726 = scalar_lea.vmem %s1, 16
      %v727 = vld [vmem:[%s726] sm:$0xff]
      %728 = vrot.lane.b32.xlu0 %v416, 126
      %v729 = vpop.permute.xlu0 %728
      %730 = vrot.lane.b32.xlu0 %v417, 126
      %v731 = vpop.permute.xlu0 %730
      %732 = vrot.lane.b32.xlu0 %v418, 126
      %v733 = vpop.permute.xlu0 %732
      %vm734 = vcmask 1031168
      %v735 = vsel %vm734, %v729, %v731
      %v736 = vsel %vm734, %v731, %v733
      %v741 = vsel %vm437, %v727, 0
      %743 = vmatprep.subr.mxu0 0.0
      %744 = vmatpush1.msra.mxu0 0.0
      %745 = vmatprep.subr.mxu0 0.0
      %746 = vmatpush1.msra.mxu0 0.0
      %747 = vmatprep.subr.mxu0 0.0
      %748 = vmatpush1.msra.mxu0 0.0
      %749 = vmatprep.subr.mxu0 0.0
      %750 = vmatpush1.msra.mxu0 0.0
      %751 = vmatprep.subr.mxu0 0.0
      %752 = vmatpush1.msra.mxu0 0.0
      %753 = vmatprep.subr.mxu0 0.0
      %754 = vmatpush1.msra.mxu0 0.0
      %755 = vmatprep.subr.mxu0 0.0
      %756 = vmatpush1.msra.mxu0 0.0
      %757 = vmatprep.subr.mxu0 0.0
      %758 = vmatpush1.msra.mxu0 0.0
      %759 = vmatprep.subr.mxu0 0.0
      %760 = vmatpush1.msra.mxu0 0.0
      %761 = vmatprep.subr.mxu0 0.0
      %762 = vmatpush1.msra.mxu0 0.0
      %763 = vmatprep.subr.mxu0 0.0
      %764 = vmatpush1.msra.mxu0 0.0
      %765 = vmatprep.subr.mxu0 0.0
      %766 = vmatpush1.msra.mxu0 0.0
      %767 = vmatprep.subr.mxu0 0.0
      %768 = vmatpush1.msra.mxu0 0.0
      %769 = vmatprep.subr.mxu0 0.0
      %770 = vmatpush1.msra.mxu0 0.0
      %771 = vmatprep.subr.mxu0 0.0
      %772 = vmatpush1.msra.mxu0 0.0
      %773 = vmatprep.subr.mxu0 %v736
      %774 = vmatpush1.msra.mxu0 %v735
      %775 = vmatprep.subr.mxu0 0.0
      %776 = vmatpush2.msra.mxu0 0.0
      %777 = vmatprep.subr.mxu0 0.0
      %778 = vmatpush2.msra.mxu0 0.0
      %779 = vmatprep.subr.mxu0 0.0
      %780 = vmatpush2.msra.mxu0 0.0
      %781 = vmatprep.subr.mxu0 0.0
      %782 = vmatpush2.msra.mxu0 0.0
      %783 = vmatprep.subr.mxu0 0.0
      %784 = vmatpush2.msra.mxu0 0.0
      %785 = vmatprep.subr.mxu0 0.0
      %786 = vmatpush2.msra.mxu0 0.0
      %787 = vmatprep.subr.mxu0 0.0
      %788 = vmatpush2.msra.mxu0 0.0
      %789 = vmatprep.subr.mxu0 0.0
      %790 = vmatpush2.msra.mxu0 0.0
      %791 = vmatprep.subr.mxu0 0.0
      %792 = vmatpush2.msra.mxu0 0.0
      %793 = vmatprep.subr.mxu0 0.0
      %794 = vmatpush2.msra.mxu0 0.0
      %795 = vmatprep.subr.mxu0 0.0
      %796 = vmatpush2.msra.mxu0 0.0
      %797 = vmatprep.subr.mxu0 0.0
      %798 = vmatpush2.msra.mxu0 0.0
      %799 = vmatprep.subr.mxu0 0.0
      %800 = vmatpush2.msra.mxu0 0.0
      %801 = vmatprep.subr.mxu0 0.0
      %802 = vmatpush2.msra.mxu0 0.0
      %803 = vmatprep.subr.mxu0 0.0
      %804 = vmatpush2.msra.mxu0 0.0
      %805 = vmatprep.subr.mxu0 0.0
      %806 = vmatpush2.msra.mxu0 0.0
      %807 = vmatprep.mubr.f32.mxu0 0.0
      %808 = vmatmul.mubr.f32.gmra.mxu0 %v741
      %v809 = vpop.f32.mrf.mxu0
      %v810 = vadd.f32 0.0, %v809
      %v811 = vpop.f32.mrf.mxu0
      %v812 = vadd.f32 0.0, %v811
      %813 = vdwg.mxu0
      %814 = vmatprep.subr.mxu0 0.0
      %815 = vmatpush1.msra.mxu0 0.0
      %816 = vmatprep.subr.mxu0 0.0
      %817 = vmatpush1.msra.mxu0 0.0
      %818 = vmatprep.subr.mxu0 0.0
      %819 = vmatpush1.msra.mxu0 0.0
      %820 = vmatprep.subr.mxu0 0.0
      %821 = vmatpush1.msra.mxu0 0.0
      %822 = vmatprep.subr.mxu0 0.0
      %823 = vmatpush1.msra.mxu0 0.0
      %824 = vmatprep.subr.mxu0 0.0
      %825 = vmatpush1.msra.mxu0 0.0
      %826 = vmatprep.subr.mxu0 0.0
      %827 = vmatpush1.msra.mxu0 0.0
      %828 = vmatprep.subr.mxu0 0.0
      %829 = vmatpush1.msra.mxu0 0.0
      %830 = vmatprep.subr.mxu0 0.0
      %831 = vmatpush1.msra.mxu0 0.0
      %832 = vmatprep.subr.mxu0 0.0
      %833 = vmatpush1.msra.mxu0 0.0
      %834 = vmatprep.subr.mxu0 0.0
      %835 = vmatpush1.msra.mxu0 0.0
      %836 = vmatprep.subr.mxu0 0.0
      %837 = vmatpush1.msra.mxu0 0.0
      %838 = vmatprep.subr.mxu0 0.0
      %839 = vmatpush1.msra.mxu0 0.0
      %840 = vmatprep.subr.mxu0 0.0
      %841 = vmatpush1.msra.mxu0 0.0
      %842 = vmatprep.subr.mxu0 0.0
      %843 = vmatpush1.msra.mxu0 0.0
      %844 = vmatprep.subr.mxu0 0.0
      %845 = vmatpush1.msra.mxu0 %v733
      %846 = vmatprep.subr.mxu0 0.0
      %847 = vmatpush2.msra.mxu0 0.0
      %848 = vmatprep.subr.mxu0 0.0
      %849 = vmatpush2.msra.mxu0 0.0
      %850 = vmatprep.subr.mxu0 0.0
      %851 = vmatpush2.msra.mxu0 0.0
      %852 = vmatprep.subr.mxu0 0.0
      %853 = vmatpush2.msra.mxu0 0.0
      %854 = vmatprep.subr.mxu0 0.0
      %855 = vmatpush2.msra.mxu0 0.0
      %856 = vmatprep.subr.mxu0 0.0
      %857 = vmatpush2.msra.mxu0 0.0
      %858 = vmatprep.subr.mxu0 0.0
      %859 = vmatpush2.msra.mxu0 0.0
      %860 = vmatprep.subr.mxu0 0.0
      %861 = vmatpush2.msra.mxu0 0.0
      %862 = vmatprep.subr.mxu0 0.0
      %863 = vmatpush2.msra.mxu0 0.0
      %864 = vmatprep.subr.mxu0 0.0
      %865 = vmatpush2.msra.mxu0 0.0
      %866 = vmatprep.subr.mxu0 0.0
      %867 = vmatpush2.msra.mxu0 0.0
      %868 = vmatprep.subr.mxu0 0.0
      %869 = vmatpush2.msra.mxu0 0.0
      %870 = vmatprep.subr.mxu0 0.0
      %871 = vmatpush2.msra.mxu0 0.0
      %872 = vmatprep.subr.mxu0 0.0
      %873 = vmatpush2.msra.mxu0 0.0
      %874 = vmatprep.subr.mxu0 0.0
      %875 = vmatpush2.msra.mxu0 0.0
      %876 = vmatprep.subr.mxu0 0.0
      %877 = vmatpush2.msra.mxu0 0.0
      %878 = vmatprep.mubr.f32.mxu0 0.0
      %879 = vmatmul.mubr.f32.gmra.mxu0 %v741
      %v880 = vpop.f32.mrf.mxu0
      %v881 = vadd.f32 0.0, %v880
      %v882 = vpop.f32.mrf.mxu0
      %883 = vdwg.mxu0
      %v884 = vadd.f32 %v652, %v810
      %v885 = vadd.f32 %v654, %v812
      %v886 = vadd.f32 %v723, %v881
      %s887 = scalar_lea.vmem %s1, 24
      %v888 = vld [vmem:[%s887] sm:$0xff]
      %889 = vrot.lane.b32.xlu0 %v416, 111
      %v890 = vpop.permute.xlu0 %889
      %891 = vrot.lane.b32.xlu0 %v417, 111
      %v892 = vpop.permute.xlu0 %891
      %893 = vrot.lane.b32.xlu0 %v418, 111
      %v894 = vpop.permute.xlu0 %893
      %vm895 = vcmask 908288
      %v896 = vsel %vm895, %v890, %v892
      %v897 = vsel %vm895, %v892, %v894
      %v902 = vsel %vm437, %v888, 0
      %904 = vmatprep.subr.mxu0 0.0
      %905 = vmatpush1.msra.mxu0 0.0
      %906 = vmatprep.subr.mxu0 0.0
      %907 = vmatpush1.msra.mxu0 0.0
      %908 = vmatprep.subr.mxu0 0.0
      %909 = vmatpush1.msra.mxu0 0.0
      %910 = vmatprep.subr.mxu0 0.0
      %911 = vmatpush1.msra.mxu0 0.0
      %912 = vmatprep.subr.mxu0 0.0
      %913 = vmatpush1.msra.mxu0 0.0
      %914 = vmatprep.subr.mxu0 0.0
      %915 = vmatpush1.msra.mxu0 0.0
      %916 = vmatprep.subr.mxu0 0.0
      %917 = vmatpush1.msra.mxu0 0.0
      %918 = vmatprep.subr.mxu0 0.0
      %919 = vmatpush1.msra.mxu0 0.0
      %920 = vmatprep.subr.mxu0 0.0
      %921 = vmatpush1.msra.mxu0 0.0
      %922 = vmatprep.subr.mxu0 0.0
      %923 = vmatpush1.msra.mxu0 0.0
      %924 = vmatprep.subr.mxu0 0.0
      %925 = vmatpush1.msra.mxu0 0.0
      %926 = vmatprep.subr.mxu0 0.0
      %927 = vmatpush1.msra.mxu0 0.0
      %928 = vmatprep.subr.mxu0 0.0
      %929 = vmatpush1.msra.mxu0 0.0
      %930 = vmatprep.subr.mxu0 0.0
      %931 = vmatpush1.msra.mxu0 0.0
      %932 = vmatprep.subr.mxu0 0.0
      %933 = vmatpush1.msra.mxu0 0.0
      %934 = vmatprep.subr.mxu0 %v897
      %935 = vmatpush1.msra.mxu0 %v896
      %936 = vmatprep.subr.mxu0 0.0
      %937 = vmatpush2.msra.mxu0 0.0
      %938 = vmatprep.subr.mxu0 0.0
      %939 = vmatpush2.msra.mxu0 0.0
      %940 = vmatprep.subr.mxu0 0.0
      %941 = vmatpush2.msra.mxu0 0.0
      %942 = vmatprep.subr.mxu0 0.0
      %943 = vmatpush2.msra.mxu0 0.0
      %944 = vmatprep.subr.mxu0 0.0
      %945 = vmatpush2.msra.mxu0 0.0
      %946 = vmatprep.subr.mxu0 0.0
      %947 = vmatpush2.msra.mxu0 0.0
      %948 = vmatprep.subr.mxu0 0.0
      %949 = vmatpush2.msra.mxu0 0.0
      %950 = vmatprep.subr.mxu0 0.0
      %951 = vmatpush2.msra.mxu0 0.0
      %952 = vmatprep.subr.mxu0 0.0
      %953 = vmatpush2.msra.mxu0 0.0
      %954 = vmatprep.subr.mxu0 0.0
      %955 = vmatpush2.msra.mxu0 0.0
      %956 = vmatprep.subr.mxu0 0.0
      %957 = vmatpush2.msra.mxu0 0.0
      %958 = vmatprep.subr.mxu0 0.0
      %959 = vmatpush2.msra.mxu0 0.0
      %960 = vmatprep.subr.mxu0 0.0
      %961 = vmatpush2.msra.mxu0 0.0
      %962 = vmatprep.subr.mxu0 0.0
      %963 = vmatpush2.msra.mxu0 0.0
      %964 = vmatprep.subr.mxu0 0.0
      %965 = vmatpush2.msra.mxu0 0.0
      %966 = vmatprep.subr.mxu0 0.0
      %967 = vmatpush2.msra.mxu0 0.0
      %968 = vmatprep.mubr.f32.mxu0 0.0
      %969 = vmatmul.mubr.f32.gmra.mxu0 %v902
      %v970 = vpop.f32.mrf.mxu0
      %v971 = vadd.f32 0.0, %v970
      %v972 = vpop.f32.mrf.mxu0
      %v973 = vadd.f32 0.0, %v972
      %974 = vdwg.mxu0
      %975 = vmatprep.subr.mxu0 0.0
      %976 = vmatpush1.msra.mxu0 0.0
      %977 = vmatprep.subr.mxu0 0.0
      %978 = vmatpush1.msra.mxu0 0.0
      %979 = vmatprep.subr.mxu0 0.0
      %980 = vmatpush1.msra.mxu0 0.0
      %981 = vmatprep.subr.mxu0 0.0
      %982 = vmatpush1.msra.mxu0 0.0
      %983 = vmatprep.subr.mxu0 0.0
      %984 = vmatpush1.msra.mxu0 0.0
      %985 = vmatprep.subr.mxu0 0.0
      %986 = vmatpush1.msra.mxu0 0.0
      %987 = vmatprep.subr.mxu0 0.0
      %988 = vmatpush1.msra.mxu0 0.0
      %989 = vmatprep.subr.mxu0 0.0
      %990 = vmatpush1.msra.mxu0 0.0
      %991 = vmatprep.subr.mxu0 0.0
      %992 = vmatpush1.msra.mxu0 0.0
      %993 = vmatprep.subr.mxu0 0.0
      %994 = vmatpush1.msra.mxu0 0.0
      %995 = vmatprep.subr.mxu0 0.0
      %996 = vmatpush1.msra.mxu0 0.0
      %997 = vmatprep.subr.mxu0 0.0
      %998 = vmatpush1.msra.mxu0 0.0
      %999 = vmatprep.subr.mxu0 0.0
      %1000 = vmatpush1.msra.mxu0 0.0
      %1001 = vmatprep.subr.mxu0 0.0
      %1002 = vmatpush1.msra.mxu0 0.0
      %1003 = vmatprep.subr.mxu0 0.0
      %1004 = vmatpush1.msra.mxu0 0.0
      %1005 = vmatprep.subr.mxu0 0.0
      %1006 = vmatpush1.msra.mxu0 %v894
      %1007 = vmatprep.subr.mxu0 0.0
      %1008 = vmatpush2.msra.mxu0 0.0
      %1009 = vmatprep.subr.mxu0 0.0
      %1010 = vmatpush2.msra.mxu0 0.0
      %1011 = vmatprep.subr.mxu0 0.0
      %1012 = vmatpush2.msra.mxu0 0.0
      %1013 = vmatprep.subr.mxu0 0.0
      %1014 = vmatpush2.msra.mxu0 0.0
      %1015 = vmatprep.subr.mxu0 0.0
      %1016 = vmatpush2.msra.mxu0 0.0
      %1017 = vmatprep.subr.mxu0 0.0
      %1018 = vmatpush2.msra.mxu0 0.0
      %1019 = vmatprep.subr.mxu0 0.0
      %1020 = vmatpush2.msra.mxu0 0.0
      %1021 = vmatprep.subr.mxu0 0.0
      %1022 = vmatpush2.msra.mxu0 0.0
      %1023 = vmatprep.subr.mxu0 0.0
      %1024 = vmatpush2.msra.mxu0 0.0
      %1025 = vmatprep.subr.mxu0 0.0
      %1026 = vmatpush2.msra.mxu0 0.0
      %1027 = vmatprep.subr.mxu0 0.0
      %1028 = vmatpush2.msra.mxu0 0.0
      %1029 = vmatprep.subr.mxu0 0.0
      %1030 = vmatpush2.msra.mxu0 0.0
      %1031 = vmatprep.subr.mxu0 0.0
      %1032 = vmatpush2.msra.mxu0 0.0
      %1033 = vmatprep.subr.mxu0 0.0
      %1034 = vmatpush2.msra.mxu0 0.0
      %1035 = vmatprep.subr.mxu0 0.0
      %1036 = vmatpush2.msra.mxu0 0.0
      %1037 = vmatprep.subr.mxu0 0.0
      %1038 = vmatpush2.msra.mxu0 0.0
      %1039 = vmatprep.mubr.f32.mxu0 0.0
      %1040 = vmatmul.mubr.f32.gmra.mxu0 %v902
      %v1041 = vpop.f32.mrf.mxu0
      %v1042 = vadd.f32 0.0, %v1041
      %v1043 = vpop.f32.mrf.mxu0
      %1044 = vdwg.mxu0
      %v1045 = vadd.f32 %v884, %v971
      %v1046 = vadd.f32 %v885, %v973
      %v1047 = vadd.f32 %v886, %v1042
      %s1048 = scalar_lea.vmem %s1, 32
      %v1049 = vld [vmem:[%s1048] sm:$0xff]
      %1050 = vrot.lane.b32.xlu0 %v416, 110
      %v1051 = vpop.permute.xlu0 %1050
      %1052 = vrot.lane.b32.xlu0 %v417, 110
      %v1053 = vpop.permute.xlu0 %1052
      %1054 = vrot.lane.b32.xlu0 %v418, 110
      %v1055 = vpop.permute.xlu0 %1054
      %vm1056 = vcmask 900096
      %v1057 = vsel %vm1056, %v1051, %v1053
      %v1058 = vsel %vm1056, %v1053, %v1055
      %v1063 = vsel %vm437, %v1049, 0
      %1065 = vmatprep.subr.mxu0 0.0
      %1066 = vmatpush1.msra.mxu0 0.0
      %1067 = vmatprep.subr.mxu0 0.0
      %1068 = vmatpush1.msra.mxu0 0.0
      %1069 = vmatprep.subr.mxu0 0.0
      %1070 = vmatpush1.msra.mxu0 0.0
      %1071 = vmatprep.subr.mxu0 0.0
      %1072 = vmatpush1.msra.mxu0 0.0
      %1073 = vmatprep.subr.mxu0 0.0
      %1074 = vmatpush1.msra.mxu0 0.0
      %1075 = vmatprep.subr.mxu0 0.0
      %1076 = vmatpush1.msra.mxu0 0.0
      %1077 = vmatprep.subr.mxu0 0.0
      %1078 = vmatpush1.msra.mxu0 0.0
      %1079 = vmatprep.subr.mxu0 0.0
      %1080 = vmatpush1.msra.mxu0 0.0
      %1081 = vmatprep.subr.mxu0 0.0
      %1082 = vmatpush1.msra.mxu0 0.0
      %1083 = vmatprep.subr.mxu0 0.0
      %1084 = vmatpush1.msra.mxu0 0.0
      %1085 = vmatprep.subr.mxu0 0.0
      %1086 = vmatpush1.msra.mxu0 0.0
      %1087 = vmatprep.subr.mxu0 0.0
      %1088 = vmatpush1.msra.mxu0 0.0
      %1089 = vmatprep.subr.mxu0 0.0
      %1090 = vmatpush1.msra.mxu0 0.0
      %1091 = vmatprep.subr.mxu0 0.0
      %1092 = vmatpush1.msra.mxu0 0.0
      %1093 = vmatprep.subr.mxu0 0.0
      %1094 = vmatpush1.msra.mxu0 0.0
      %1095 = vmatprep.subr.mxu0 %v1058
      %1096 = vmatpush1.msra.mxu0 %v1057
      %1097 = vmatprep.subr.mxu0 0.0
      %1098 = vmatpush2.msra.mxu0 0.0
      %1099 = vmatprep.subr.mxu0 0.0
      %1100 = vmatpush2.msra.mxu0 0.0
      %1101 = vmatprep.subr.mxu0 0.0
      %1102 = vmatpush2.msra.mxu0 0.0
      %1103 = vmatprep.subr.mxu0 0.0
      %1104 = vmatpush2.msra.mxu0 0.0
      %1105 = vmatprep.subr.mxu0 0.0
      %1106 = vmatpush2.msra.mxu0 0.0
      %1107 = vmatprep.subr.mxu0 0.0
      %1108 = vmatpush2.msra.mxu0 0.0
      %1109 = vmatprep.subr.mxu0 0.0
      %1110 = vmatpush2.msra.mxu0 0.0
      %1111 = vmatprep.subr.mxu0 0.0
      %1112 = vmatpush2.msra.mxu0 0.0
      %1113 = vmatprep.subr.mxu0 0.0
      %1114 = vmatpush2.msra.mxu0 0.0
      %1115 = vmatprep.subr.mxu0 0.0
      %1116 = vmatpush2.msra.mxu0 0.0
      %1117 = vmatprep.subr.mxu0 0.0
      %1118 = vmatpush2.msra.mxu0 0.0
      %1119 = vmatprep.subr.mxu0 0.0
      %1120 = vmatpush2.msra.mxu0 0.0
      %1121 = vmatprep.subr.mxu0 0.0
      %1122 = vmatpush2.msra.mxu0 0.0
      %1123 = vmatprep.subr.mxu0 0.0
      %1124 = vmatpush2.msra.mxu0 0.0
      %1125 = vmatprep.subr.mxu0 0.0
      %1126 = vmatpush2.msra.mxu0 0.0
      %1127 = vmatprep.subr.mxu0 0.0
      %1128 = vmatpush2.msra.mxu0 0.0
      %1129 = vmatprep.mubr.f32.mxu0 0.0
      %1130 = vmatmul.mubr.f32.gmra.mxu0 %v1063
      %v1131 = vpop.f32.mrf.mxu0
      %v1132 = vadd.f32 0.0, %v1131
      %v1133 = vpop.f32.mrf.mxu0
      %v1134 = vadd.f32 0.0, %v1133
      %1135 = vdwg.mxu0
      %1136 = vmatprep.subr.mxu0 0.0
      %1137 = vmatpush1.msra.mxu0 0.0
      %1138 = vmatprep.subr.mxu0 0.0
      %1139 = vmatpush1.msra.mxu0 0.0
      %1140 = vmatprep.subr.mxu0 0.0
      %1141 = vmatpush1.msra.mxu0 0.0
      %1142 = vmatprep.subr.mxu0 0.0
      %1143 = vmatpush1.msra.mxu0 0.0
      %1144 = vmatprep.subr.mxu0 0.0
      %1145 = vmatpush1.msra.mxu0 0.0
      %1146 = vmatprep.subr.mxu0 0.0
      %1147 = vmatpush1.msra.mxu0 0.0
      %1148 = vmatprep.subr.mxu0 0.0
      %1149 = vmatpush1.msra.mxu0 0.0
      %1150 = vmatprep.subr.mxu0 0.0
      %1151 = vmatpush1.msra.mxu0 0.0
      %1152 = vmatprep.subr.mxu0 0.0
      %1153 = vmatpush1.msra.mxu0 0.0
      %1154 = vmatprep.subr.mxu0 0.0
      %1155 = vmatpush1.msra.mxu0 0.0
      %1156 = vmatprep.subr.mxu0 0.0
      %1157 = vmatpush1.msra.mxu0 0.0
      %1158 = vmatprep.subr.mxu0 0.0
      %1159 = vmatpush1.msra.mxu0 0.0
      %1160 = vmatprep.subr.mxu0 0.0
      %1161 = vmatpush1.msra.mxu0 0.0
      %1162 = vmatprep.subr.mxu0 0.0
      %1163 = vmatpush1.msra.mxu0 0.0
      %1164 = vmatprep.subr.mxu0 0.0
      %1165 = vmatpush1.msra.mxu0 0.0
      %1166 = vmatprep.subr.mxu0 0.0
      %1167 = vmatpush1.msra.mxu0 %v1055
      %1168 = vmatprep.subr.mxu0 0.0
      %1169 = vmatpush2.msra.mxu0 0.0
      %1170 = vmatprep.subr.mxu0 0.0
      %1171 = vmatpush2.msra.mxu0 0.0
      %1172 = vmatprep.subr.mxu0 0.0
      %1173 = vmatpush2.msra.mxu0 0.0
      %1174 = vmatprep.subr.mxu0 0.0
      %1175 = vmatpush2.msra.mxu0 0.0
      %1176 = vmatprep.subr.mxu0 0.0
      %1177 = vmatpush2.msra.mxu0 0.0
      %1178 = vmatprep.subr.mxu0 0.0
      %1179 = vmatpush2.msra.mxu0 0.0
      %1180 = vmatprep.subr.mxu0 0.0
      %1181 = vmatpush2.msra.mxu0 0.0
      %1182 = vmatprep.subr.mxu0 0.0
      %1183 = vmatpush2.msra.mxu0 0.0
      %1184 = vmatprep.subr.mxu0 0.0
      %1185 = vmatpush2.msra.mxu0 0.0
      %1186 = vmatprep.subr.mxu0 0.0
      %1187 = vmatpush2.msra.mxu0 0.0
      %1188 = vmatprep.subr.mxu0 0.0
      %1189 = vmatpush2.msra.mxu0 0.0
      %1190 = vmatprep.subr.mxu0 0.0
      %1191 = vmatpush2.msra.mxu0 0.0
      %1192 = vmatprep.subr.mxu0 0.0
      %1193 = vmatpush2.msra.mxu0 0.0
      %1194 = vmatprep.subr.mxu0 0.0
      %1195 = vmatpush2.msra.mxu0 0.0
      %1196 = vmatprep.subr.mxu0 0.0
      %1197 = vmatpush2.msra.mxu0 0.0
      %1198 = vmatprep.subr.mxu0 0.0
      %1199 = vmatpush2.msra.mxu0 0.0
      %1200 = vmatprep.mubr.f32.mxu0 0.0
      %1201 = vmatmul.mubr.f32.gmra.mxu0 %v1063
      %v1202 = vpop.f32.mrf.mxu0
      %v1203 = vadd.f32 0.0, %v1202
      %v1204 = vpop.f32.mrf.mxu0
      %1205 = vdwg.mxu0
      %v1206 = vadd.f32 %v1045, %v1132
      %v1207 = vadd.f32 %v1046, %v1134
      %v1208 = vadd.f32 %v1047, %v1203
      %s1209 = scalar_lea.vmem %s1, 40
      %v1210 = vld [vmem:[%s1209] sm:$0xff]
      %1211 = vrot.lane.b32.xlu0 %v416, 109
      %v1212 = vpop.permute.xlu0 %1211
      %1213 = vrot.lane.b32.xlu0 %v417, 109
      %v1214 = vpop.permute.xlu0 %1213
      %1215 = vrot.lane.b32.xlu0 %v418, 109
      %v1216 = vpop.permute.xlu0 %1215
      %vm1217 = vcmask 891904
      %v1218 = vsel %vm1217, %v1212, %v1214
      %v1219 = vsel %vm1217, %v1214, %v1216
      %v1224 = vsel %vm437, %v1210, 0
      %1226 = vmatprep.subr.mxu0 0.0
      %1227 = vmatpush1.msra.mxu0 0.0
      %1228 = vmatprep.subr.mxu0 0.0
      %1229 = vmatpush1.msra.mxu0 0.0
      %1230 = vmatprep.subr.mxu0 0.0
      %1231 = vmatpush1.msra.mxu0 0.0
      %1232 = vmatprep.subr.mxu0 0.0
      %1233 = vmatpush1.msra.mxu0 0.0
      %1234 = vmatprep.subr.mxu0 0.0
      %1235 = vmatpush1.msra.mxu0 0.0
      %1236 = vmatprep.subr.mxu0 0.0
      %1237 = vmatpush1.msra.mxu0 0.0
      %1238 = vmatprep.subr.mxu0 0.0
      %1239 = vmatpush1.msra.mxu0 0.0
      %1240 = vmatprep.subr.mxu0 0.0
      %1241 = vmatpush1.msra.mxu0 0.0
      %1242 = vmatprep.subr.mxu0 0.0
      %1243 = vmatpush1.msra.mxu0 0.0
      %1244 = vmatprep.subr.mxu0 0.0
      %1245 = vmatpush1.msra.mxu0 0.0
      %1246 = vmatprep.subr.mxu0 0.0
      %1247 = vmatpush1.msra.mxu0 0.0
      %1248 = vmatprep.subr.mxu0 0.0
      %1249 = vmatpush1.msra.mxu0 0.0
      %1250 = vmatprep.subr.mxu0 0.0
      %1251 = vmatpush1.msra.mxu0 0.0
      %1252 = vmatprep.subr.mxu0 0.0
      %1253 = vmatpush1.msra.mxu0 0.0
      %1254 = vmatprep.subr.mxu0 0.0
      %1255 = vmatpush1.msra.mxu0 0.0
      %1256 = vmatprep.subr.mxu0 %v1219
      %1257 = vmatpush1.msra.mxu0 %v1218
      %1258 = vmatprep.subr.mxu0 0.0
      %1259 = vmatpush2.msra.mxu0 0.0
      %1260 = vmatprep.subr.mxu0 0.0
      %1261 = vmatpush2.msra.mxu0 0.0
      %1262 = vmatprep.subr.mxu0 0.0
      %1263 = vmatpush2.msra.mxu0 0.0
      %1264 = vmatprep.subr.mxu0 0.0
      %1265 = vmatpush2.msra.mxu0 0.0
      %1266 = vmatprep.subr.mxu0 0.0
      %1267 = vmatpush2.msra.mxu0 0.0
      %1268 = vmatprep.subr.mxu0 0.0
      %1269 = vmatpush2.msra.mxu0 0.0
      %1270 = vmatprep.subr.mxu0 0.0
      %1271 = vmatpush2.msra.mxu0 0.0
      %1272 = vmatprep.subr.mxu0 0.0
      %1273 = vmatpush2.msra.mxu0 0.0
      %1274 = vmatprep.subr.mxu0 0.0
      %1275 = vmatpush2.msra.mxu0 0.0
      %1276 = vmatprep.subr.mxu0 0.0
      %1277 = vmatpush2.msra.mxu0 0.0
      %1278 = vmatprep.subr.mxu0 0.0
      %1279 = vmatpush2.msra.mxu0 0.0
      %1280 = vmatprep.subr.mxu0 0.0
      %1281 = vmatpush2.msra.mxu0 0.0
      %1282 = vmatprep.subr.mxu0 0.0
      %1283 = vmatpush2.msra.mxu0 0.0
      %1284 = vmatprep.subr.mxu0 0.0
      %1285 = vmatpush2.msra.mxu0 0.0
      %1286 = vmatprep.subr.mxu0 0.0
      %1287 = vmatpush2.msra.mxu0 0.0
      %1288 = vmatprep.subr.mxu0 0.0
      %1289 = vmatpush2.msra.mxu0 0.0
      %1290 = vmatprep.mubr.f32.mxu0 0.0
      %1291 = vmatmul.mubr.f32.gmra.mxu0 %v1224
      %v1292 = vpop.f32.mrf.mxu0
      %v1293 = vadd.f32 0.0, %v1292
      %v1294 = vpop.f32.mrf.mxu0
      %v1295 = vadd.f32 0.0, %v1294
      %1296 = vdwg.mxu0
      %1297 = vmatprep.subr.mxu0 0.0
      %1298 = vmatpush1.msra.mxu0 0.0
      %1299 = vmatprep.subr.mxu0 0.0
      %1300 = vmatpush1.msra.mxu0 0.0
      %1301 = vmatprep.subr.mxu0 0.0
      %1302 = vmatpush1.msra.mxu0 0.0
      %1303 = vmatprep.subr.mxu0 0.0
      %1304 = vmatpush1.msra.mxu0 0.0
      %1305 = vmatprep.subr.mxu0 0.0
      %1306 = vmatpush1.msra.mxu0 0.0
      %1307 = vmatprep.subr.mxu0 0.0
      %1308 = vmatpush1.msra.mxu0 0.0
      %1309 = vmatprep.subr.mxu0 0.0
      %1310 = vmatpush1.msra.mxu0 0.0
      %1311 = vmatprep.subr.mxu0 0.0
      %1312 = vmatpush1.msra.mxu0 0.0
      %1313 = vmatprep.subr.mxu0 0.0
      %1314 = vmatpush1.msra.mxu0 0.0
      %1315 = vmatprep.subr.mxu0 0.0
      %1316 = vmatpush1.msra.mxu0 0.0
      %1317 = vmatprep.subr.mxu0 0.0
      %1318 = vmatpush1.msra.mxu0 0.0
      %1319 = vmatprep.subr.mxu0 0.0
      %1320 = vmatpush1.msra.mxu0 0.0
      %1321 = vmatprep.subr.mxu0 0.0
      %1322 = vmatpush1.msra.mxu0 0.0
      %1323 = vmatprep.subr.mxu0 0.0
      %1324 = vmatpush1.msra.mxu0 0.0
      %1325 = vmatprep.subr.mxu0 0.0
      %1326 = vmatpush1.msra.mxu0 0.0
      %1327 = vmatprep.subr.mxu0 0.0
      %1328 = vmatpush1.msra.mxu0 %v1216
      %1329 = vmatprep.subr.mxu0 0.0
      %1330 = vmatpush2.msra.mxu0 0.0
      %1331 = vmatprep.subr.mxu0 0.0
      %1332 = vmatpush2.msra.mxu0 0.0
      %1333 = vmatprep.subr.mxu0 0.0
      %1334 = vmatpush2.msra.mxu0 0.0
      %1335 = vmatprep.subr.mxu0 0.0
      %1336 = vmatpush2.msra.mxu0 0.0
      %1337 = vmatprep.subr.mxu0 0.0
      %1338 = vmatpush2.msra.mxu0 0.0
      %1339 = vmatprep.subr.mxu0 0.0
      %1340 = vmatpush2.msra.mxu0 0.0
      %1341 = vmatprep.subr.mxu0 0.0
      %1342 = vmatpush2.msra.mxu0 0.0
      %1343 = vmatprep.subr.mxu0 0.0
      %1344 = vmatpush2.msra.mxu0 0.0
      %1345 = vmatprep.subr.mxu0 0.0
      %1346 = vmatpush2.msra.mxu0 0.0
      %1347 = vmatprep.subr.mxu0 0.0
      %1348 = vmatpush2.msra.mxu0 0.0
      %1349 = vmatprep.subr.mxu0 0.0
      %1350 = vmatpush2.msra.mxu0 0.0
      %1351 = vmatprep.subr.mxu0 0.0
      %1352 = vmatpush2.msra.mxu0 0.0
      %1353 = vmatprep.subr.mxu0 0.0
      %1354 = vmatpush2.msra.mxu0 0.0
      %1355 = vmatprep.subr.mxu0 0.0
      %1356 = vmatpush2.msra.mxu0 0.0
      %1357 = vmatprep.subr.mxu0 0.0
      %1358 = vmatpush2.msra.mxu0 0.0
      %1359 = vmatprep.subr.mxu0 0.0
      %1360 = vmatpush2.msra.mxu0 0.0
      %1361 = vmatprep.mubr.f32.mxu0 0.0
      %1362 = vmatmul.mubr.f32.gmra.mxu0 %v1224
      %v1363 = vpop.f32.mrf.mxu0
      %v1364 = vadd.f32 0.0, %v1363
      %v1365 = vpop.f32.mrf.mxu0
      %1366 = vdwg.mxu0
      %v1367 = vadd.f32 %v1206, %v1293
      %v1368 = vadd.f32 %v1207, %v1295
      %v1369 = vadd.f32 %v1208, %v1364
      %s1370 = scalar_lea.vmem %s1, 48
      %v1371 = vld [vmem:[%s1370] sm:$0xff]
      %1372 = vrot.lane.b32.xlu0 %v416, 94
      %v1373 = vpop.permute.xlu0 %1372
      %1374 = vrot.lane.b32.xlu0 %v417, 94
      %v1375 = vpop.permute.xlu0 %1374
      %1376 = vrot.lane.b32.xlu0 %v418, 94
      %v1377 = vpop.permute.xlu0 %1376
      %vm1378 = vcmask 769024
      %v1379 = vsel %vm1378, %v1373, %v1375
      %v1380 = vsel %vm1378, %v1375, %v1377
      %v1385 = vsel %vm437, %v1371, 0
      %1387 = vmatprep.subr.mxu0 0.0
      %1388 = vmatpush1.msra.mxu0 0.0
      %1389 = vmatprep.subr.mxu0 0.0
      %1390 = vmatpush1.msra.mxu0 0.0
      %1391 = vmatprep.subr.mxu0 0.0
      %1392 = vmatpush1.msra.mxu0 0.0
      %1393 = vmatprep.subr.mxu0 0.0
      %1394 = vmatpush1.msra.mxu0 0.0
      %1395 = vmatprep.subr.mxu0 0.0
      %1396 = vmatpush1.msra.mxu0 0.0
      %1397 = vmatprep.subr.mxu0 0.0
      %1398 = vmatpush1.msra.mxu0 0.0
      %1399 = vmatprep.subr.mxu0 0.0
      %1400 = vmatpush1.msra.mxu0 0.0
      %1401 = vmatprep.subr.mxu0 0.0
      %1402 = vmatpush1.msra.mxu0 0.0
      %1403 = vmatprep.subr.mxu0 0.0
      %1404 = vmatpush1.msra.mxu0 0.0
      %1405 = vmatprep.subr.mxu0 0.0
      %1406 = vmatpush1.msra.mxu0 0.0
      %1407 = vmatprep.subr.mxu0 0.0
      %1408 = vmatpush1.msra.mxu0 0.0
      %1409 = vmatprep.subr.mxu0 0.0
      %1410 = vmatpush1.msra.mxu0 0.0
      %1411 = vmatprep.subr.mxu0 0.0
      %1412 = vmatpush1.msra.mxu0 0.0
      %1413 = vmatprep.subr.mxu0 0.0
      %1414 = vmatpush1.msra.mxu0 0.0
      %1415 = vmatprep.subr.mxu0 0.0
      %1416 = vmatpush1.msra.mxu0 0.0
      %1417 = vmatprep.subr.mxu0 %v1380
      %1418 = vmatpush1.msra.mxu0 %v1379
      %1419 = vmatprep.subr.mxu0 0.0
      %1420 = vmatpush2.msra.mxu0 0.0
      %1421 = vmatprep.subr.mxu0 0.0
      %1422 = vmatpush2.msra.mxu0 0.0
      %1423 = vmatprep.subr.mxu0 0.0
      %1424 = vmatpush2.msra.mxu0 0.0
      %1425 = vmatprep.subr.mxu0 0.0
      %1426 = vmatpush2.msra.mxu0 0.0
      %1427 = vmatprep.subr.mxu0 0.0
      %1428 = vmatpush2.msra.mxu0 0.0
      %1429 = vmatprep.subr.mxu0 0.0
      %1430 = vmatpush2.msra.mxu0 0.0
      %1431 = vmatprep.subr.mxu0 0.0
      %1432 = vmatpush2.msra.mxu0 0.0
      %1433 = vmatprep.subr.mxu0 0.0
      %1434 = vmatpush2.msra.mxu0 0.0
      %1435 = vmatprep.subr.mxu0 0.0
      %1436 = vmatpush2.msra.mxu0 0.0
      %1437 = vmatprep.subr.mxu0 0.0
      %1438 = vmatpush2.msra.mxu0 0.0
      %1439 = vmatprep.subr.mxu0 0.0
      %1440 = vmatpush2.msra.mxu0 0.0
      %1441 = vmatprep.subr.mxu0 0.0
      %1442 = vmatpush2.msra.mxu0 0.0
      %1443 = vmatprep.subr.mxu0 0.0
      %1444 = vmatpush2.msra.mxu0 0.0
      %1445 = vmatprep.subr.mxu0 0.0
      %1446 = vmatpush2.msra.mxu0 0.0
      %1447 = vmatprep.subr.mxu0 0.0
      %1448 = vmatpush2.msra.mxu0 0.0
      %1449 = vmatprep.subr.mxu0 0.0
      %1450 = vmatpush2.msra.mxu0 0.0
      %1451 = vmatprep.mubr.f32.mxu0 0.0
      %1452 = vmatmul.mubr.f32.gmra.mxu0 %v1385
      %v1453 = vpop.f32.mrf.mxu0
      %v1454 = vadd.f32 0.0, %v1453
      %v1455 = vpop.f32.mrf.mxu0
      %v1456 = vadd.f32 0.0, %v1455
      %1457 = vdwg.mxu0
      %1458 = vmatprep.subr.mxu0 0.0
      %1459 = vmatpush1.msra.mxu0 0.0
      %1460 = vmatprep.subr.mxu0 0.0
      %1461 = vmatpush1.msra.mxu0 0.0
      %1462 = vmatprep.subr.mxu0 0.0
      %1463 = vmatpush1.msra.mxu0 0.0
      %1464 = vmatprep.subr.mxu0 0.0
      %1465 = vmatpush1.msra.mxu0 0.0
      %1466 = vmatprep.subr.mxu0 0.0
      %1467 = vmatpush1.msra.mxu0 0.0
      %1468 = vmatprep.subr.mxu0 0.0
      %1469 = vmatpush1.msra.mxu0 0.0
      %1470 = vmatprep.subr.mxu0 0.0
      %1471 = vmatpush1.msra.mxu0 0.0
      %1472 = vmatprep.subr.mxu0 0.0
      %1473 = vmatpush1.msra.mxu0 0.0
      %1474 = vmatprep.subr.mxu0 0.0
      %1475 = vmatpush1.msra.mxu0 0.0
      %1476 = vmatprep.subr.mxu0 0.0
      %1477 = vmatpush1.msra.mxu0 0.0
      %1478 = vmatprep.subr.mxu0 0.0
      %1479 = vmatpush1.msra.mxu0 0.0
      %1480 = vmatprep.subr.mxu0 0.0
      %1481 = vmatpush1.msra.mxu0 0.0
      %1482 = vmatprep.subr.mxu0 0.0
      %1483 = vmatpush1.msra.mxu0 0.0
      %1484 = vmatprep.subr.mxu0 0.0
      %1485 = vmatpush1.msra.mxu0 0.0
      %1486 = vmatprep.subr.mxu0 0.0
      %1487 = vmatpush1.msra.mxu0 0.0
      %1488 = vmatprep.subr.mxu0 0.0
      %1489 = vmatpush1.msra.mxu0 %v1377
      %1490 = vmatprep.subr.mxu0 0.0
      %1491 = vmatpush2.msra.mxu0 0.0
      %1492 = vmatprep.subr.mxu0 0.0
      %1493 = vmatpush2.msra.mxu0 0.0
      %1494 = vmatprep.subr.mxu0 0.0
      %1495 = vmatpush2.msra.mxu0 0.0
      %1496 = vmatprep.subr.mxu0 0.0
      %1497 = vmatpush2.msra.mxu0 0.0
      %1498 = vmatprep.subr.mxu0 0.0
      %1499 = vmatpush2.msra.mxu0 0.0
      %1500 = vmatprep.subr.mxu0 0.0
      %1501 = vmatpush2.msra.mxu0 0.0
      %1502 = vmatprep.subr.mxu0 0.0
      %1503 = vmatpush2.msra.mxu0 0.0
      %1504 = vmatprep.subr.mxu0 0.0
      %1505 = vmatpush2.msra.mxu0 0.0
      %1506 = vmatprep.subr.mxu0 0.0
      %1507 = vmatpush2.msra.mxu0 0.0
      %1508 = vmatprep.subr.mxu0 0.0
      %1509 = vmatpush2.msra.mxu0 0.0
      %1510 = vmatprep.subr.mxu0 0.0
      %1511 = vmatpush2.msra.mxu0 0.0
      %1512 = vmatprep.subr.mxu0 0.0
      %1513 = vmatpush2.msra.mxu0 0.0
      %1514 = vmatprep.subr.mxu0 0.0
      %1515 = vmatpush2.msra.mxu0 0.0
      %1516 = vmatprep.subr.mxu0 0.0
      %1517 = vmatpush2.msra.mxu0 0.0
      %1518 = vmatprep.subr.mxu0 0.0
      %1519 = vmatpush2.msra.mxu0 0.0
      %1520 = vmatprep.subr.mxu0 0.0
      %1521 = vmatpush2.msra.mxu0 0.0
      %1522 = vmatprep.mubr.f32.mxu0 0.0
      %1523 = vmatmul.mubr.f32.gmra.mxu0 %v1385
      %v1524 = vpop.f32.mrf.mxu0
      %v1525 = vadd.f32 0.0, %v1524
      %v1526 = vpop.f32.mrf.mxu0
      %1527 = vdwg.mxu0
      %v1528 = vadd.f32 %v1367, %v1454
      %v1529 = vadd.f32 %v1368, %v1456
      %v1530 = vadd.f32 %v1369, %v1525
      %s1531 = scalar_lea.vmem %s1, 56
      %v1532 = vld [vmem:[%s1531] sm:$0xff]
      %1533 = vrot.lane.b32.xlu0 %v416, 93
      %v1534 = vpop.permute.xlu0 %1533
      %1535 = vrot.lane.b32.xlu0 %v417, 93
      %v1536 = vpop.permute.xlu0 %1535
      %1537 = vrot.lane.b32.xlu0 %v418, 93
      %v1538 = vpop.permute.xlu0 %1537
      %vm1539 = vcmask 760832
      %v1540 = vsel %vm1539, %v1534, %v1536
      %v1541 = vsel %vm1539, %v1536, %v1538
      %v1546 = vsel %vm437, %v1532, 0
      %1548 = vmatprep.subr.mxu0 0.0
      %1549 = vmatpush1.msra.mxu0 0.0
      %1550 = vmatprep.subr.mxu0 0.0
      %1551 = vmatpush1.msra.mxu0 0.0
      %1552 = vmatprep.subr.mxu0 0.0
      %1553 = vmatpush1.msra.mxu0 0.0
      %1554 = vmatprep.subr.mxu0 0.0
      %1555 = vmatpush1.msra.mxu0 0.0
      %1556 = vmatprep.subr.mxu0 0.0
      %1557 = vmatpush1.msra.mxu0 0.0
      %1558 = vmatprep.subr.mxu0 0.0
      %1559 = vmatpush1.msra.mxu0 0.0
      %1560 = vmatprep.subr.mxu0 0.0
      %1561 = vmatpush1.msra.mxu0 0.0
      %1562 = vmatprep.subr.mxu0 0.0
      %1563 = vmatpush1.msra.mxu0 0.0
      %1564 = vmatprep.subr.mxu0 0.0
      %1565 = vmatpush1.msra.mxu0 0.0
      %1566 = vmatprep.subr.mxu0 0.0
      %1567 = vmatpush1.msra.mxu0 0.0
      %1568 = vmatprep.subr.mxu0 0.0
      %1569 = vmatpush1.msra.mxu0 0.0
      %1570 = vmatprep.subr.mxu0 0.0
      %1571 = vmatpush1.msra.mxu0 0.0
      %1572 = vmatprep.subr.mxu0 0.0
      %1573 = vmatpush1.msra.mxu0 0.0
      %1574 = vmatprep.subr.mxu0 0.0
      %1575 = vmatpush1.msra.mxu0 0.0
      %1576 = vmatprep.subr.mxu0 0.0
      %1577 = vmatpush1.msra.mxu0 0.0
      %1578 = vmatprep.subr.mxu0 %v1541
      %1579 = vmatpush1.msra.mxu0 %v1540
      %1580 = vmatprep.subr.mxu0 0.0
      %1581 = vmatpush2.msra.mxu0 0.0
      %1582 = vmatprep.subr.mxu0 0.0
      %1583 = vmatpush2.msra.mxu0 0.0
      %1584 = vmatprep.subr.mxu0 0.0
      %1585 = vmatpush2.msra.mxu0 0.0
      %1586 = vmatprep.subr.mxu0 0.0
      %1587 = vmatpush2.msra.mxu0 0.0
      %1588 = vmatprep.subr.mxu0 0.0
      %1589 = vmatpush2.msra.mxu0 0.0
      %1590 = vmatprep.subr.mxu0 0.0
      %1591 = vmatpush2.msra.mxu0 0.0
      %1592 = vmatprep.subr.mxu0 0.0
      %1593 = vmatpush2.msra.mxu0 0.0
      %1594 = vmatprep.subr.mxu0 0.0
      %1595 = vmatpush2.msra.mxu0 0.0
      %1596 = vmatprep.subr.mxu0 0.0
      %1597 = vmatpush2.msra.mxu0 0.0
      %1598 = vmatprep.subr.mxu0 0.0
      %1599 = vmatpush2.msra.mxu0 0.0
      %1600 = vmatprep.subr.mxu0 0.0
      %1601 = vmatpush2.msra.mxu0 0.0
      %1602 = vmatprep.subr.mxu0 0.0
      %1603 = vmatpush2.msra.mxu0 0.0
      %1604 = vmatprep.subr.mxu0 0.0
      %1605 = vmatpush2.msra.mxu0 0.0
      %1606 = vmatprep.subr.mxu0 0.0
      %1607 = vmatpush2.msra.mxu0 0.0
      %1608 = vmatprep.subr.mxu0 0.0
      %1609 = vmatpush2.msra.mxu0 0.0
      %1610 = vmatprep.subr.mxu0 0.0
      %1611 = vmatpush2.msra.mxu0 0.0
      %1612 = vmatprep.mubr.f32.mxu0 0.0
      %1613 = vmatmul.mubr.f32.gmra.mxu0 %v1546
      %v1614 = vpop.f32.mrf.mxu0
      %v1615 = vadd.f32 0.0, %v1614
      %v1616 = vpop.f32.mrf.mxu0
      %v1617 = vadd.f32 0.0, %v1616
      %1618 = vdwg.mxu0
      %1619 = vmatprep.subr.mxu0 0.0
      %1620 = vmatpush1.msra.mxu0 0.0
      %1621 = vmatprep.subr.mxu0 0.0
      %1622 = vmatpush1.msra.mxu0 0.0
      %1623 = vmatprep.subr.mxu0 0.0
      %1624 = vmatpush1.msra.mxu0 0.0
      %1625 = vmatprep.subr.mxu0 0.0
      %1626 = vmatpush1.msra.mxu0 0.0
      %1627 = vmatprep.subr.mxu0 0.0
      %1628 = vmatpush1.msra.mxu0 0.0
      %1629 = vmatprep.subr.mxu0 0.0
      %1630 = vmatpush1.msra.mxu0 0.0
      %1631 = vmatprep.subr.mxu0 0.0
      %1632 = vmatpush1.msra.mxu0 0.0
      %1633 = vmatprep.subr.mxu0 0.0
      %1634 = vmatpush1.msra.mxu0 0.0
      %1635 = vmatprep.subr.mxu0 0.0
      %1636 = vmatpush1.msra.mxu0 0.0
      %1637 = vmatprep.subr.mxu0 0.0
      %1638 = vmatpush1.msra.mxu0 0.0
      %1639 = vmatprep.subr.mxu0 0.0
      %1640 = vmatpush1.msra.mxu0 0.0
      %1641 = vmatprep.subr.mxu0 0.0
      %1642 = vmatpush1.msra.mxu0 0.0
      %1643 = vmatprep.subr.mxu0 0.0
      %1644 = vmatpush1.msra.mxu0 0.0
      %1645 = vmatprep.subr.mxu0 0.0
      %1646 = vmatpush1.msra.mxu0 0.0
      %1647 = vmatprep.subr.mxu0 0.0
      %1648 = vmatpush1.msra.mxu0 0.0
      %1649 = vmatprep.subr.mxu0 0.0
      %1650 = vmatpush1.msra.mxu0 %v1538
      %1651 = vmatprep.subr.mxu0 0.0
      %1652 = vmatpush2.msra.mxu0 0.0
      %1653 = vmatprep.subr.mxu0 0.0
      %1654 = vmatpush2.msra.mxu0 0.0
      %1655 = vmatprep.subr.mxu0 0.0
      %1656 = vmatpush2.msra.mxu0 0.0
      %1657 = vmatprep.subr.mxu0 0.0
      %1658 = vmatpush2.msra.mxu0 0.0
      %1659 = vmatprep.subr.mxu0 0.0
      %1660 = vmatpush2.msra.mxu0 0.0
      %1661 = vmatprep.subr.mxu0 0.0
      %1662 = vmatpush2.msra.mxu0 0.0
      %1663 = vmatprep.subr.mxu0 0.0
      %1664 = vmatpush2.msra.mxu0 0.0
      %1665 = vmatprep.subr.mxu0 0.0
      %1666 = vmatpush2.msra.mxu0 0.0
      %1667 = vmatprep.subr.mxu0 0.0
      %1668 = vmatpush2.msra.mxu0 0.0
      %1669 = vmatprep.subr.mxu0 0.0
      %1670 = vmatpush2.msra.mxu0 0.0
      %1671 = vmatprep.subr.mxu0 0.0
      %1672 = vmatpush2.msra.mxu0 0.0
      %1673 = vmatprep.subr.mxu0 0.0
      %1674 = vmatpush2.msra.mxu0 0.0
      %1675 = vmatprep.subr.mxu0 0.0
      %1676 = vmatpush2.msra.mxu0 0.0
      %1677 = vmatprep.subr.mxu0 0.0
      %1678 = vmatpush2.msra.mxu0 0.0
      %1679 = vmatprep.subr.mxu0 0.0
      %1680 = vmatpush2.msra.mxu0 0.0
      %1681 = vmatprep.subr.mxu0 0.0
      %1682 = vmatpush2.msra.mxu0 0.0
      %1683 = vmatprep.mubr.f32.mxu0 0.0
      %1684 = vmatmul.mubr.f32.gmra.mxu0 %v1546
      %v1685 = vpop.f32.mrf.mxu0
      %v1686 = vadd.f32 0.0, %v1685
      %v1687 = vpop.f32.mrf.mxu0
      %1688 = vdwg.mxu0
      %v1689 = vadd.f32 %v1528, %v1615
      %v1690 = vadd.f32 %v1529, %v1617
      %v1691 = vadd.f32 %v1530, %v1686
      %s1692 = scalar_lea.vmem %s1, 64
      %v1693 = vld [vmem:[%s1692] sm:$0xff]
      %1694 = vrot.lane.b32.xlu0 %v416, 92
      %v1695 = vpop.permute.xlu0 %1694
      %1696 = vrot.lane.b32.xlu0 %v417, 92
      %v1697 = vpop.permute.xlu0 %1696
      %1698 = vrot.lane.b32.xlu0 %v418, 92
      %v1699 = vpop.permute.xlu0 %1698
      %vm1700 = vcmask 752640
      %v1701 = vsel %vm1700, %v1695, %v1697
      %v1702 = vsel %vm1700, %v1697, %v1699
      %v1707 = vsel %vm437, %v1693, 0
      %1709 = vmatprep.subr.mxu0 0.0
      %1710 = vmatpush1.msra.mxu0 0.0
      %1711 = vmatprep.subr.mxu0 0.0
      %1712 = vmatpush1.msra.mxu0 0.0
      %1713 = vmatprep.subr.mxu0 0.0
      %1714 = vmatpush1.msra.mxu0 0.0
      %1715 = vmatprep.subr.mxu0 0.0
      %1716 = vmatpush1.msra.mxu0 0.0
      %1717 = vmatprep.subr.mxu0 0.0
      %1718 = vmatpush1.msra.mxu0 0.0
      %1719 = vmatprep.subr.mxu0 0.0
      %1720 = vmatpush1.msra.mxu0 0.0
      %1721 = vmatprep.subr.mxu0 0.0
      %1722 = vmatpush1.msra.mxu0 0.0
      %1723 = vmatprep.subr.mxu0 0.0
      %1724 = vmatpush1.msra.mxu0 0.0
      %1725 = vmatprep.subr.mxu0 0.0
      %1726 = vmatpush1.msra.mxu0 0.0
      %1727 = vmatprep.subr.mxu0 0.0
      %1728 = vmatpush1.msra.mxu0 0.0
      %1729 = vmatprep.subr.mxu0 0.0
      %1730 = vmatpush1.msra.mxu0 0.0
      %1731 = vmatprep.subr.mxu0 0.0
      %1732 = vmatpush1.msra.mxu0 0.0
      %1733 = vmatprep.subr.mxu0 0.0
      %1734 = vmatpush1.msra.mxu0 0.0
      %1735 = vmatprep.subr.mxu0 0.0
      %1736 = vmatpush1.msra.mxu0 0.0
      %1737 = vmatprep.subr.mxu0 0.0
      %1738 = vmatpush1.msra.mxu0 0.0
      %1739 = vmatprep.subr.mxu0 %v1702
      %1740 = vmatpush1.msra.mxu0 %v1701
      %1741 = vmatprep.subr.mxu0 0.0
      %1742 = vmatpush2.msra.mxu0 0.0
      %1743 = vmatprep.subr.mxu0 0.0
      %1744 = vmatpush2.msra.mxu0 0.0
      %1745 = vmatprep.subr.mxu0 0.0
      %1746 = vmatpush2.msra.mxu0 0.0
      %1747 = vmatprep.subr.mxu0 0.0
      %1748 = vmatpush2.msra.mxu0 0.0
      %1749 = vmatprep.subr.mxu0 0.0
      %1750 = vmatpush2.msra.mxu0 0.0
      %1751 = vmatprep.subr.mxu0 0.0
      %1752 = vmatpush2.msra.mxu0 0.0
      %1753 = vmatprep.subr.mxu0 0.0
      %1754 = vmatpush2.msra.mxu0 0.0
      %1755 = vmatprep.subr.mxu0 0.0
      %1756 = vmatpush2.msra.mxu0 0.0
      %1757 = vmatprep.subr.mxu0 0.0
      %1758 = vmatpush2.msra.mxu0 0.0
      %1759 = vmatprep.subr.mxu0 0.0
      %1760 = vmatpush2.msra.mxu0 0.0
      %1761 = vmatprep.subr.mxu0 0.0
      %1762 = vmatpush2.msra.mxu0 0.0
      %1763 = vmatprep.subr.mxu0 0.0
      %1764 = vmatpush2.msra.mxu0 0.0
      %1765 = vmatprep.subr.mxu0 0.0
      %1766 = vmatpush2.msra.mxu0 0.0
      %1767 = vmatprep.subr.mxu0 0.0
      %1768 = vmatpush2.msra.mxu0 0.0
      %1769 = vmatprep.subr.mxu0 0.0
      %1770 = vmatpush2.msra.mxu0 0.0
      %1771 = vmatprep.subr.mxu0 0.0
      %1772 = vmatpush2.msra.mxu0 0.0
      %1773 = vmatprep.mubr.f32.mxu0 0.0
      %1774 = vmatmul.mubr.f32.gmra.mxu0 %v1707
      %v1775 = vpop.f32.mrf.mxu0
      %v1776 = vadd.f32 0.0, %v1775
      %v1777 = vpop.f32.mrf.mxu0
      %v1778 = vadd.f32 0.0, %v1777
      %1779 = vdwg.mxu0
      %1780 = vmatprep.subr.mxu0 0.0
      %1781 = vmatpush1.msra.mxu0 0.0
      %1782 = vmatprep.subr.mxu0 0.0
      %1783 = vmatpush1.msra.mxu0 0.0
      %1784 = vmatprep.subr.mxu0 0.0
      %1785 = vmatpush1.msra.mxu0 0.0
      %1786 = vmatprep.subr.mxu0 0.0
      %1787 = vmatpush1.msra.mxu0 0.0
      %1788 = vmatprep.subr.mxu0 0.0
      %1789 = vmatpush1.msra.mxu0 0.0
      %1790 = vmatprep.subr.mxu0 0.0
      %1791 = vmatpush1.msra.mxu0 0.0
      %1792 = vmatprep.subr.mxu0 0.0
      %1793 = vmatpush1.msra.mxu0 0.0
      %1794 = vmatprep.subr.mxu0 0.0
      %1795 = vmatpush1.msra.mxu0 0.0
      %1796 = vmatprep.subr.mxu0 0.0
      %1797 = vmatpush1.msra.mxu0 0.0
      %1798 = vmatprep.subr.mxu0 0.0
      %1799 = vmatpush1.msra.mxu0 0.0
      %1800 = vmatprep.subr.mxu0 0.0
      %1801 = vmatpush1.msra.mxu0 0.0
      %1802 = vmatprep.subr.mxu0 0.0
      %1803 = vmatpush1.msra.mxu0 0.0
      %1804 = vmatprep.subr.mxu0 0.0
      %1805 = vmatpush1.msra.mxu0 0.0
      %1806 = vmatprep.subr.mxu0 0.0
      %1807 = vmatpush1.msra.mxu0 0.0
      %1808 = vmatprep.subr.mxu0 0.0
      %1809 = vmatpush1.msra.mxu0 0.0
      %1810 = vmatprep.subr.mxu0 0.0
      %1811 = vmatpush1.msra.mxu0 %v1699
      %1812 = vmatprep.subr.mxu0 0.0
      %1813 = vmatpush2.msra.mxu0 0.0
      %1814 = vmatprep.subr.mxu0 0.0
      %1815 = vmatpush2.msra.mxu0 0.0
      %1816 = vmatprep.subr.mxu0 0.0
      %1817 = vmatpush2.msra.mxu0 0.0
      %1818 = vmatprep.subr.mxu0 0.0
      %1819 = vmatpush2.msra.mxu0 0.0
      %1820 = vmatprep.subr.mxu0 0.0
      %1821 = vmatpush2.msra.mxu0 0.0
      %1822 = vmatprep.subr.mxu0 0.0
      %1823 = vmatpush2.msra.mxu0 0.0
      %1824 = vmatprep.subr.mxu0 0.0
      %1825 = vmatpush2.msra.mxu0 0.0
      %1826 = vmatprep.subr.mxu0 0.0
      %1827 = vmatpush2.msra.mxu0 0.0
      %1828 = vmatprep.subr.mxu0 0.0
      %1829 = vmatpush2.msra.mxu0 0.0
      %1830 = vmatprep.subr.mxu0 0.0
      %1831 = vmatpush2.msra.mxu0 0.0
      %1832 = vmatprep.subr.mxu0 0.0
      %1833 = vmatpush2.msra.mxu0 0.0
      %1834 = vmatprep.subr.mxu0 0.0
      %1835 = vmatpush2.msra.mxu0 0.0
      %1836 = vmatprep.subr.mxu0 0.0
      %1837 = vmatpush2.msra.mxu0 0.0
      %1838 = vmatprep.subr.mxu0 0.0
      %1839 = vmatpush2.msra.mxu0 0.0
      %1840 = vmatprep.subr.mxu0 0.0
      %1841 = vmatpush2.msra.mxu0 0.0
      %1842 = vmatprep.subr.mxu0 0.0
      %1843 = vmatpush2.msra.mxu0 0.0
      %1844 = vmatprep.mubr.f32.mxu0 0.0
      %1845 = vmatmul.mubr.f32.gmra.mxu0 %v1707
      %v1846 = vpop.f32.mrf.mxu0
      %v1847 = vadd.f32 0.0, %v1846
      %v1848 = vpop.f32.mrf.mxu0
      %1849 = vdwg.mxu0
      %v1850 = vadd.f32 %v1689, %v1776
      %v1851 = vadd.f32 %v1690, %v1778
      %v1852 = vadd.f32 %v1691, %v1847
      %v1853 = vld [vmem:[%s3] sm:$0xff]
      %1855 = vset.pattern.permute.xlu0 0
      %1856 = vperm.xlu0 %1855, %v1853
      %v1857 = vpop.permute.xlu0 %1856
      %v1859 = vadd.f32 %v1850, %v1857
      %v1860 = vadd.f32 %v1851, %v1857
      %v1861 = vadd.f32 %v1852, %v1857
      %v1862 = vld [vmem:[%s4] sm:$0xff]
      %v1863 = vld [vmem:[%s408] sm:$0x7]
      %1865 = vset.pattern.permute.xlu0 0
      %1866 = vperm.xlu0 %1865, %v1862
      %v1867 = vpop.permute.xlu0 %1866
      %v1870 = vlaneseq
      %v1871 = vshrl.u32 %v1870, 7
      %v1872 = vsub.s32 0, %v1871
      %v1873 = vrot.slane %v1863, %v1872
      %v1874 = vlaneseq
      %v1875 = vshrl.u32 %v1874, 7
      %v1876 = vsub.s32 1, %v1875
      %v1877 = vrot.slane %v1863, %v1876
      %v1878 = vlaneseq
      %v1879 = vshrl.u32 %v1878, 7
      %v1880 = vsub.s32 2, %v1879
      %v1881 = vrot.slane %v1863, %v1880
      %v1885 = vmul.f32 %v1867, %v1873
      %v1886 = vmul.f32 %v1867, %v1877
      %v1887 = vmul.f32 %v1867, %v1881
      %v1888 = vadd.f32 %v1859, %v1885
      %v1889 = vadd.f32 %v1860, %v1886
      %v1890 = vadd.f32 %v1861, %v1887
      %vm1891 = vcmp.ge.f32.partialorder %v1888, 0.0
      %vm1892 = vcmp.ge.f32.partialorder %v1889, 0.0
      %vm1893 = vcmp.ge.f32.partialorder %v1890, 0.0
      %v1894 = vmul.f32 %v1888, 0.2
      %v1895 = vmul.f32 %v1889, 0.2
      %v1896 = vmul.f32 %v1890, 0.2
      %v1897 = vsel %vm1891, %v1888, %v1894
      %v1898 = vsel %vm1892, %v1889, %v1895
      %v1899 = vsel %vm1893, %v1890, %v1896
      %v1900 = vld [vmem:[%s9] sm:$0x7]
      %v1902 = vlaneseq
      %v1903 = vshrl.u32 %v1902, 7
      %v1904 = vsub.s32 0, %v1903
      %v1905 = vrot.slane %v1900, %v1904
      %v1906 = vlaneseq
      %v1907 = vshrl.u32 %v1906, 7
      %v1908 = vsub.s32 1, %v1907
      %v1909 = vrot.slane %v1900, %v1908
      %v1910 = vlaneseq
      %v1911 = vshrl.u32 %v1910, 7
      %v1912 = vsub.s32 2, %v1911
      %v1913 = vrot.slane %v1900, %v1912
      %v1917 = vmul.f32 %v1897, %v1905
      %v1918 = vmul.f32 %v1898, %v1909
      %v1919 = vmul.f32 %v1899, %v1913
      %1920 = vst [vmem:[#allocation2] sm:$0xff] 0.0
      %1921 = vst [vmem:[#allocation2 + $0x8] sm:$0xff] 0.0
      %vm1922 = vcmask 424960
      %1923 = vst.msk [vmem:[#allocation2 + $0x10] sm:$0xff] %vm1922, 0.0
      %1927 = vrot.lane.b32.xlu0 %v1917, 18
      %v1928 = vpop.permute.xlu0 %1927
      %1929 = vrot.lane.b32.xlu0 %v1918, 18
      %v1930 = vpop.permute.xlu0 %1929
      %1931 = vrot.lane.b32.xlu0 %v1919, 18
      %v1932 = vpop.permute.xlu0 %1931
      %vm1933 = vcmask 146432
      %v1934 = vsel %vm1933, %v1928, %v1930
      %v1935 = vsel %vm1933, %v1930, %v1932
      %vm1939 = vcmask 1047696
      %1940 = vst.msk [vmem:[#allocation2] sm:$0xff] %vm1939, %v1928
      %1941 = vst [vmem:[#allocation2 + $0x8] sm:$0xff] %v1934
      %vm1942 = vcmask 277504
      %1943 = vst.msk [vmem:[#allocation2 + $0x10] sm:$0xff] %vm1942, %v1935
      %v1944 = vld [vmem:[%s2] sm:$0xff]
      %v1945 = vld [vmem:[#allocation2] sm:$0xff]
      %v1946 = vld [vmem:[#allocation2 + $0x8] sm:$0xff]
      %v1947 = vld [vmem:[#allocation2 + $0x10] sm:$0xff]
      %s1948 = scalar_lea.vmem %s2, 8
      %v1949 = vld [vmem:[%s1948] sm:$0xff]
      %1953 = vrot.lane.b32.xlu0 %v1945, 127
      %v1954 = vpop.permute.xlu0 %1953
      %1955 = vrot.lane.b32.xlu0 %v1946, 127
      %v1956 = vpop.permute.xlu0 %1955
      %1957 = vrot.lane.b32.xlu0 %v1947, 127
      %v1958 = vpop.permute.xlu0 %1957
      %v1959 = vsel %vm431, %v1954, %v1956
      %v1960 = vsel %vm431, %v1956, %v1958
      %v1965 = vsel %vm437, %v1949, 0
      %1967 = vmatprep.subr.mxu0 0.0
      %1968 = vmatpush1.msra.mxu0 0.0
      %1969 = vmatprep.subr.mxu0 0.0
      %1970 = vmatpush1.msra.mxu0 0.0
      %1971 = vmatprep.subr.mxu0 0.0
      %1972 = vmatpush1.msra.mxu0 0.0
      %1973 = vmatprep.subr.mxu0 0.0
      %1974 = vmatpush1.msra.mxu0 0.0
      %1975 = vmatprep.subr.mxu0 0.0
      %1976 = vmatpush1.msra.mxu0 0.0
      %1977 = vmatprep.subr.mxu0 0.0
      %1978 = vmatpush1.msra.mxu0 0.0
      %1979 = vmatprep.subr.mxu0 0.0
      %1980 = vmatpush1.msra.mxu0 0.0
      %1981 = vmatprep.subr.mxu0 0.0
      %1982 = vmatpush1.msra.mxu0 0.0
      %1983 = vmatprep.subr.mxu0 0.0
      %1984 = vmatpush1.msra.mxu0 0.0
      %1985 = vmatprep.subr.mxu0 0.0
      %1986 = vmatpush1.msra.mxu0 0.0
      %1987 = vmatprep.subr.mxu0 0.0
      %1988 = vmatpush1.msra.mxu0 0.0
      %1989 = vmatprep.subr.mxu0 0.0
      %1990 = vmatpush1.msra.mxu0 0.0
      %1991 = vmatprep.subr.mxu0 0.0
      %1992 = vmatpush1.msra.mxu0 0.0
      %1993 = vmatprep.subr.mxu0 0.0
      %1994 = vmatpush1.msra.mxu0 0.0
      %1995 = vmatprep.subr.mxu0 0.0
      %1996 = vmatpush1.msra.mxu0 0.0
      %1997 = vmatprep.subr.mxu0 %v1960
      %1998 = vmatpush1.msra.mxu0 %v1959
      %1999 = vmatprep.subr.mxu0 0.0
      %2000 = vmatpush2.msra.mxu0 0.0
      %2001 = vmatprep.subr.mxu0 0.0
      %2002 = vmatpush2.msra.mxu0 0.0
      %2003 = vmatprep.subr.mxu0 0.0
      %2004 = vmatpush2.msra.mxu0 0.0
      %2005 = vmatprep.subr.mxu0 0.0
      %2006 = vmatpush2.msra.mxu0 0.0
      %2007 = vmatprep.subr.mxu0 0.0
      %2008 = vmatpush2.msra.mxu0 0.0
      %2009 = vmatprep.subr.mxu0 0.0
      %2010 = vmatpush2.msra.mxu0 0.0
      %2011 = vmatprep.subr.mxu0 0.0
      %2012 = vmatpush2.msra.mxu0 0.0
      %2013 = vmatprep.subr.mxu0 0.0
      %2014 = vmatpush2.msra.mxu0 0.0
      %2015 = vmatprep.subr.mxu0 0.0
      %2016 = vmatpush2.msra.mxu0 0.0
      %2017 = vmatprep.subr.mxu0 0.0
      %2018 = vmatpush2.msra.mxu0 0.0
      %2019 = vmatprep.subr.mxu0 0.0
      %2020 = vmatpush2.msra.mxu0 0.0
      %2021 = vmatprep.subr.mxu0 0.0
      %2022 = vmatpush2.msra.mxu0 0.0
      %2023 = vmatprep.subr.mxu0 0.0
      %2024 = vmatpush2.msra.mxu0 0.0
      %2025 = vmatprep.subr.mxu0 0.0
      %2026 = vmatpush2.msra.mxu0 0.0
      %2027 = vmatprep.subr.mxu0 0.0
      %2028 = vmatpush2.msra.mxu0 0.0
      %2029 = vmatprep.subr.mxu0 0.0
      %2030 = vmatpush2.msra.mxu0 0.0
      %2031 = vmatprep.mubr.f32.mxu0 0.0
      %2032 = vmatmul.mubr.f32.gmra.mxu0 %v1965
      %v2033 = vpop.f32.mrf.mxu0
      %v2034 = vadd.f32 0.0, %v2033
      %v2035 = vpop.f32.mrf.mxu0
      %v2036 = vadd.f32 0.0, %v2035
      %2037 = vdwg.mxu0
      %2038 = vmatprep.subr.mxu0 0.0
      %2039 = vmatpush1.msra.mxu0 0.0
      %2040 = vmatprep.subr.mxu0 0.0
      %2041 = vmatpush1.msra.mxu0 0.0
      %2042 = vmatprep.subr.mxu0 0.0
      %2043 = vmatpush1.msra.mxu0 0.0
      %2044 = vmatprep.subr.mxu0 0.0
      %2045 = vmatpush1.msra.mxu0 0.0
      %2046 = vmatprep.subr.mxu0 0.0
      %2047 = vmatpush1.msra.mxu0 0.0
      %2048 = vmatprep.subr.mxu0 0.0
      %2049 = vmatpush1.msra.mxu0 0.0
      %2050 = vmatprep.subr.mxu0 0.0
      %2051 = vmatpush1.msra.mxu0 0.0
      %2052 = vmatprep.subr.mxu0 0.0
      %2053 = vmatpush1.msra.mxu0 0.0
      %2054 = vmatprep.subr.mxu0 0.0
      %2055 = vmatpush1.msra.mxu0 0.0
      %2056 = vmatprep.subr.mxu0 0.0
      %2057 = vmatpush1.msra.mxu0 0.0
      %2058 = vmatprep.subr.mxu0 0.0
      %2059 = vmatpush1.msra.mxu0 0.0
      %2060 = vmatprep.subr.mxu0 0.0
      %2061 = vmatpush1.msra.mxu0 0.0
      %2062 = vmatprep.subr.mxu0 0.0
      %2063 = vmatpush1.msra.mxu0 0.0
      %2064 = vmatprep.subr.mxu0 0.0
      %2065 = vmatpush1.msra.mxu0 0.0
      %2066 = vmatprep.subr.mxu0 0.0
      %2067 = vmatpush1.msra.mxu0 0.0
      %2068 = vmatprep.subr.mxu0 0.0
      %2069 = vmatpush1.msra.mxu0 %v1958
      %2070 = vmatprep.subr.mxu0 0.0
      %2071 = vmatpush2.msra.mxu0 0.0
      %2072 = vmatprep.subr.mxu0 0.0
      %2073 = vmatpush2.msra.mxu0 0.0
      %2074 = vmatprep.subr.mxu0 0.0
      %2075 = vmatpush2.msra.mxu0 0.0
      %2076 = vmatprep.subr.mxu0 0.0
      %2077 = vmatpush2.msra.mxu0 0.0
      %2078 = vmatprep.subr.mxu0 0.0
      %2079 = vmatpush2.msra.mxu0 0.0
      %2080 = vmatprep.subr.mxu0 0.0
      %2081 = vmatpush2.msra.mxu0 0.0
      %2082 = vmatprep.subr.mxu0 0.0
      %2083 = vmatpush2.msra.mxu0 0.0
      %2084 = vmatprep.subr.mxu0 0.0
      %2085 = vmatpush2.msra.mxu0 0.0
      %2086 = vmatprep.subr.mxu0 0.0
      %2087 = vmatpush2.msra.mxu0 0.0
      %2088 = vmatprep.subr.mxu0 0.0
      %2089 = vmatpush2.msra.mxu0 0.0
      %2090 = vmatprep.subr.mxu0 0.0
      %2091 = vmatpush2.msra.mxu0 0.0
      %2092 = vmatprep.subr.mxu0 0.0
      %2093 = vmatpush2.msra.mxu0 0.0
      %2094 = vmatprep.subr.mxu0 0.0
      %2095 = vmatpush2.msra.mxu0 0.0
      %2096 = vmatprep.subr.mxu0 0.0
      %2097 = vmatpush2.msra.mxu0 0.0
      %2098 = vmatprep.subr.mxu0 0.0
      %2099 = vmatpush2.msra.mxu0 0.0
      %2100 = vmatprep.subr.mxu0 0.0
      %2101 = vmatpush2.msra.mxu0 0.0
      %2102 = vmatprep.mubr.f32.mxu0 0.0
      %2103 = vmatmul.mubr.f32.gmra.mxu0 %v1965
      %v2104 = vpop.f32.mrf.mxu0
      %v2105 = vadd.f32 0.0, %v2104
      %v2106 = vpop.f32.mrf.mxu0
      %2107 = vdwg.mxu0
      %v2109 = vsel %vm437, %v1944, 0
      %2111 = vmatprep.subr.mxu0 0.0
      %2112 = vmatpush1.msra.mxu0 0.0
      %2113 = vmatprep.subr.mxu0 0.0
      %2114 = vmatpush1.msra.mxu0 0.0
      %2115 = vmatprep.subr.mxu0 0.0
      %2116 = vmatpush1.msra.mxu0 0.0
      %2117 = vmatprep.subr.mxu0 0.0
      %2118 = vmatpush1.msra.mxu0 0.0
      %2119 = vmatprep.subr.mxu0 0.0
      %2120 = vmatpush1.msra.mxu0 0.0
      %2121 = vmatprep.subr.mxu0 0.0
      %2122 = vmatpush1.msra.mxu0 0.0
      %2123 = vmatprep.subr.mxu0 0.0
      %2124 = vmatpush1.msra.mxu0 0.0
      %2125 = vmatprep.subr.mxu0 0.0
      %2126 = vmatpush1.msra.mxu0 0.0
      %2127 = vmatprep.subr.mxu0 0.0
      %2128 = vmatpush1.msra.mxu0 0.0
      %2129 = vmatprep.subr.mxu0 0.0
      %2130 = vmatpush1.msra.mxu0 0.0
      %2131 = vmatprep.subr.mxu0 0.0
      %2132 = vmatpush1.msra.mxu0 0.0
      %2133 = vmatprep.subr.mxu0 0.0
      %2134 = vmatpush1.msra.mxu0 0.0
      %2135 = vmatprep.subr.mxu0 0.0
      %2136 = vmatpush1.msra.mxu0 0.0
      %2137 = vmatprep.subr.mxu0 0.0
      %2138 = vmatpush1.msra.mxu0 0.0
      %2139 = vmatprep.subr.mxu0 0.0
      %2140 = vmatpush1.msra.mxu0 0.0
      %2141 = vmatprep.subr.mxu0 %v1946
      %2142 = vmatpush1.msra.mxu0 %v1945
      %2143 = vmatprep.subr.mxu0 0.0
      %2144 = vmatpush2.msra.mxu0 0.0
      %2145 = vmatprep.subr.mxu0 0.0
      %2146 = vmatpush2.msra.mxu0 0.0
      %2147 = vmatprep.subr.mxu0 0.0
      %2148 = vmatpush2.msra.mxu0 0.0
      %2149 = vmatprep.subr.mxu0 0.0
      %2150 = vmatpush2.msra.mxu0 0.0
      %2151 = vmatprep.subr.mxu0 0.0
      %2152 = vmatpush2.msra.mxu0 0.0
      %2153 = vmatprep.subr.mxu0 0.0
      %2154 = vmatpush2.msra.mxu0 0.0
      %2155 = vmatprep.subr.mxu0 0.0
      %2156 = vmatpush2.msra.mxu0 0.0
      %2157 = vmatprep.subr.mxu0 0.0
      %2158 = vmatpush2.msra.mxu0 0.0
      %2159 = vmatprep.subr.mxu0 0.0
      %2160 = vmatpush2.msra.mxu0 0.0
      %2161 = vmatprep.subr.mxu0 0.0
      %2162 = vmatpush2.msra.mxu0 0.0
      %2163 = vmatprep.subr.mxu0 0.0
      %2164 = vmatpush2.msra.mxu0 0.0
      %2165 = vmatprep.subr.mxu0 0.0
      %2166 = vmatpush2.msra.mxu0 0.0
      %2167 = vmatprep.subr.mxu0 0.0
      %2168 = vmatpush2.msra.mxu0 0.0
      %2169 = vmatprep.subr.mxu0 0.0
      %2170 = vmatpush2.msra.mxu0 0.0
      %2171 = vmatprep.subr.mxu0 0.0
      %2172 = vmatpush2.msra.mxu0 0.0
      %2173 = vmatprep.subr.mxu0 0.0
      %2174 = vmatpush2.msra.mxu0 0.0
      %2175 = vmatprep.mubr.f32.mxu0 0.0
      %2176 = vmatmul.mubr.f32.gmra.mxu0 %v2109
      %v2177 = vpop.f32.mrf.mxu0
      %v2178 = vadd.f32 %v2034, %v2177
      %v2179 = vpop.f32.mrf.mxu0
      %v2180 = vadd.f32 %v2036, %v2179
      %2181 = vdwg.mxu0
      %2182 = vmatprep.subr.mxu0 0.0
      %2183 = vmatpush1.msra.mxu0 0.0
      %2184 = vmatprep.subr.mxu0 0.0
      %2185 = vmatpush1.msra.mxu0 0.0
      %2186 = vmatprep.subr.mxu0 0.0
      %2187 = vmatpush1.msra.mxu0 0.0
      %2188 = vmatprep.subr.mxu0 0.0
      %2189 = vmatpush1.msra.mxu0 0.0
      %2190 = vmatprep.subr.mxu0 0.0
      %2191 = vmatpush1.msra.mxu0 0.0
      %2192 = vmatprep.subr.mxu0 0.0
      %2193 = vmatpush1.msra.mxu0 0.0
      %2194 = vmatprep.subr.mxu0 0.0
      %2195 = vmatpush1.msra.mxu0 0.0
      %2196 = vmatprep.subr.mxu0 0.0
      %2197 = vmatpush1.msra.mxu0 0.0
      %2198 = vmatprep.subr.mxu0 0.0
      %2199 = vmatpush1.msra.mxu0 0.0
      %2200 = vmatprep.subr.mxu0 0.0
      %2201 = vmatpush1.msra.mxu0 0.0
      %2202 = vmatprep.subr.mxu0 0.0
      %2203 = vmatpush1.msra.mxu0 0.0
      %2204 = vmatprep.subr.mxu0 0.0
      %2205 = vmatpush1.msra.mxu0 0.0
      %2206 = vmatprep.subr.mxu0 0.0
      %2207 = vmatpush1.msra.mxu0 0.0
      %2208 = vmatprep.subr.mxu0 0.0
      %2209 = vmatpush1.msra.mxu0 0.0
      %2210 = vmatprep.subr.mxu0 0.0
      %2211 = vmatpush1.msra.mxu0 0.0
      %2212 = vmatprep.subr.mxu0 0.0
      %2213 = vmatpush1.msra.mxu0 %v1947
      %2214 = vmatprep.subr.mxu0 0.0
      %2215 = vmatpush2.msra.mxu0 0.0
      %2216 = vmatprep.subr.mxu0 0.0
      %2217 = vmatpush2.msra.mxu0 0.0
      %2218 = vmatprep.subr.mxu0 0.0
      %2219 = vmatpush2.msra.mxu0 0.0
      %2220 = vmatprep.subr.mxu0 0.0
      %2221 = vmatpush2.msra.mxu0 0.0
      %2222 = vmatprep.subr.mxu0 0.0
      %2223 = vmatpush2.msra.mxu0 0.0
      %2224 = vmatprep.subr.mxu0 0.0
      %2225 = vmatpush2.msra.mxu0 0.0
      %2226 = vmatprep.subr.mxu0 0.0
      %2227 = vmatpush2.msra.mxu0 0.0
      %2228 = vmatprep.subr.mxu0 0.0
      %2229 = vmatpush2.msra.mxu0 0.0
      %2230 = vmatprep.subr.mxu0 0.0
      %2231 = vmatpush2.msra.mxu0 0.0
      %2232 = vmatprep.subr.mxu0 0.0
      %2233 = vmatpush2.msra.mxu0 0.0
      %2234 = vmatprep.subr.mxu0 0.0
      %2235 = vmatpush2.msra.mxu0 0.0
      %2236 = vmatprep.subr.mxu0 0.0
      %2237 = vmatpush2.msra.mxu0 0.0
      %2238 = vmatprep.subr.mxu0 0.0
      %2239 = vmatpush2.msra.mxu0 0.0
      %2240 = vmatprep.subr.mxu0 0.0
      %2241 = vmatpush2.msra.mxu0 0.0
      %2242 = vmatprep.subr.mxu0 0.0
      %2243 = vmatpush2.msra.mxu0 0.0
      %2244 = vmatprep.subr.mxu0 0.0
      %2245 = vmatpush2.msra.mxu0 0.0
      %2246 = vmatprep.mubr.f32.mxu0 0.0
      %2247 = vmatmul.mubr.f32.gmra.mxu0 %v2109
      %v2248 = vpop.f32.mrf.mxu0
      %v2249 = vadd.f32 %v2105, %v2248
      %v2250 = vpop.f32.mrf.mxu0
      %2251 = vdwg.mxu0
      %s2252 = scalar_lea.vmem %s2, 16
      %v2253 = vld [vmem:[%s2252] sm:$0xff]
      %2254 = vrot.lane.b32.xlu0 %v1945, 126
      %v2255 = vpop.permute.xlu0 %2254
      %2256 = vrot.lane.b32.xlu0 %v1946, 126
      %v2257 = vpop.permute.xlu0 %2256
      %2258 = vrot.lane.b32.xlu0 %v1947, 126
      %v2259 = vpop.permute.xlu0 %2258
      %v2260 = vsel %vm734, %v2255, %v2257
      %v2261 = vsel %vm734, %v2257, %v2259
      %v2266 = vsel %vm437, %v2253, 0
      %2268 = vmatprep.subr.mxu0 0.0
      %2269 = vmatpush1.msra.mxu0 0.0
      %2270 = vmatprep.subr.mxu0 0.0
      %2271 = vmatpush1.msra.mxu0 0.0
      %2272 = vmatprep.subr.mxu0 0.0
      %2273 = vmatpush1.msra.mxu0 0.0
      %2274 = vmatprep.subr.mxu0 0.0
      %2275 = vmatpush1.msra.mxu0 0.0
      %2276 = vmatprep.subr.mxu0 0.0
      %2277 = vmatpush1.msra.mxu0 0.0
      %2278 = vmatprep.subr.mxu0 0.0
      %2279 = vmatpush1.msra.mxu0 0.0
      %2280 = vmatprep.subr.mxu0 0.0
      %2281 = vmatpush1.msra.mxu0 0.0
      %2282 = vmatprep.subr.mxu0 0.0
      %2283 = vmatpush1.msra.mxu0 0.0
      %2284 = vmatprep.subr.mxu0 0.0
      %2285 = vmatpush1.msra.mxu0 0.0
      %2286 = vmatprep.subr.mxu0 0.0
      %2287 = vmatpush1.msra.mxu0 0.0
      %2288 = vmatprep.subr.mxu0 0.0
      %2289 = vmatpush1.msra.mxu0 0.0
      %2290 = vmatprep.subr.mxu0 0.0
      %2291 = vmatpush1.msra.mxu0 0.0
      %2292 = vmatprep.subr.mxu0 0.0
      %2293 = vmatpush1.msra.mxu0 0.0
      %2294 = vmatprep.subr.mxu0 0.0
      %2295 = vmatpush1.msra.mxu0 0.0
      %2296 = vmatprep.subr.mxu0 0.0
      %2297 = vmatpush1.msra.mxu0 0.0
      %2298 = vmatprep.subr.mxu0 %v2261
      %2299 = vmatpush1.msra.mxu0 %v2260
      %2300 = vmatprep.subr.mxu0 0.0
      %2301 = vmatpush2.msra.mxu0 0.0
      %2302 = vmatprep.subr.mxu0 0.0
      %2303 = vmatpush2.msra.mxu0 0.0
      %2304 = vmatprep.subr.mxu0 0.0
      %2305 = vmatpush2.msra.mxu0 0.0
      %2306 = vmatprep.subr.mxu0 0.0
      %2307 = vmatpush2.msra.mxu0 0.0
      %2308 = vmatprep.subr.mxu0 0.0
      %2309 = vmatpush2.msra.mxu0 0.0
      %2310 = vmatprep.subr.mxu0 0.0
      %2311 = vmatpush2.msra.mxu0 0.0
      %2312 = vmatprep.subr.mxu0 0.0
      %2313 = vmatpush2.msra.mxu0 0.0
      %2314 = vmatprep.subr.mxu0 0.0
      %2315 = vmatpush2.msra.mxu0 0.0
      %2316 = vmatprep.subr.mxu0 0.0
      %2317 = vmatpush2.msra.mxu0 0.0
      %2318 = vmatprep.subr.mxu0 0.0
      %2319 = vmatpush2.msra.mxu0 0.0
      %2320 = vmatprep.subr.mxu0 0.0
      %2321 = vmatpush2.msra.mxu0 0.0
      %2322 = vmatprep.subr.mxu0 0.0
      %2323 = vmatpush2.msra.mxu0 0.0
      %2324 = vmatprep.subr.mxu0 0.0
      %2325 = vmatpush2.msra.mxu0 0.0
      %2326 = vmatprep.subr.mxu0 0.0
      %2327 = vmatpush2.msra.mxu0 0.0
      %2328 = vmatprep.subr.mxu0 0.0
      %2329 = vmatpush2.msra.mxu0 0.0
      %2330 = vmatprep.subr.mxu0 0.0
      %2331 = vmatpush2.msra.mxu0 0.0
      %2332 = vmatprep.mubr.f32.mxu0 0.0
      %2333 = vmatmul.mubr.f32.gmra.mxu0 %v2266
      %v2334 = vpop.f32.mrf.mxu0
      %v2335 = vadd.f32 0.0, %v2334
      %v2336 = vpop.f32.mrf.mxu0
      %v2337 = vadd.f32 0.0, %v2336
      %2338 = vdwg.mxu0
      %2339 = vmatprep.subr.mxu0 0.0
      %2340 = vmatpush1.msra.mxu0 0.0
      %2341 = vmatprep.subr.mxu0 0.0
      %2342 = vmatpush1.msra.mxu0 0.0
      %2343 = vmatprep.subr.mxu0 0.0
      %2344 = vmatpush1.msra.mxu0 0.0
      %2345 = vmatprep.subr.mxu0 0.0
      %2346 = vmatpush1.msra.mxu0 0.0
      %2347 = vmatprep.subr.mxu0 0.0
      %2348 = vmatpush1.msra.mxu0 0.0
      %2349 = vmatprep.subr.mxu0 0.0
      %2350 = vmatpush1.msra.mxu0 0.0
      %2351 = vmatprep.subr.mxu0 0.0
      %2352 = vmatpush1.msra.mxu0 0.0
      %2353 = vmatprep.subr.mxu0 0.0
      %2354 = vmatpush1.msra.mxu0 0.0
      %2355 = vmatprep.subr.mxu0 0.0
      %2356 = vmatpush1.msra.mxu0 0.0
      %2357 = vmatprep.subr.mxu0 0.0
      %2358 = vmatpush1.msra.mxu0 0.0
      %2359 = vmatprep.subr.mxu0 0.0
      %2360 = vmatpush1.msra.mxu0 0.0
      %2361 = vmatprep.subr.mxu0 0.0
      %2362 = vmatpush1.msra.mxu0 0.0
      %2363 = vmatprep.subr.mxu0 0.0
      %2364 = vmatpush1.msra.mxu0 0.0
      %2365 = vmatprep.subr.mxu0 0.0
      %2366 = vmatpush1.msra.mxu0 0.0
      %2367 = vmatprep.subr.mxu0 0.0
      %2368 = vmatpush1.msra.mxu0 0.0
      %2369 = vmatprep.subr.mxu0 0.0
      %2370 = vmatpush1.msra.mxu0 %v2259
      %2371 = vmatprep.subr.mxu0 0.0
      %2372 = vmatpush2.msra.mxu0 0.0
      %2373 = vmatprep.subr.mxu0 0.0
      %2374 = vmatpush2.msra.mxu0 0.0
      %2375 = vmatprep.subr.mxu0 0.0
      %2376 = vmatpush2.msra.mxu0 0.0
      %2377 = vmatprep.subr.mxu0 0.0
      %2378 = vmatpush2.msra.mxu0 0.0
      %2379 = vmatprep.subr.mxu0 0.0
      %2380 = vmatpush2.msra.mxu0 0.0
      %2381 = vmatprep.subr.mxu0 0.0
      %2382 = vmatpush2.msra.mxu0 0.0
      %2383 = vmatprep.subr.mxu0 0.0
      %2384 = vmatpush2.msra.mxu0 0.0
      %2385 = vmatprep.subr.mxu0 0.0
      %2386 = vmatpush2.msra.mxu0 0.0
      %2387 = vmatprep.subr.mxu0 0.0
      %2388 = vmatpush2.msra.mxu0 0.0
      %2389 = vmatprep.subr.mxu0 0.0
      %2390 = vmatpush2.msra.mxu0 0.0
      %2391 = vmatprep.subr.mxu0 0.0
      %2392 = vmatpush2.msra.mxu0 0.0
      %2393 = vmatprep.subr.mxu0 0.0
      %2394 = vmatpush2.msra.mxu0 0.0
      %2395 = vmatprep.subr.mxu0 0.0
      %2396 = vmatpush2.msra.mxu0 0.0
      %2397 = vmatprep.subr.mxu0 0.0
      %2398 = vmatpush2.msra.mxu0 0.0
      %2399 = vmatprep.subr.mxu0 0.0
      %2400 = vmatpush2.msra.mxu0 0.0
      %2401 = vmatprep.subr.mxu0 0.0
      %2402 = vmatpush2.msra.mxu0 0.0
      %2403 = vmatprep.mubr.f32.mxu0 0.0
      %2404 = vmatmul.mubr.f32.gmra.mxu0 %v2266
      %v2405 = vpop.f32.mrf.mxu0
      %v2406 = vadd.f32 0.0, %v2405
      %v2407 = vpop.f32.mrf.mxu0
      %2408 = vdwg.mxu0
      %v2409 = vadd.f32 %v2178, %v2335
      %v2410 = vadd.f32 %v2180, %v2337
      %v2411 = vadd.f32 %v2249, %v2406
      %s2412 = scalar_lea.vmem %s2, 24
      %v2413 = vld [vmem:[%s2412] sm:$0xff]
      %2414 = vrot.lane.b32.xlu0 %v1945, 111
      %v2415 = vpop.permute.xlu0 %2414
      %2416 = vrot.lane.b32.xlu0 %v1946, 111
      %v2417 = vpop.permute.xlu0 %2416
      %2418 = vrot.lane.b32.xlu0 %v1947, 111
      %v2419 = vpop.permute.xlu0 %2418
      %v2420 = vsel %vm895, %v2415, %v2417
      %v2421 = vsel %vm895, %v2417, %v2419
      %v2426 = vsel %vm437, %v2413, 0
      %2428 = vmatprep.subr.mxu0 0.0
      %2429 = vmatpush1.msra.mxu0 0.0
      %2430 = vmatprep.subr.mxu0 0.0
      %2431 = vmatpush1.msra.mxu0 0.0
      %2432 = vmatprep.subr.mxu0 0.0
      %2433 = vmatpush1.msra.mxu0 0.0
      %2434 = vmatprep.subr.mxu0 0.0
      %2435 = vmatpush1.msra.mxu0 0.0
      %2436 = vmatprep.subr.mxu0 0.0
      %2437 = vmatpush1.msra.mxu0 0.0
      %2438 = vmatprep.subr.mxu0 0.0
      %2439 = vmatpush1.msra.mxu0 0.0
      %2440 = vmatprep.subr.mxu0 0.0
      %2441 = vmatpush1.msra.mxu0 0.0
      %2442 = vmatprep.subr.mxu0 0.0
      %2443 = vmatpush1.msra.mxu0 0.0
      %2444 = vmatprep.subr.mxu0 0.0
      %2445 = vmatpush1.msra.mxu0 0.0
      %2446 = vmatprep.subr.mxu0 0.0
      %2447 = vmatpush1.msra.mxu0 0.0
      %2448 = vmatprep.subr.mxu0 0.0
      %2449 = vmatpush1.msra.mxu0 0.0
      %2450 = vmatprep.subr.mxu0 0.0
      %2451 = vmatpush1.msra.mxu0 0.0
      %2452 = vmatprep.subr.mxu0 0.0
      %2453 = vmatpush1.msra.mxu0 0.0
      %2454 = vmatprep.subr.mxu0 0.0
      %2455 = vmatpush1.msra.mxu0 0.0
      %2456 = vmatprep.subr.mxu0 0.0
      %2457 = vmatpush1.msra.mxu0 0.0
      %2458 = vmatprep.subr.mxu0 %v2421
      %2459 = vmatpush1.msra.mxu0 %v2420
      %2460 = vmatprep.subr.mxu0 0.0
      %2461 = vmatpush2.msra.mxu0 0.0
      %2462 = vmatprep.subr.mxu0 0.0
      %2463 = vmatpush2.msra.mxu0 0.0
      %2464 = vmatprep.subr.mxu0 0.0
      %2465 = vmatpush2.msra.mxu0 0.0
      %2466 = vmatprep.subr.mxu0 0.0
      %2467 = vmatpush2.msra.mxu0 0.0
      %2468 = vmatprep.subr.mxu0 0.0
      %2469 = vmatpush2.msra.mxu0 0.0
      %2470 = vmatprep.subr.mxu0 0.0
      %2471 = vmatpush2.msra.mxu0 0.0
      %2472 = vmatprep.subr.mxu0 0.0
      %2473 = vmatpush2.msra.mxu0 0.0
      %2474 = vmatprep.subr.mxu0 0.0
      %2475 = vmatpush2.msra.mxu0 0.0
      %2476 = vmatprep.subr.mxu0 0.0
      %2477 = vmatpush2.msra.mxu0 0.0
      %2478 = vmatprep.subr.mxu0 0.0
      %2479 = vmatpush2.msra.mxu0 0.0
      %2480 = vmatprep.subr.mxu0 0.0
      %2481 = vmatpush2.msra.mxu0 0.0
      %2482 = vmatprep.subr.mxu0 0.0
      %2483 = vmatpush2.msra.mxu0 0.0
      %2484 = vmatprep.subr.mxu0 0.0
      %2485 = vmatpush2.msra.mxu0 0.0
      %2486 = vmatprep.subr.mxu0 0.0
      %2487 = vmatpush2.msra.mxu0 0.0
      %2488 = vmatprep.subr.mxu0 0.0
      %2489 = vmatpush2.msra.mxu0 0.0
      %2490 = vmatprep.subr.mxu0 0.0
      %2491 = vmatpush2.msra.mxu0 0.0
      %2492 = vmatprep.mubr.f32.mxu0 0.0
      %2493 = vmatmul.mubr.f32.gmra.mxu0 %v2426
      %v2494 = vpop.f32.mrf.mxu0
      %v2495 = vadd.f32 0.0, %v2494
      %v2496 = vpop.f32.mrf.mxu0
      %v2497 = vadd.f32 0.0, %v2496
      %2498 = vdwg.mxu0
      %2499 = vmatprep.subr.mxu0 0.0
      %2500 = vmatpush1.msra.mxu0 0.0
      %2501 = vmatprep.subr.mxu0 0.0
      %2502 = vmatpush1.msra.mxu0 0.0
      %2503 = vmatprep.subr.mxu0 0.0
      %2504 = vmatpush1.msra.mxu0 0.0
      %2505 = vmatprep.subr.mxu0 0.0
      %2506 = vmatpush1.msra.mxu0 0.0
      %2507 = vmatprep.subr.mxu0 0.0
      %2508 = vmatpush1.msra.mxu0 0.0
      %2509 = vmatprep.subr.mxu0 0.0
      %2510 = vmatpush1.msra.mxu0 0.0
      %2511 = vmatprep.subr.mxu0 0.0
      %2512 = vmatpush1.msra.mxu0 0.0
      %2513 = vmatprep.subr.mxu0 0.0
      %2514 = vmatpush1.msra.mxu0 0.0
      %2515 = vmatprep.subr.mxu0 0.0
      %2516 = vmatpush1.msra.mxu0 0.0
      %2517 = vmatprep.subr.mxu0 0.0
      %2518 = vmatpush1.msra.mxu0 0.0
      %2519 = vmatprep.subr.mxu0 0.0
      %2520 = vmatpush1.msra.mxu0 0.0
      %2521 = vmatprep.subr.mxu0 0.0
      %2522 = vmatpush1.msra.mxu0 0.0
      %2523 = vmatprep.subr.mxu0 0.0
      %2524 = vmatpush1.msra.mxu0 0.0
      %2525 = vmatprep.subr.mxu0 0.0
      %2526 = vmatpush1.msra.mxu0 0.0
      %2527 = vmatprep.subr.mxu0 0.0
      %2528 = vmatpush1.msra.mxu0 0.0
      %2529 = vmatprep.subr.mxu0 0.0
      %2530 = vmatpush1.msra.mxu0 %v2419
      %2531 = vmatprep.subr.mxu0 0.0
      %2532 = vmatpush2.msra.mxu0 0.0
      %2533 = vmatprep.subr.mxu0 0.0
      %2534 = vmatpush2.msra.mxu0 0.0
      %2535 = vmatprep.subr.mxu0 0.0
      %2536 = vmatpush2.msra.mxu0 0.0
      %2537 = vmatprep.subr.mxu0 0.0
      %2538 = vmatpush2.msra.mxu0 0.0
      %2539 = vmatprep.subr.mxu0 0.0
      %2540 = vmatpush2.msra.mxu0 0.0
      %2541 = vmatprep.subr.mxu0 0.0
      %2542 = vmatpush2.msra.mxu0 0.0
      %2543 = vmatprep.subr.mxu0 0.0
      %2544 = vmatpush2.msra.mxu0 0.0
      %2545 = vmatprep.subr.mxu0 0.0
      %2546 = vmatpush2.msra.mxu0 0.0
      %2547 = vmatprep.subr.mxu0 0.0
      %2548 = vmatpush2.msra.mxu0 0.0
      %2549 = vmatprep.subr.mxu0 0.0
      %2550 = vmatpush2.msra.mxu0 0.0
      %2551 = vmatprep.subr.mxu0 0.0
      %2552 = vmatpush2.msra.mxu0 0.0
      %2553 = vmatprep.subr.mxu0 0.0
      %2554 = vmatpush2.msra.mxu0 0.0
      %2555 = vmatprep.subr.mxu0 0.0
      %2556 = vmatpush2.msra.mxu0 0.0
      %2557 = vmatprep.subr.mxu0 0.0
      %2558 = vmatpush2.msra.mxu0 0.0
      %2559 = vmatprep.subr.mxu0 0.0
      %2560 = vmatpush2.msra.mxu0 0.0
      %2561 = vmatprep.subr.mxu0 0.0
      %2562 = vmatpush2.msra.mxu0 0.0
      %2563 = vmatprep.mubr.f32.mxu0 0.0
      %2564 = vmatmul.mubr.f32.gmra.mxu0 %v2426
      %v2565 = vpop.f32.mrf.mxu0
      %v2566 = vadd.f32 0.0, %v2565
      %v2567 = vpop.f32.mrf.mxu0
      %2568 = vdwg.mxu0
      %v2569 = vadd.f32 %v2409, %v2495
      %v2570 = vadd.f32 %v2410, %v2497
      %v2571 = vadd.f32 %v2411, %v2566
      %s2572 = scalar_lea.vmem %s2, 32
      %v2573 = vld [vmem:[%s2572] sm:$0xff]
      %2574 = vrot.lane.b32.xlu0 %v1945, 110
      %v2575 = vpop.permute.xlu0 %2574
      %2576 = vrot.lane.b32.xlu0 %v1946, 110
      %v2577 = vpop.permute.xlu0 %2576
      %2578 = vrot.lane.b32.xlu0 %v1947, 110
      %v2579 = vpop.permute.xlu0 %2578
      %v2580 = vsel %vm1056, %v2575, %v2577
      %v2581 = vsel %vm1056, %v2577, %v2579
      %v2586 = vsel %vm437, %v2573, 0
      %2588 = vmatprep.subr.mxu0 0.0
      %2589 = vmatpush1.msra.mxu0 0.0
      %2590 = vmatprep.subr.mxu0 0.0
      %2591 = vmatpush1.msra.mxu0 0.0
      %2592 = vmatprep.subr.mxu0 0.0
      %2593 = vmatpush1.msra.mxu0 0.0
      %2594 = vmatprep.subr.mxu0 0.0
      %2595 = vmatpush1.msra.mxu0 0.0
      %2596 = vmatprep.subr.mxu0 0.0
      %2597 = vmatpush1.msra.mxu0 0.0
      %2598 = vmatprep.subr.mxu0 0.0
      %2599 = vmatpush1.msra.mxu0 0.0
      %2600 = vmatprep.subr.mxu0 0.0
      %2601 = vmatpush1.msra.mxu0 0.0
      %2602 = vmatprep.subr.mxu0 0.0
      %2603 = vmatpush1.msra.mxu0 0.0
      %2604 = vmatprep.subr.mxu0 0.0
      %2605 = vmatpush1.msra.mxu0 0.0
      %2606 = vmatprep.subr.mxu0 0.0
      %2607 = vmatpush1.msra.mxu0 0.0
      %2608 = vmatprep.subr.mxu0 0.0
      %2609 = vmatpush1.msra.mxu0 0.0
      %2610 = vmatprep.subr.mxu0 0.0
      %2611 = vmatpush1.msra.mxu0 0.0
      %2612 = vmatprep.subr.mxu0 0.0
      %2613 = vmatpush1.msra.mxu0 0.0
      %2614 = vmatprep.subr.mxu0 0.0
      %2615 = vmatpush1.msra.mxu0 0.0
      %2616 = vmatprep.subr.mxu0 0.0
      %2617 = vmatpush1.msra.mxu0 0.0
      %2618 = vmatprep.subr.mxu0 %v2581
      %2619 = vmatpush1.msra.mxu0 %v2580
      %2620 = vmatprep.subr.mxu0 0.0
      %2621 = vmatpush2.msra.mxu0 0.0
      %2622 = vmatprep.subr.mxu0 0.0
      %2623 = vmatpush2.msra.mxu0 0.0
      %2624 = vmatprep.subr.mxu0 0.0
      %2625 = vmatpush2.msra.mxu0 0.0
      %2626 = vmatprep.subr.mxu0 0.0
      %2627 = vmatpush2.msra.mxu0 0.0
      %2628 = vmatprep.subr.mxu0 0.0
      %2629 = vmatpush2.msra.mxu0 0.0
      %2630 = vmatprep.subr.mxu0 0.0
      %2631 = vmatpush2.msra.mxu0 0.0
      %2632 = vmatprep.subr.mxu0 0.0
      %2633 = vmatpush2.msra.mxu0 0.0
      %2634 = vmatprep.subr.mxu0 0.0
      %2635 = vmatpush2.msra.mxu0 0.0
      %2636 = vmatprep.subr.mxu0 0.0
      %2637 = vmatpush2.msra.mxu0 0.0
      %2638 = vmatprep.subr.mxu0 0.0
      %2639 = vmatpush2.msra.mxu0 0.0
      %2640 = vmatprep.subr.mxu0 0.0
      %2641 = vmatpush2.msra.mxu0 0.0
      %2642 = vmatprep.subr.mxu0 0.0
      %2643 = vmatpush2.msra.mxu0 0.0
      %2644 = vmatprep.subr.mxu0 0.0
      %2645 = vmatpush2.msra.mxu0 0.0
      %2646 = vmatprep.subr.mxu0 0.0
      %2647 = vmatpush2.msra.mxu0 0.0
      %2648 = vmatprep.subr.mxu0 0.0
      %2649 = vmatpush2.msra.mxu0 0.0
      %2650 = vmatprep.subr.mxu0 0.0
      %2651 = vmatpush2.msra.mxu0 0.0
      %2652 = vmatprep.mubr.f32.mxu0 0.0
      %2653 = vmatmul.mubr.f32.gmra.mxu0 %v2586
      %v2654 = vpop.f32.mrf.mxu0
      %v2655 = vadd.f32 0.0, %v2654
      %v2656 = vpop.f32.mrf.mxu0
      %v2657 = vadd.f32 0.0, %v2656
      %2658 = vdwg.mxu0
      %2659 = vmatprep.subr.mxu0 0.0
      %2660 = vmatpush1.msra.mxu0 0.0
      %2661 = vmatprep.subr.mxu0 0.0
      %2662 = vmatpush1.msra.mxu0 0.0
      %2663 = vmatprep.subr.mxu0 0.0
      %2664 = vmatpush1.msra.mxu0 0.0
      %2665 = vmatprep.subr.mxu0 0.0
      %2666 = vmatpush1.msra.mxu0 0.0
      %2667 = vmatprep.subr.mxu0 0.0
      %2668 = vmatpush1.msra.mxu0 0.0
      %2669 = vmatprep.subr.mxu0 0.0
      %2670 = vmatpush1.msra.mxu0 0.0
      %2671 = vmatprep.subr.mxu0 0.0
      %2672 = vmatpush1.msra.mxu0 0.0
      %2673 = vmatprep.subr.mxu0 0.0
      %2674 = vmatpush1.msra.mxu0 0.0
      %2675 = vmatprep.subr.mxu0 0.0
      %2676 = vmatpush1.msra.mxu0 0.0
      %2677 = vmatprep.subr.mxu0 0.0
      %2678 = vmatpush1.msra.mxu0 0.0
      %2679 = vmatprep.subr.mxu0 0.0
      %2680 = vmatpush1.msra.mxu0 0.0
      %2681 = vmatprep.subr.mxu0 0.0
      %2682 = vmatpush1.msra.mxu0 0.0
      %2683 = vmatprep.subr.mxu0 0.0
      %2684 = vmatpush1.msra.mxu0 0.0
      %2685 = vmatprep.subr.mxu0 0.0
      %2686 = vmatpush1.msra.mxu0 0.0
      %2687 = vmatprep.subr.mxu0 0.0
      %2688 = vmatpush1.msra.mxu0 0.0
      %2689 = vmatprep.subr.mxu0 0.0
      %2690 = vmatpush1.msra.mxu0 %v2579
      %2691 = vmatprep.subr.mxu0 0.0
      %2692 = vmatpush2.msra.mxu0 0.0
      %2693 = vmatprep.subr.mxu0 0.0
      %2694 = vmatpush2.msra.mxu0 0.0
      %2695 = vmatprep.subr.mxu0 0.0
      %2696 = vmatpush2.msra.mxu0 0.0
      %2697 = vmatprep.subr.mxu0 0.0
      %2698 = vmatpush2.msra.mxu0 0.0
      %2699 = vmatprep.subr.mxu0 0.0
      %2700 = vmatpush2.msra.mxu0 0.0
      %2701 = vmatprep.subr.mxu0 0.0
      %2702 = vmatpush2.msra.mxu0 0.0
      %2703 = vmatprep.subr.mxu0 0.0
      %2704 = vmatpush2.msra.mxu0 0.0
      %2705 = vmatprep.subr.mxu0 0.0
      %2706 = vmatpush2.msra.mxu0 0.0
      %2707 = vmatprep.subr.mxu0 0.0
      %2708 = vmatpush2.msra.mxu0 0.0
      %2709 = vmatprep.subr.mxu0 0.0
      %2710 = vmatpush2.msra.mxu0 0.0
      %2711 = vmatprep.subr.mxu0 0.0
      %2712 = vmatpush2.msra.mxu0 0.0
      %2713 = vmatprep.subr.mxu0 0.0
      %2714 = vmatpush2.msra.mxu0 0.0
      %2715 = vmatprep.subr.mxu0 0.0
      %2716 = vmatpush2.msra.mxu0 0.0
      %2717 = vmatprep.subr.mxu0 0.0
      %2718 = vmatpush2.msra.mxu0 0.0
      %2719 = vmatprep.subr.mxu0 0.0
      %2720 = vmatpush2.msra.mxu0 0.0
      %2721 = vmatprep.subr.mxu0 0.0
      %2722 = vmatpush2.msra.mxu0 0.0
      %2723 = vmatprep.mubr.f32.mxu0 0.0
      %2724 = vmatmul.mubr.f32.gmra.mxu0 %v2586
      %v2725 = vpop.f32.mrf.mxu0
      %v2726 = vadd.f32 0.0, %v2725
      %v2727 = vpop.f32.mrf.mxu0
      %2728 = vdwg.mxu0
      %v2729 = vadd.f32 %v2569, %v2655
      %v2730 = vadd.f32 %v2570, %v2657
      %v2731 = vadd.f32 %v2571, %v2726
      %s2732 = scalar_lea.vmem %s2, 40
      %v2733 = vld [vmem:[%s2732] sm:$0xff]
      %2734 = vrot.lane.b32.xlu0 %v1945, 109
      %v2735 = vpop.permute.xlu0 %2734
      %2736 = vrot.lane.b32.xlu0 %v1946, 109
      %v2737 = vpop.permute.xlu0 %2736
      %2738 = vrot.lane.b32.xlu0 %v1947, 109
      %v2739 = vpop.permute.xlu0 %2738
      %v2740 = vsel %vm1217, %v2735, %v2737
      %v2741 = vsel %vm1217, %v2737, %v2739
      %v2746 = vsel %vm437, %v2733, 0
      %2748 = vmatprep.subr.mxu0 0.0
      %2749 = vmatpush1.msra.mxu0 0.0
      %2750 = vmatprep.subr.mxu0 0.0
      %2751 = vmatpush1.msra.mxu0 0.0
      %2752 = vmatprep.subr.mxu0 0.0
      %2753 = vmatpush1.msra.mxu0 0.0
      %2754 = vmatprep.subr.mxu0 0.0
      %2755 = vmatpush1.msra.mxu0 0.0
      %2756 = vmatprep.subr.mxu0 0.0
      %2757 = vmatpush1.msra.mxu0 0.0
      %2758 = vmatprep.subr.mxu0 0.0
      %2759 = vmatpush1.msra.mxu0 0.0
      %2760 = vmatprep.subr.mxu0 0.0
      %2761 = vmatpush1.msra.mxu0 0.0
      %2762 = vmatprep.subr.mxu0 0.0
      %2763 = vmatpush1.msra.mxu0 0.0
      %2764 = vmatprep.subr.mxu0 0.0
      %2765 = vmatpush1.msra.mxu0 0.0
      %2766 = vmatprep.subr.mxu0 0.0
      %2767 = vmatpush1.msra.mxu0 0.0
      %2768 = vmatprep.subr.mxu0 0.0
      %2769 = vmatpush1.msra.mxu0 0.0
      %2770 = vmatprep.subr.mxu0 0.0
      %2771 = vmatpush1.msra.mxu0 0.0
      %2772 = vmatprep.subr.mxu0 0.0
      %2773 = vmatpush1.msra.mxu0 0.0
      %2774 = vmatprep.subr.mxu0 0.0
      %2775 = vmatpush1.msra.mxu0 0.0
      %2776 = vmatprep.subr.mxu0 0.0
      %2777 = vmatpush1.msra.mxu0 0.0
      %2778 = vmatprep.subr.mxu0 %v2741
      %2779 = vmatpush1.msra.mxu0 %v2740
      %2780 = vmatprep.subr.mxu0 0.0
      %2781 = vmatpush2.msra.mxu0 0.0
      %2782 = vmatprep.subr.mxu0 0.0
      %2783 = vmatpush2.msra.mxu0 0.0
      %2784 = vmatprep.subr.mxu0 0.0
      %2785 = vmatpush2.msra.mxu0 0.0
      %2786 = vmatprep.subr.mxu0 0.0
      %2787 = vmatpush2.msra.mxu0 0.0
      %2788 = vmatprep.subr.mxu0 0.0
      %2789 = vmatpush2.msra.mxu0 0.0
      %2790 = vmatprep.subr.mxu0 0.0
      %2791 = vmatpush2.msra.mxu0 0.0
      %2792 = vmatprep.subr.mxu0 0.0
      %2793 = vmatpush2.msra.mxu0 0.0
      %2794 = vmatprep.subr.mxu0 0.0
      %2795 = vmatpush2.msra.mxu0 0.0
      %2796 = vmatprep.subr.mxu0 0.0
      %2797 = vmatpush2.msra.mxu0 0.0
      %2798 = vmatprep.subr.mxu0 0.0
      %2799 = vmatpush2.msra.mxu0 0.0
      %2800 = vmatprep.subr.mxu0 0.0
      %2801 = vmatpush2.msra.mxu0 0.0
      %2802 = vmatprep.subr.mxu0 0.0
      %2803 = vmatpush2.msra.mxu0 0.0
      %2804 = vmatprep.subr.mxu0 0.0
      %2805 = vmatpush2.msra.mxu0 0.0
      %2806 = vmatprep.subr.mxu0 0.0
      %2807 = vmatpush2.msra.mxu0 0.0
      %2808 = vmatprep.subr.mxu0 0.0
      %2809 = vmatpush2.msra.mxu0 0.0
      %2810 = vmatprep.subr.mxu0 0.0
      %2811 = vmatpush2.msra.mxu0 0.0
      %2812 = vmatprep.mubr.f32.mxu0 0.0
      %2813 = vmatmul.mubr.f32.gmra.mxu0 %v2746
      %v2814 = vpop.f32.mrf.mxu0
      %v2815 = vadd.f32 0.0, %v2814
      %v2816 = vpop.f32.mrf.mxu0
      %v2817 = vadd.f32 0.0, %v2816
      %2818 = vdwg.mxu0
      %2819 = vmatprep.subr.mxu0 0.0
      %2820 = vmatpush1.msra.mxu0 0.0
      %2821 = vmatprep.subr.mxu0 0.0
      %2822 = vmatpush1.msra.mxu0 0.0
      %2823 = vmatprep.subr.mxu0 0.0
      %2824 = vmatpush1.msra.mxu0 0.0
      %2825 = vmatprep.subr.mxu0 0.0
      %2826 = vmatpush1.msra.mxu0 0.0
      %2827 = vmatprep.subr.mxu0 0.0
      %2828 = vmatpush1.msra.mxu0 0.0
      %2829 = vmatprep.subr.mxu0 0.0
      %2830 = vmatpush1.msra.mxu0 0.0
      %2831 = vmatprep.subr.mxu0 0.0
      %2832 = vmatpush1.msra.mxu0 0.0
      %2833 = vmatprep.subr.mxu0 0.0
      %2834 = vmatpush1.msra.mxu0 0.0
      %2835 = vmatprep.subr.mxu0 0.0
      %2836 = vmatpush1.msra.mxu0 0.0
      %2837 = vmatprep.subr.mxu0 0.0
      %2838 = vmatpush1.msra.mxu0 0.0
      %2839 = vmatprep.subr.mxu0 0.0
      %2840 = vmatpush1.msra.mxu0 0.0
      %2841 = vmatprep.subr.mxu0 0.0
      %2842 = vmatpush1.msra.mxu0 0.0
      %2843 = vmatprep.subr.mxu0 0.0
      %2844 = vmatpush1.msra.mxu0 0.0
      %2845 = vmatprep.subr.mxu0 0.0
      %2846 = vmatpush1.msra.mxu0 0.0
      %2847 = vmatprep.subr.mxu0 0.0
      %2848 = vmatpush1.msra.mxu0 0.0
      %2849 = vmatprep.subr.mxu0 0.0
      %2850 = vmatpush1.msra.mxu0 %v2739
      %2851 = vmatprep.subr.mxu0 0.0
      %2852 = vmatpush2.msra.mxu0 0.0
      %2853 = vmatprep.subr.mxu0 0.0
      %2854 = vmatpush2.msra.mxu0 0.0
      %2855 = vmatprep.subr.mxu0 0.0
      %2856 = vmatpush2.msra.mxu0 0.0
      %2857 = vmatprep.subr.mxu0 0.0
      %2858 = vmatpush2.msra.mxu0 0.0
      %2859 = vmatprep.subr.mxu0 0.0
      %2860 = vmatpush2.msra.mxu0 0.0
      %2861 = vmatprep.subr.mxu0 0.0
      %2862 = vmatpush2.msra.mxu0 0.0
      %2863 = vmatprep.subr.mxu0 0.0
      %2864 = vmatpush2.msra.mxu0 0.0
      %2865 = vmatprep.subr.mxu0 0.0
      %2866 = vmatpush2.msra.mxu0 0.0
      %2867 = vmatprep.subr.mxu0 0.0
      %2868 = vmatpush2.msra.mxu0 0.0
      %2869 = vmatprep.subr.mxu0 0.0
      %2870 = vmatpush2.msra.mxu0 0.0
      %2871 = vmatprep.subr.mxu0 0.0
      %2872 = vmatpush2.msra.mxu0 0.0
      %2873 = vmatprep.subr.mxu0 0.0
      %2874 = vmatpush2.msra.mxu0 0.0
      %2875 = vmatprep.subr.mxu0 0.0
      %2876 = vmatpush2.msra.mxu0 0.0
      %2877 = vmatprep.subr.mxu0 0.0
      %2878 = vmatpush2.msra.mxu0 0.0
      %2879 = vmatprep.subr.mxu0 0.0
      %2880 = vmatpush2.msra.mxu0 0.0
      %2881 = vmatprep.subr.mxu0 0.0
      %2882 = vmatpush2.msra.mxu0 0.0
      %2883 = vmatprep.mubr.f32.mxu0 0.0
      %2884 = vmatmul.mubr.f32.gmra.mxu0 %v2746
      %v2885 = vpop.f32.mrf.mxu0
      %v2886 = vadd.f32 0.0, %v2885
      %v2887 = vpop.f32.mrf.mxu0
      %2888 = vdwg.mxu0
      %v2889 = vadd.f32 %v2729, %v2815
      %v2890 = vadd.f32 %v2730, %v2817
      %v2891 = vadd.f32 %v2731, %v2886
      %s2892 = scalar_lea.vmem %s2, 48
      %v2893 = vld [vmem:[%s2892] sm:$0xff]
      %2894 = vrot.lane.b32.xlu0 %v1945, 94
      %v2895 = vpop.permute.xlu0 %2894
      %2896 = vrot.lane.b32.xlu0 %v1946, 94
      %v2897 = vpop.permute.xlu0 %2896
      %2898 = vrot.lane.b32.xlu0 %v1947, 94
      %v2899 = vpop.permute.xlu0 %2898
      %v2900 = vsel %vm1378, %v2895, %v2897
      %v2901 = vsel %vm1378, %v2897, %v2899
      %v2906 = vsel %vm437, %v2893, 0
      %2908 = vmatprep.subr.mxu0 0.0
      %2909 = vmatpush1.msra.mxu0 0.0
      %2910 = vmatprep.subr.mxu0 0.0
      %2911 = vmatpush1.msra.mxu0 0.0
      %2912 = vmatprep.subr.mxu0 0.0
      %2913 = vmatpush1.msra.mxu0 0.0
      %2914 = vmatprep.subr.mxu0 0.0
      %2915 = vmatpush1.msra.mxu0 0.0
      %2916 = vmatprep.subr.mxu0 0.0
      %2917 = vmatpush1.msra.mxu0 0.0
      %2918 = vmatprep.subr.mxu0 0.0
      %2919 = vmatpush1.msra.mxu0 0.0
      %2920 = vmatprep.subr.mxu0 0.0
      %2921 = vmatpush1.msra.mxu0 0.0
      %2922 = vmatprep.subr.mxu0 0.0
      %2923 = vmatpush1.msra.mxu0 0.0
      %2924 = vmatprep.subr.mxu0 0.0
      %2925 = vmatpush1.msra.mxu0 0.0
      %2926 = vmatprep.subr.mxu0 0.0
      %2927 = vmatpush1.msra.mxu0 0.0
      %2928 = vmatprep.subr.mxu0 0.0
      %2929 = vmatpush1.msra.mxu0 0.0
      %2930 = vmatprep.subr.mxu0 0.0
      %2931 = vmatpush1.msra.mxu0 0.0
      %2932 = vmatprep.subr.mxu0 0.0
      %2933 = vmatpush1.msra.mxu0 0.0
      %2934 = vmatprep.subr.mxu0 0.0
      %2935 = vmatpush1.msra.mxu0 0.0
      %2936 = vmatprep.subr.mxu0 0.0
      %2937 = vmatpush1.msra.mxu0 0.0
      %2938 = vmatprep.subr.mxu0 %v2901
      %2939 = vmatpush1.msra.mxu0 %v2900
      %2940 = vmatprep.subr.mxu0 0.0
      %2941 = vmatpush2.msra.mxu0 0.0
      %2942 = vmatprep.subr.mxu0 0.0
      %2943 = vmatpush2.msra.mxu0 0.0
      %2944 = vmatprep.subr.mxu0 0.0
      %2945 = vmatpush2.msra.mxu0 0.0
      %2946 = vmatprep.subr.mxu0 0.0
      %2947 = vmatpush2.msra.mxu0 0.0
      %2948 = vmatprep.subr.mxu0 0.0
      %2949 = vmatpush2.msra.mxu0 0.0
      %2950 = vmatprep.subr.mxu0 0.0
      %2951 = vmatpush2.msra.mxu0 0.0
      %2952 = vmatprep.subr.mxu0 0.0
      %2953 = vmatpush2.msra.mxu0 0.0
      %2954 = vmatprep.subr.mxu0 0.0
      %2955 = vmatpush2.msra.mxu0 0.0
      %2956 = vmatprep.subr.mxu0 0.0
      %2957 = vmatpush2.msra.mxu0 0.0
      %2958 = vmatprep.subr.mxu0 0.0
      %2959 = vmatpush2.msra.mxu0 0.0
      %2960 = vmatprep.subr.mxu0 0.0
      %2961 = vmatpush2.msra.mxu0 0.0
      %2962 = vmatprep.subr.mxu0 0.0
      %2963 = vmatpush2.msra.mxu0 0.0
      %2964 = vmatprep.subr.mxu0 0.0
      %2965 = vmatpush2.msra.mxu0 0.0
      %2966 = vmatprep.subr.mxu0 0.0
      %2967 = vmatpush2.msra.mxu0 0.0
      %2968 = vmatprep.subr.mxu0 0.0
      %2969 = vmatpush2.msra.mxu0 0.0
      %2970 = vmatprep.subr.mxu0 0.0
      %2971 = vmatpush2.msra.mxu0 0.0
      %2972 = vmatprep.mubr.f32.mxu0 0.0
      %2973 = vmatmul.mubr.f32.gmra.mxu0 %v2906
      %v2974 = vpop.f32.mrf.mxu0
      %v2975 = vadd.f32 0.0, %v2974
      %v2976 = vpop.f32.mrf.mxu0
      %v2977 = vadd.f32 0.0, %v2976
      %2978 = vdwg.mxu0
      %2979 = vmatprep.subr.mxu0 0.0
      %2980 = vmatpush1.msra.mxu0 0.0
      %2981 = vmatprep.subr.mxu0 0.0
      %2982 = vmatpush1.msra.mxu0 0.0
      %2983 = vmatprep.subr.mxu0 0.0
      %2984 = vmatpush1.msra.mxu0 0.0
      %2985 = vmatprep.subr.mxu0 0.0
      %2986 = vmatpush1.msra.mxu0 0.0
      %2987 = vmatprep.subr.mxu0 0.0
      %2988 = vmatpush1.msra.mxu0 0.0
      %2989 = vmatprep.subr.mxu0 0.0
      %2990 = vmatpush1.msra.mxu0 0.0
      %2991 = vmatprep.subr.mxu0 0.0
      %2992 = vmatpush1.msra.mxu0 0.0
      %2993 = vmatprep.subr.mxu0 0.0
      %2994 = vmatpush1.msra.mxu0 0.0
      %2995 = vmatprep.subr.mxu0 0.0
      %2996 = vmatpush1.msra.mxu0 0.0
      %2997 = vmatprep.subr.mxu0 0.0
      %2998 = vmatpush1.msra.mxu0 0.0
      %2999 = vmatprep.subr.mxu0 0.0
      %3000 = vmatpush1.msra.mxu0 0.0
      %3001 = vmatprep.subr.mxu0 0.0
      %3002 = vmatpush1.msra.mxu0 0.0
      %3003 = vmatprep.subr.mxu0 0.0
      %3004 = vmatpush1.msra.mxu0 0.0
      %3005 = vmatprep.subr.mxu0 0.0
      %3006 = vmatpush1.msra.mxu0 0.0
      %3007 = vmatprep.subr.mxu0 0.0
      %3008 = vmatpush1.msra.mxu0 0.0
      %3009 = vmatprep.subr.mxu0 0.0
      %3010 = vmatpush1.msra.mxu0 %v2899
      %3011 = vmatprep.subr.mxu0 0.0
      %3012 = vmatpush2.msra.mxu0 0.0
      %3013 = vmatprep.subr.mxu0 0.0
      %3014 = vmatpush2.msra.mxu0 0.0
      %3015 = vmatprep.subr.mxu0 0.0
      %3016 = vmatpush2.msra.mxu0 0.0
      %3017 = vmatprep.subr.mxu0 0.0
      %3018 = vmatpush2.msra.mxu0 0.0
      %3019 = vmatprep.subr.mxu0 0.0
      %3020 = vmatpush2.msra.mxu0 0.0
      %3021 = vmatprep.subr.mxu0 0.0
      %3022 = vmatpush2.msra.mxu0 0.0
      %3023 = vmatprep.subr.mxu0 0.0
      %3024 = vmatpush2.msra.mxu0 0.0
      %3025 = vmatprep.subr.mxu0 0.0
      %3026 = vmatpush2.msra.mxu0 0.0
      %3027 = vmatprep.subr.mxu0 0.0
      %3028 = vmatpush2.msra.mxu0 0.0
      %3029 = vmatprep.subr.mxu0 0.0
      %3030 = vmatpush2.msra.mxu0 0.0
      %3031 = vmatprep.subr.mxu0 0.0
      %3032 = vmatpush2.msra.mxu0 0.0
      %3033 = vmatprep.subr.mxu0 0.0
      %3034 = vmatpush2.msra.mxu0 0.0
      %3035 = vmatprep.subr.mxu0 0.0
      %3036 = vmatpush2.msra.mxu0 0.0
      %3037 = vmatprep.subr.mxu0 0.0
      %3038 = vmatpush2.msra.mxu0 0.0
      %3039 = vmatprep.subr.mxu0 0.0
      %3040 = vmatpush2.msra.mxu0 0.0
      %3041 = vmatprep.subr.mxu0 0.0
      %3042 = vmatpush2.msra.mxu0 0.0
      %3043 = vmatprep.mubr.f32.mxu0 0.0
      %3044 = vmatmul.mubr.f32.gmra.mxu0 %v2906
      %v3045 = vpop.f32.mrf.mxu0
      %v3046 = vadd.f32 0.0, %v3045
      %v3047 = vpop.f32.mrf.mxu0
      %3048 = vdwg.mxu0
      %v3049 = vadd.f32 %v2889, %v2975
      %v3050 = vadd.f32 %v2890, %v2977
      %v3051 = vadd.f32 %v2891, %v3046
      %s3052 = scalar_lea.vmem %s2, 56
      %v3053 = vld [vmem:[%s3052] sm:$0xff]
      %3054 = vrot.lane.b32.xlu0 %v1945, 93
      %v3055 = vpop.permute.xlu0 %3054
      %3056 = vrot.lane.b32.xlu0 %v1946, 93
      %v3057 = vpop.permute.xlu0 %3056
      %3058 = vrot.lane.b32.xlu0 %v1947, 93
      %v3059 = vpop.permute.xlu0 %3058
      %v3060 = vsel %vm1539, %v3055, %v3057
      %v3061 = vsel %vm1539, %v3057, %v3059
      %v3066 = vsel %vm437, %v3053, 0
      %3068 = vmatprep.subr.mxu0 0.0
      %3069 = vmatpush1.msra.mxu0 0.0
      %3070 = vmatprep.subr.mxu0 0.0
      %3071 = vmatpush1.msra.mxu0 0.0
      %3072 = vmatprep.subr.mxu0 0.0
      %3073 = vmatpush1.msra.mxu0 0.0
      %3074 = vmatprep.subr.mxu0 0.0
      %3075 = vmatpush1.msra.mxu0 0.0
      %3076 = vmatprep.subr.mxu0 0.0
      %3077 = vmatpush1.msra.mxu0 0.0
      %3078 = vmatprep.subr.mxu0 0.0
      %3079 = vmatpush1.msra.mxu0 0.0
      %3080 = vmatprep.subr.mxu0 0.0
      %3081 = vmatpush1.msra.mxu0 0.0
      %3082 = vmatprep.subr.mxu0 0.0
      %3083 = vmatpush1.msra.mxu0 0.0
      %3084 = vmatprep.subr.mxu0 0.0
      %3085 = vmatpush1.msra.mxu0 0.0
      %3086 = vmatprep.subr.mxu0 0.0
      %3087 = vmatpush1.msra.mxu0 0.0
      %3088 = vmatprep.subr.mxu0 0.0
      %3089 = vmatpush1.msra.mxu0 0.0
      %3090 = vmatprep.subr.mxu0 0.0
      %3091 = vmatpush1.msra.mxu0 0.0
      %3092 = vmatprep.subr.mxu0 0.0
      %3093 = vmatpush1.msra.mxu0 0.0
      %3094 = vmatprep.subr.mxu0 0.0
      %3095 = vmatpush1.msra.mxu0 0.0
      %3096 = vmatprep.subr.mxu0 0.0
      %3097 = vmatpush1.msra.mxu0 0.0
      %3098 = vmatprep.subr.mxu0 %v3061
      %3099 = vmatpush1.msra.mxu0 %v3060
      %3100 = vmatprep.subr.mxu0 0.0
      %3101 = vmatpush2.msra.mxu0 0.0
      %3102 = vmatprep.subr.mxu0 0.0
      %3103 = vmatpush2.msra.mxu0 0.0
      %3104 = vmatprep.subr.mxu0 0.0
      %3105 = vmatpush2.msra.mxu0 0.0
      %3106 = vmatprep.subr.mxu0 0.0
      %3107 = vmatpush2.msra.mxu0 0.0
      %3108 = vmatprep.subr.mxu0 0.0
      %3109 = vmatpush2.msra.mxu0 0.0
      %3110 = vmatprep.subr.mxu0 0.0
      %3111 = vmatpush2.msra.mxu0 0.0
      %3112 = vmatprep.subr.mxu0 0.0
      %3113 = vmatpush2.msra.mxu0 0.0
      %3114 = vmatprep.subr.mxu0 0.0
      %3115 = vmatpush2.msra.mxu0 0.0
      %3116 = vmatprep.subr.mxu0 0.0
      %3117 = vmatpush2.msra.mxu0 0.0
      %3118 = vmatprep.subr.mxu0 0.0
      %3119 = vmatpush2.msra.mxu0 0.0
      %3120 = vmatprep.subr.mxu0 0.0
      %3121 = vmatpush2.msra.mxu0 0.0
      %3122 = vmatprep.subr.mxu0 0.0
      %3123 = vmatpush2.msra.mxu0 0.0
      %3124 = vmatprep.subr.mxu0 0.0
      %3125 = vmatpush2.msra.mxu0 0.0
      %3126 = vmatprep.subr.mxu0 0.0
      %3127 = vmatpush2.msra.mxu0 0.0
      %3128 = vmatprep.subr.mxu0 0.0
      %3129 = vmatpush2.msra.mxu0 0.0
      %3130 = vmatprep.subr.mxu0 0.0
      %3131 = vmatpush2.msra.mxu0 0.0
      %3132 = vmatprep.mubr.f32.mxu0 0.0
      %3133 = vmatmul.mubr.f32.gmra.mxu0 %v3066
      %v3134 = vpop.f32.mrf.mxu0
      %v3135 = vadd.f32 0.0, %v3134
      %v3136 = vpop.f32.mrf.mxu0
      %v3137 = vadd.f32 0.0, %v3136
      %3138 = vdwg.mxu0
      %3139 = vmatprep.subr.mxu0 0.0
      %3140 = vmatpush1.msra.mxu0 0.0
      %3141 = vmatprep.subr.mxu0 0.0
      %3142 = vmatpush1.msra.mxu0 0.0
      %3143 = vmatprep.subr.mxu0 0.0
      %3144 = vmatpush1.msra.mxu0 0.0
      %3145 = vmatprep.subr.mxu0 0.0
      %3146 = vmatpush1.msra.mxu0 0.0
      %3147 = vmatprep.subr.mxu0 0.0
      %3148 = vmatpush1.msra.mxu0 0.0
      %3149 = vmatprep.subr.mxu0 0.0
      %3150 = vmatpush1.msra.mxu0 0.0
      %3151 = vmatprep.subr.mxu0 0.0
      %3152 = vmatpush1.msra.mxu0 0.0
      %3153 = vmatprep.subr.mxu0 0.0
      %3154 = vmatpush1.msra.mxu0 0.0
      %3155 = vmatprep.subr.mxu0 0.0
      %3156 = vmatpush1.msra.mxu0 0.0
      %3157 = vmatprep.subr.mxu0 0.0
      %3158 = vmatpush1.msra.mxu0 0.0
      %3159 = vmatprep.subr.mxu0 0.0
      %3160 = vmatpush1.msra.mxu0 0.0
      %3161 = vmatprep.subr.mxu0 0.0
      %3162 = vmatpush1.msra.mxu0 0.0
      %3163 = vmatprep.subr.mxu0 0.0
      %3164 = vmatpush1.msra.mxu0 0.0
      %3165 = vmatprep.subr.mxu0 0.0
      %3166 = vmatpush1.msra.mxu0 0.0
      %3167 = vmatprep.subr.mxu0 0.0
      %3168 = vmatpush1.msra.mxu0 0.0
      %3169 = vmatprep.subr.mxu0 0.0
      %3170 = vmatpush1.msra.mxu0 %v3059
      %3171 = vmatprep.subr.mxu0 0.0
      %3172 = vmatpush2.msra.mxu0 0.0
      %3173 = vmatprep.subr.mxu0 0.0
      %3174 = vmatpush2.msra.mxu0 0.0
      %3175 = vmatprep.subr.mxu0 0.0
      %3176 = vmatpush2.msra.mxu0 0.0
      %3177 = vmatprep.subr.mxu0 0.0
      %3178 = vmatpush2.msra.mxu0 0.0
      %3179 = vmatprep.subr.mxu0 0.0
      %3180 = vmatpush2.msra.mxu0 0.0
      %3181 = vmatprep.subr.mxu0 0.0
      %3182 = vmatpush2.msra.mxu0 0.0
      %3183 = vmatprep.subr.mxu0 0.0
      %3184 = vmatpush2.msra.mxu0 0.0
      %3185 = vmatprep.subr.mxu0 0.0
      %3186 = vmatpush2.msra.mxu0 0.0
      %3187 = vmatprep.subr.mxu0 0.0
      %3188 = vmatpush2.msra.mxu0 0.0
      %3189 = vmatprep.subr.mxu0 0.0
      %3190 = vmatpush2.msra.mxu0 0.0
      %3191 = vmatprep.subr.mxu0 0.0
      %3192 = vmatpush2.msra.mxu0 0.0
      %3193 = vmatprep.subr.mxu0 0.0
      %3194 = vmatpush2.msra.mxu0 0.0
      %3195 = vmatprep.subr.mxu0 0.0
      %3196 = vmatpush2.msra.mxu0 0.0
      %3197 = vmatprep.subr.mxu0 0.0
      %3198 = vmatpush2.msra.mxu0 0.0
      %3199 = vmatprep.subr.mxu0 0.0
      %3200 = vmatpush2.msra.mxu0 0.0
      %3201 = vmatprep.subr.mxu0 0.0
      %3202 = vmatpush2.msra.mxu0 0.0
      %3203 = vmatprep.mubr.f32.mxu0 0.0
      %3204 = vmatmul.mubr.f32.gmra.mxu0 %v3066
      %v3205 = vpop.f32.mrf.mxu0
      %v3206 = vadd.f32 0.0, %v3205
      %v3207 = vpop.f32.mrf.mxu0
      %3208 = vdwg.mxu0
      %v3209 = vadd.f32 %v3049, %v3135
      %v3210 = vadd.f32 %v3050, %v3137
      %v3211 = vadd.f32 %v3051, %v3206
      %s3212 = scalar_lea.vmem %s2, 64
      %v3213 = vld [vmem:[%s3212] sm:$0xff]
      %3214 = vrot.lane.b32.xlu0 %v1945, 92
      %v3215 = vpop.permute.xlu0 %3214
      %3216 = vrot.lane.b32.xlu0 %v1946, 92
      %v3217 = vpop.permute.xlu0 %3216
      %3218 = vrot.lane.b32.xlu0 %v1947, 92
      %v3219 = vpop.permute.xlu0 %3218
      %v3220 = vsel %vm1700, %v3215, %v3217
      %v3221 = vsel %vm1700, %v3217, %v3219
      %v3226 = vsel %vm437, %v3213, 0
      %3228 = vmatprep.subr.mxu0 0.0
      %3229 = vmatpush1.msra.mxu0 0.0
      %3230 = vmatprep.subr.mxu0 0.0
      %3231 = vmatpush1.msra.mxu0 0.0
      %3232 = vmatprep.subr.mxu0 0.0
      %3233 = vmatpush1.msra.mxu0 0.0
      %3234 = vmatprep.subr.mxu0 0.0
      %3235 = vmatpush1.msra.mxu0 0.0
      %3236 = vmatprep.subr.mxu0 0.0
      %3237 = vmatpush1.msra.mxu0 0.0
      %3238 = vmatprep.subr.mxu0 0.0
      %3239 = vmatpush1.msra.mxu0 0.0
      %3240 = vmatprep.subr.mxu0 0.0
      %3241 = vmatpush1.msra.mxu0 0.0
      %3242 = vmatprep.subr.mxu0 0.0
      %3243 = vmatpush1.msra.mxu0 0.0
      %3244 = vmatprep.subr.mxu0 0.0
      %3245 = vmatpush1.msra.mxu0 0.0
      %3246 = vmatprep.subr.mxu0 0.0
      %3247 = vmatpush1.msra.mxu0 0.0
      %3248 = vmatprep.subr.mxu0 0.0
      %3249 = vmatpush1.msra.mxu0 0.0
      %3250 = vmatprep.subr.mxu0 0.0
      %3251 = vmatpush1.msra.mxu0 0.0
      %3252 = vmatprep.subr.mxu0 0.0
      %3253 = vmatpush1.msra.mxu0 0.0
      %3254 = vmatprep.subr.mxu0 0.0
      %3255 = vmatpush1.msra.mxu0 0.0
      %3256 = vmatprep.subr.mxu0 0.0
      %3257 = vmatpush1.msra.mxu0 0.0
      %3258 = vmatprep.subr.mxu0 %v3221
      %3259 = vmatpush1.msra.mxu0 %v3220
      %3260 = vmatprep.subr.mxu0 0.0
      %3261 = vmatpush2.msra.mxu0 0.0
      %3262 = vmatprep.subr.mxu0 0.0
      %3263 = vmatpush2.msra.mxu0 0.0
      %3264 = vmatprep.subr.mxu0 0.0
      %3265 = vmatpush2.msra.mxu0 0.0
      %3266 = vmatprep.subr.mxu0 0.0
      %3267 = vmatpush2.msra.mxu0 0.0
      %3268 = vmatprep.subr.mxu0 0.0
      %3269 = vmatpush2.msra.mxu0 0.0
      %3270 = vmatprep.subr.mxu0 0.0
      %3271 = vmatpush2.msra.mxu0 0.0
      %3272 = vmatprep.subr.mxu0 0.0
      %3273 = vmatpush2.msra.mxu0 0.0
      %3274 = vmatprep.subr.mxu0 0.0
      %3275 = vmatpush2.msra.mxu0 0.0
      %3276 = vmatprep.subr.mxu0 0.0
      %3277 = vmatpush2.msra.mxu0 0.0
      %3278 = vmatprep.subr.mxu0 0.0
      %3279 = vmatpush2.msra.mxu0 0.0
      %3280 = vmatprep.subr.mxu0 0.0
      %3281 = vmatpush2.msra.mxu0 0.0
      %3282 = vmatprep.subr.mxu0 0.0
      %3283 = vmatpush2.msra.mxu0 0.0
      %3284 = vmatprep.subr.mxu0 0.0
      %3285 = vmatpush2.msra.mxu0 0.0
      %3286 = vmatprep.subr.mxu0 0.0
      %3287 = vmatpush2.msra.mxu0 0.0
      %3288 = vmatprep.subr.mxu0 0.0
      %3289 = vmatpush2.msra.mxu0 0.0
      %3290 = vmatprep.subr.mxu0 0.0
      %3291 = vmatpush2.msra.mxu0 0.0
      %3292 = vmatprep.mubr.f32.mxu0 0.0
      %3293 = vmatmul.mubr.f32.gmra.mxu0 %v3226
      %v3294 = vpop.f32.mrf.mxu0
      %v3295 = vadd.f32 0.0, %v3294
      %v3296 = vpop.f32.mrf.mxu0
      %v3297 = vadd.f32 0.0, %v3296
      %3298 = vdwg.mxu0
      %3299 = vmatprep.subr.mxu0 0.0
      %3300 = vmatpush1.msra.mxu0 0.0
      %3301 = vmatprep.subr.mxu0 0.0
      %3302 = vmatpush1.msra.mxu0 0.0
      %3303 = vmatprep.subr.mxu0 0.0
      %3304 = vmatpush1.msra.mxu0 0.0
      %3305 = vmatprep.subr.mxu0 0.0
      %3306 = vmatpush1.msra.mxu0 0.0
      %3307 = vmatprep.subr.mxu0 0.0
      %3308 = vmatpush1.msra.mxu0 0.0
      %3309 = vmatprep.subr.mxu0 0.0
      %3310 = vmatpush1.msra.mxu0 0.0
      %3311 = vmatprep.subr.mxu0 0.0
      %3312 = vmatpush1.msra.mxu0 0.0
      %3313 = vmatprep.subr.mxu0 0.0
      %3314 = vmatpush1.msra.mxu0 0.0
      %3315 = vmatprep.subr.mxu0 0.0
      %3316 = vmatpush1.msra.mxu0 0.0
      %3317 = vmatprep.subr.mxu0 0.0
      %3318 = vmatpush1.msra.mxu0 0.0
      %3319 = vmatprep.subr.mxu0 0.0
      %3320 = vmatpush1.msra.mxu0 0.0
      %3321 = vmatprep.subr.mxu0 0.0
      %3322 = vmatpush1.msra.mxu0 0.0
      %3323 = vmatprep.subr.mxu0 0.0
      %3324 = vmatpush1.msra.mxu0 0.0
      %3325 = vmatprep.subr.mxu0 0.0
      %3326 = vmatpush1.msra.mxu0 0.0
      %3327 = vmatprep.subr.mxu0 0.0
      %3328 = vmatpush1.msra.mxu0 0.0
      %3329 = vmatprep.subr.mxu0 0.0
      %3330 = vmatpush1.msra.mxu0 %v3219
      %3331 = vmatprep.subr.mxu0 0.0
      %3332 = vmatpush2.msra.mxu0 0.0
      %3333 = vmatprep.subr.mxu0 0.0
      %3334 = vmatpush2.msra.mxu0 0.0
      %3335 = vmatprep.subr.mxu0 0.0
      %3336 = vmatpush2.msra.mxu0 0.0
      %3337 = vmatprep.subr.mxu0 0.0
      %3338 = vmatpush2.msra.mxu0 0.0
      %3339 = vmatprep.subr.mxu0 0.0
      %3340 = vmatpush2.msra.mxu0 0.0
      %3341 = vmatprep.subr.mxu0 0.0
      %3342 = vmatpush2.msra.mxu0 0.0
      %3343 = vmatprep.subr.mxu0 0.0
      %3344 = vmatpush2.msra.mxu0 0.0
      %3345 = vmatprep.subr.mxu0 0.0
      %3346 = vmatpush2.msra.mxu0 0.0
      %3347 = vmatprep.subr.mxu0 0.0
      %3348 = vmatpush2.msra.mxu0 0.0
      %3349 = vmatprep.subr.mxu0 0.0
      %3350 = vmatpush2.msra.mxu0 0.0
      %3351 = vmatprep.subr.mxu0 0.0
      %3352 = vmatpush2.msra.mxu0 0.0
      %3353 = vmatprep.subr.mxu0 0.0
      %3354 = vmatpush2.msra.mxu0 0.0
      %3355 = vmatprep.subr.mxu0 0.0
      %3356 = vmatpush2.msra.mxu0 0.0
      %3357 = vmatprep.subr.mxu0 0.0
      %3358 = vmatpush2.msra.mxu0 0.0
      %3359 = vmatprep.subr.mxu0 0.0
      %3360 = vmatpush2.msra.mxu0 0.0
      %3361 = vmatprep.subr.mxu0 0.0
      %3362 = vmatpush2.msra.mxu0 0.0
      %3363 = vmatprep.mubr.f32.mxu0 0.0
      %3364 = vmatmul.mubr.f32.gmra.mxu0 %v3226
      %v3365 = vpop.f32.mrf.mxu0
      %v3366 = vadd.f32 0.0, %v3365
      %v3367 = vpop.f32.mrf.mxu0
      %3368 = vdwg.mxu0
      %v3369 = vadd.f32 %v3209, %v3295
      %v3370 = vadd.f32 %v3210, %v3297
      %v3371 = vadd.f32 %v3211, %v3366
      %v3372 = vld [vmem:[%s10] sm:$0xff]
      %v3373 = vld [vmem:[%s10 + $0x8] sm:$0xff]
      %v3374 = vld [vmem:[%s10 + $0x10] sm:$0xff]
      %v3375 = vld [vmem:[%s10 + $0x18] sm:$0xff]
      %v3376 = vld [vmem:[%s10 + $0x20] sm:$0xff]
      %v3377 = vld [vmem:[%s10 + $0x28] sm:$0xff]
      %v3378 = vld [vmem:[%s10 + $0x30] sm:$0xff]
      %v3379 = vld [vmem:[%s10 + $0x38] sm:$0xff]
      %v3380 = vld [vmem:[%s10 + $0x40] sm:$0xff]
      %v3381 = vld [vmem:[%s10 + $0x48] sm:$0xff]
      %v3382 = vld [vmem:[%s10 + $0x50] sm:$0xff]
      %v3383 = vld [vmem:[%s10 + $0x58] sm:$0xff]
      %v3384 = vld [vmem:[%s10 + $0x60] sm:$0xff]
      %v3385 = vld [vmem:[%s10 + $0x68] sm:$0xff]
      %v3386 = vld [vmem:[%s10 + $0x70] sm:$0xff]
      %v3387 = vld [vmem:[%s10 + $0x78] sm:$0xff]
      %v3388 = vld [vmem:[%s10 + $0x80] sm:$0xff]
      %v3389 = vld [vmem:[%s10 + $0x88] sm:$0xff]
      %v3390 = vld [vmem:[%s10 + $0x90] sm:$0xff]
      %v3391 = vld [vmem:[%s10 + $0x98] sm:$0xff]
      %v3392 = vld [vmem:[%s10 + $0xa0] sm:$0xff]
      %v3393 = vld [vmem:[%s10 + $0xa8] sm:$0xff]
      %v3394 = vld [vmem:[%s10 + $0xb0] sm:$0xff]
      %v3395 = vld [vmem:[%s10 + $0xb8] sm:$0xff]
      %v3396 = vld [vmem:[%s10 + $0xc0] sm:$0xff]
      %v3397 = vld [vmem:[%s10 + $0xc8] sm:$0xff]
      %v3398 = vld [vmem:[%s10 + $0xd0] sm:$0xff]
      %v3399 = vld [vmem:[%s10 + $0xd8] sm:$0xff]
      %v3400 = vld [vmem:[%s10 + $0xe0] sm:$0xff]
      %v3401 = vld [vmem:[%s10 + $0xe8] sm:$0xff]
      %v3402 = vld [vmem:[%s10 + $0xf0] sm:$0xff]
      %v3403 = vld [vmem:[%s10 + $0xf8] sm:$0xff]
      %v3404 = vld [vmem:[%s10 + $0x100] sm:$0xff]
      %v3405 = vld [vmem:[%s10 + $0x108] sm:$0xff]
      %v3406 = vld [vmem:[%s5] sm:$0xff]
      %3408 = vset.pattern.permute.xlu0 0
      %3409 = vperm.xlu0 %3408, %v3406
      %v3410 = vpop.permute.xlu0 %3409
      %vm3412 = vcmask 130048
      %v3414 = vsel %vm3412, %v3371, 0
      %3416 = vmatprep.subr.mxu0 0.0
      %3417 = vmatpush1.msra.mxu0 %v3387
      %3418 = vmatprep.subr.mxu0 0.0
      %3419 = vmatpush1.msra.mxu0 %v3386
      %3420 = vmatprep.subr.mxu0 0.0
      %3421 = vmatpush1.msra.mxu0 %v3385
      %3422 = vmatprep.subr.mxu0 0.0
      %3423 = vmatpush1.msra.mxu0 %v3384
      %3424 = vmatprep.subr.mxu0 0.0
      %3425 = vmatpush1.msra.mxu0 %v3383
      %3426 = vmatprep.subr.mxu0 0.0
      %3427 = vmatpush1.msra.mxu0 %v3382
      %3428 = vmatprep.subr.mxu0 0.0
      %3429 = vmatpush1.msra.mxu0 %v3381
      %3430 = vmatprep.subr.mxu0 0.0
      %3431 = vmatpush1.msra.mxu0 %v3380
      %3432 = vmatprep.subr.mxu0 0.0
      %3433 = vmatpush1.msra.mxu0 %v3379
      %3434 = vmatprep.subr.mxu0 0.0
      %3435 = vmatpush1.msra.mxu0 %v3378
      %3436 = vmatprep.subr.mxu0 0.0
      %3437 = vmatpush1.msra.mxu0 %v3377
      %3438 = vmatprep.subr.mxu0 0.0
      %3439 = vmatpush1.msra.mxu0 %v3376
      %3440 = vmatprep.subr.mxu0 0.0
      %3441 = vmatpush1.msra.mxu0 %v3375
      %3442 = vmatprep.subr.mxu0 0.0
      %3443 = vmatpush1.msra.mxu0 %v3374
      %3444 = vmatprep.subr.mxu0 0.0
      %3445 = vmatpush1.msra.mxu0 %v3373
      %3446 = vmatprep.subr.mxu0 0.0
      %3447 = vmatpush1.msra.mxu0 %v3372
      %3448 = vmatprep.subr.mxu0 0.0
      %3449 = vmatpush2.msra.mxu0 %v3403
      %3450 = vmatprep.subr.mxu0 0.0
      %3451 = vmatpush2.msra.mxu0 %v3402
      %3452 = vmatprep.subr.mxu0 0.0
      %3453 = vmatpush2.msra.mxu0 %v3401
      %3454 = vmatprep.subr.mxu0 0.0
      %3455 = vmatpush2.msra.mxu0 %v3400
      %3456 = vmatprep.subr.mxu0 0.0
      %3457 = vmatpush2.msra.mxu0 %v3399
      %3458 = vmatprep.subr.mxu0 0.0
      %3459 = vmatpush2.msra.mxu0 %v3398
      %3460 = vmatprep.subr.mxu0 0.0
      %3461 = vmatpush2.msra.mxu0 %v3397
      %3462 = vmatprep.subr.mxu0 0.0
      %3463 = vmatpush2.msra.mxu0 %v3396
      %3464 = vmatprep.subr.mxu0 0.0
      %3465 = vmatpush2.msra.mxu0 %v3395
      %3466 = vmatprep.subr.mxu0 0.0
      %3467 = vmatpush2.msra.mxu0 %v3394
      %3468 = vmatprep.subr.mxu0 0.0
      %3469 = vmatpush2.msra.mxu0 %v3393
      %3470 = vmatprep.subr.mxu0 0.0
      %3471 = vmatpush2.msra.mxu0 %v3392
      %3472 = vmatprep.subr.mxu0 0.0
      %3473 = vmatpush2.msra.mxu0 %v3391
      %3474 = vmatprep.subr.mxu0 0.0
      %3475 = vmatpush2.msra.mxu0 %v3390
      %3476 = vmatprep.subr.mxu0 0.0
      %3477 = vmatpush2.msra.mxu0 %v3389
      %3478 = vmatprep.subr.mxu0 0.0
      %3479 = vmatpush2.msra.mxu0 %v3388
      %3480 = vmatprep.mubr.f32.mxu0 %v3370
      %3481 = vmatmul.mubr.f32.gmra.mxu0 %v3369
      %v3482 = vpop.f32.mrf.mxu0
      %v3483 = vadd.f32 %v3410, %v3482
      %v3484 = vpop.f32.mrf.mxu0
      %3485 = vdwg.mxu0
      %3486 = vmatprep.subr.mxu0 0.0
      %3487 = vmatpush1.msra.mxu0 0.0
      %3488 = vmatprep.subr.mxu0 0.0
      %3489 = vmatpush1.msra.mxu0 0.0
      %3490 = vmatprep.subr.mxu0 0.0
      %3491 = vmatpush1.msra.mxu0 0.0
      %3492 = vmatprep.subr.mxu0 0.0
      %3493 = vmatpush1.msra.mxu0 0.0
      %3494 = vmatprep.subr.mxu0 0.0
      %3495 = vmatpush1.msra.mxu0 0.0
      %3496 = vmatprep.subr.mxu0 0.0
      %3497 = vmatpush1.msra.mxu0 0.0
      %3498 = vmatprep.subr.mxu0 0.0
      %3499 = vmatpush1.msra.mxu0 0.0
      %3500 = vmatprep.subr.mxu0 0.0
      %3501 = vmatpush1.msra.mxu0 0.0
      %3502 = vmatprep.subr.mxu0 0.0
      %3503 = vmatpush1.msra.mxu0 0.0
      %3504 = vmatprep.subr.mxu0 0.0
      %3505 = vmatpush1.msra.mxu0 0.0
      %3506 = vmatprep.subr.mxu0 0.0
      %3507 = vmatpush1.msra.mxu0 0.0
      %3508 = vmatprep.subr.mxu0 0.0
      %3509 = vmatpush1.msra.mxu0 0.0
      %3510 = vmatprep.subr.mxu0 0.0
      %3511 = vmatpush1.msra.mxu0 0.0
      %3512 = vmatprep.subr.mxu0 0.0
      %3513 = vmatpush1.msra.mxu0 0.0
      %3514 = vmatprep.subr.mxu0 0.0
      %3515 = vmatpush1.msra.mxu0 %v3405
      %3516 = vmatprep.subr.mxu0 0.0
      %3517 = vmatpush1.msra.mxu0 %v3404
      %3518 = vmatprep.subr.mxu0 0.0
      %3519 = vmatpush2.msra.mxu0 0.0
      %3520 = vmatprep.subr.mxu0 0.0
      %3521 = vmatpush2.msra.mxu0 0.0
      %3522 = vmatprep.subr.mxu0 0.0
      %3523 = vmatpush2.msra.mxu0 0.0
      %3524 = vmatprep.subr.mxu0 0.0
      %3525 = vmatpush2.msra.mxu0 0.0
      %3526 = vmatprep.subr.mxu0 0.0
      %3527 = vmatpush2.msra.mxu0 0.0
      %3528 = vmatprep.subr.mxu0 0.0
      %3529 = vmatpush2.msra.mxu0 0.0
      %3530 = vmatprep.subr.mxu0 0.0
      %3531 = vmatpush2.msra.mxu0 0.0
      %3532 = vmatprep.subr.mxu0 0.0
      %3533 = vmatpush2.msra.mxu0 0.0
      %3534 = vmatprep.subr.mxu0 0.0
      %3535 = vmatpush2.msra.mxu0 0.0
      %3536 = vmatprep.subr.mxu0 0.0
      %3537 = vmatpush2.msra.mxu0 0.0
      %3538 = vmatprep.subr.mxu0 0.0
      %3539 = vmatpush2.msra.mxu0 0.0
      %3540 = vmatprep.subr.mxu0 0.0
      %3541 = vmatpush2.msra.mxu0 0.0
      %3542 = vmatprep.subr.mxu0 0.0
      %3543 = vmatpush2.msra.mxu0 0.0
      %3544 = vmatprep.subr.mxu0 0.0
      %3545 = vmatpush2.msra.mxu0 0.0
      %3546 = vmatprep.subr.mxu0 0.0
      %3547 = vmatpush2.msra.mxu0 0.0
      %3548 = vmatprep.subr.mxu0 0.0
      %3549 = vmatpush2.msra.mxu0 0.0
      %3550 = vmatprep.mubr.f32.mxu0 0.0
      %3551 = vmatmul.mubr.f32.gmra.mxu0 %v3414
      %v3552 = vpop.f32.mrf.mxu0
      %v3553 = vadd.f32 %v3483, %v3552
      %v3554 = vpop.f32.mrf.mxu0
      %3555 = vdwg.mxu0
      %v3556 = vld [vmem:[%s6] sm:$0xff]
      %v3557 = vld [vmem:[%s411] sm:$0x1]
      %3559 = vset.pattern.permute.xlu0 0
      %3560 = vperm.xlu0 %3559, %v3556
      %v3561 = vpop.permute.xlu0 %3560
      %v3564 = vlaneseq
      %v3565 = vshrl.u32 %v3564, 7
      %v3566 = vsub.s32 0, %v3565
      %v3567 = vrot.slane %v3557, %v3566
      %v3569 = vmul.f32 %v3561, %v3567
      %v3570 = vadd.f32 %v3553, %v3569
      %vm3571 = vcmp.ge.f32.partialorder %v3570, 0.0
      %v3572 = vmul.f32 %v3570, 0.2
      %v3573 = vsel %vm3571, %v3570, %v3572
      %vm3574 = vcmask 523264
      %3575 = vst.msk [vmem:[%s415] sm:$0xff] %vm3574, %v3573
      %p3576 = scmp.lt.s32.totalorder %s22, 1
      %s3577 = scalar_select %p3576, %s22, 1
      %s3578 = smul.addr %s3577, 8
      %s3579 = scalar_lea.vmem %s11, %s3578
      // Predicated region
      $region65: #{encode_conv_block_n.1} parent=63 // pred_check
        %p3580 = pneg %p286
      $region66: #{encode_conv_block_n.1} parent=63 // pred_check_branch
        %3582 = sbr.rel (%p3580) target = $region68
      $region67: #{encode_conv_block_n.1} parent=63 // pred_region
        _
      $region68: #{encode_conv_block_n.1} parent=63 // pred_fallthru
        _
    $region64: #{encode_conv_block_n.1} parent=5 // pred_fallthru
      _
    %p3583 = scmp.le.s32.totalorder 2, %s17
    // Predicated region
    $region69: #{encode_conv_block_n.1} parent=5 // pred_check
      %p3584 = pneg %p3583
    $region70: #{encode_conv_block_n.1} parent=5 // pred_check_branch
      %3586 = sbr.rel (%p3584) target = $region72
    $region71: #{encode_conv_block_n.1} parent=5 // pred_region
      %s3587 = ssub.s32 %s17, 2
      // Predicated region
      $region73: #{encode_conv_block_n.1} parent=71 // pred_check
        %p3588 = pneg %p292
      $region74: #{encode_conv_block_n.1} parent=71 // pred_check_branch
        %3590 = sbr.rel (%p3588) target = $region76
      $region75: #{encode_conv_block_n.1} parent=71 // pred_region
        %p3591 = scmp.lt.s32.totalorder %s23, 1
        %s3592 = scalar_select %p3591, %s23, 1
        %s3593 = smul.addr %s3592, 8
        %s3594 = scalar_lea.vmem %s11, %s3593
      $region76: #{encode_conv_block_n.1} parent=71 // pred_fallthru
        _
    $region72: #{encode_conv_block_n.1} parent=5 // pred_fallthru
      _
  $region6: #{encode_conv_block_n.1} parent=0 // loop_footer
    %s21 = sadd.s32 1, %s17
  $region7: #{encode_conv_block_n.1} parent=0 // loop_footer_branch
    %16 = sbr.rel target = $region3
  $region8: #{encode_conv_block_n.1} parent=0 // loop_exit
    _

</llo_original>
